<compile_context>
chip_gen: v6e
topology: v6e:2x2x1
jax: 0.10.0
libtpu: 0.0.40
codegen_flags: <defaults>
</compile_context>

<pallas_src>
import functools

import jax
import jax.numpy as jnp
from jax.experimental import pallas as pl
from jax.experimental.pallas import tpu as pltpu

F32 = jnp.float32
LANES = 128  # vreg lane width; h and x are carried as [N, LANES] slabs.

# EGNN defaults (module __init__): n_layers=3, inv_sublayers=1, tanh=True,
# coords_range=15 (forwarded unchanged to each EquivariantBlock), norm_constant=1,
# normalization_factor=1, aggregation_method='sum', edge_feat_nf=2.
N_LAYERS = 3
INV_SUBLAYERS = 1
EDGE_FEAT_NF = 2
NORM_CONSTANT = 1.0
NORMALIZATION_FACTOR = 1.0
COORDS_RANGE = 15.0
USE_TANH = True


def _silu(z):
    return z * jax.nn.sigmoid(z)


# ----------------------------- fused block kernel -----------------------------

def _egnn_block_kernel(coords_range, use_tanh, inv_norm_factor, norm_constant,
                       # -- inputs --
                       h_ref, x_ref, d0_ref, r_ref, c_ref, rt_ref,
                       w1h_ref, w1c_ref, w1e_ref, b1_ref, w2_ref, b2_ref,
                       w3h_ref, w3a_ref, b3_ref, w4_ref, b4_ref,
                       wc1h_ref, wc1c_ref, wc1e_ref, bc1_ref, wc2_ref, bc2_ref,
                       wc3_ref,
                       # -- outputs --
                       ho_ref, xo_ref,
                       # -- scratch --
                       aggh_ref, aggx_ref):
    p = pl.program_id(0)                 # 0: GCL pass, 1: equivariant-update pass
    t = pl.program_id(1)                 # edge tile index
    last_t = pl.num_programs(1) - 1

    # One-hot gather/scatter operands for this edge tile (bf16 in HBM, f32 math).
    R = r_ref[...].astype(F32)           # [ET, N]
    C = c_ref[...].astype(F32)           # [ET, N]
    RT = rt_ref[...].astype(F32)         # [N, ET]
    d0 = d0_ref[...]                     # [ET, 1] initial squared distances

    # coord2diff for this tile (radial is needed in both passes).  x is a
    # zero-padded [N, 128] slab, so lanes >= 3 stay exactly zero throughout.
    x = x_ref[...]
    xr = jnp.dot(R, x, preferred_element_type=F32)        # x[row]
    xc = jnp.dot(C, x, preferred_element_type=F32)        # x[col]
    diff = xr - xc                                         # [ET, 128]
    radial = jnp.sum(diff * diff, axis=1, keepdims=True)   # [ET, 1]

    @pl.when(p == 0)
    def _gcl_pass():
        @pl.when(t == 0)
        def _init():
            aggh_ref[...] = jnp.zeros_like(aggh_ref)

        h = h_ref[...]                                     # [N, 128] slab
        hr = jnp.dot(R, h, preferred_element_type=F32)     # h[row]
        hc = jnp.dot(C, h, preferred_element_type=F32)     # h[col]
        # edge_mlp(cat([h[row], h[col], radial, dist0])) as split matmuls; the
        # 2-wide edge_attr slice becomes two rank-1 broadcast multiplies.
        m = (jnp.dot(hr, w1h_ref[...], preferred_element_type=F32)
             + jnp.dot(hc, w1c_ref[...], preferred_element_type=F32)
             + radial * w1e_ref[0:1, :] + d0 * w1e_ref[1:2, :]
             + b1_ref[...])
        m = _silu(m)
        m = _silu(jnp.dot(m, w2_ref[...], preferred_element_type=F32) + b2_ref[...])
        # scatter-add over `row` via pre-transposed one-hot (plain MXU matmul).
        contrib = jnp.dot(RT, m, preferred_element_type=F32)
        if inv_norm_factor != 1.0:
            contrib = contrib * inv_norm_factor
        aggh_ref[...] += contrib

        @pl.when(t == last_t)
        def _node_update():
            hh = h_ref[...]
            n = _silu(jnp.dot(hh, w3h_ref[...], preferred_element_type=F32)
                      + jnp.dot(aggh_ref[...], w3a_ref[...],
                                preferred_element_type=F32)
                      + b3_ref[...])
            ho_ref[...] = (hh
                           + jnp.dot(n, w4_ref[...], preferred_element_type=F32)
                           + b4_ref[...])

    @pl.when(p == 1)
    def _equiv_pass():
        @pl.when(t == 0)
        def _init():
            aggx_ref[...] = jnp.zeros_like(aggx_ref)

        hn = ho_ref[...]        # updated node features written at end of pass 0
        hr = jnp.dot(R, hn, preferred_element_type=F32)
        hc = jnp.dot(C, hn, preferred_element_type=F32)
        m = _silu(jnp.dot(hr, wc1h_ref[...], preferred_element_type=F32)
                  + jnp.dot(hc, wc1c_ref[...], preferred_element_type=F32)
                  + radial * wc1e_ref[0:1, :] + d0 * wc1e_ref[1:2, :]
                  + bc1_ref[...])
        m = _silu(jnp.dot(m, wc2_ref[...], preferred_element_type=F32) + bc2_ref[...])
        phi = jnp.dot(m, wc3_ref[...], preferred_element_type=F32)     # [ET, 1]
        if use_tanh:
            phi = jnp.tanh(phi) * coords_range
        norm = jnp.sqrt(radial + 1e-8)
        cdiff = diff / (norm + norm_constant)              # zero lanes stay zero
        trans = cdiff * phi                                # [ET, 128]
        contrib = jnp.dot(RT, trans, preferred_element_type=F32)
        if inv_norm_factor != 1.0:
            contrib = contrib * inv_norm_factor
        aggx_ref[...] += contrib

        @pl.when(t == last_t)
        def _coord_update():
            xo_ref[...] = x_ref[...] + aggx_ref[...]


def egnn_block_pallas(h_slab, x_slab, d0, R, C, RT, bp, *, edge_tile,
                      coords_range=COORDS_RANGE, use_tanh=USE_TANH,
                      norm_constant=NORM_CONSTANT,
                      normalization_factor=NORMALIZATION_FACTOR):
    N, lanes = h_slab.shape
    E_pad = R.shape[0]
    assert E_pad % edge_tile == 0
    num_tiles = E_pad // edge_tile
    g, e = bp['gcl'], bp['equiv']
    H = g['w2'].shape[0]

    weights = (g['w1h'], g['w1c'], g['w1e'], g['b1'], g['w2'], g['b2'],
               g['w3h'], g['w3a'], g['b3'], g['w4'], g['b4'],
               e['wc1h'], e['wc1c'], e['wc1e'], e['bc1'], e['wc2'], e['bc2'],
               e['wc3'])

    def _const_spec(shape):
        zeros = (0,) * len(shape)
        return pl.BlockSpec(shape, lambda p, t: zeros)

    in_specs = [
        _const_spec((N, lanes)),                               # h slab (resident)
        _const_spec((N, lanes)),                               # x slab (resident)
        pl.BlockSpec((edge_tile, 1), lambda p, t: (t, 0)),     # dist0 tile
        pl.BlockSpec((edge_tile, N), lambda p, t: (t, 0)),     # R tile (gather)
        pl.BlockSpec((edge_tile, N), lambda p, t: (t, 0)),     # C tile (gather)
        pl.BlockSpec((N, edge_tile), lambda p, t: (0, t)),     # R^T tile (scatter)
    ] + [_const_spec(w.shape) for w in weights]

    kernel = functools.partial(_egnn_block_kernel, float(coords_range),
                               bool(use_tanh), float(1.0 / normalization_factor),
                               float(norm_constant))

    return pl.pallas_call(
        kernel,
        grid=(2, num_tiles),
        in_specs=in_specs,
        out_specs=(_const_spec((N, lanes)), _const_spec((N, lanes))),
        out_shape=(jax.ShapeDtypeStruct((N, lanes), F32),
                   jax.ShapeDtypeStruct((N, lanes), F32)),
        scratch_shapes=[pltpu.VMEM((N, H), F32),       # node message accumulator
                        pltpu.VMEM((N, lanes), F32)],  # coordinate accumulator
        input_output_aliases={0: 0, 1: 1},             # h, x updated in place
        compiler_params=pltpu.CompilerParams(
            dimension_semantics=("arbitrary", "arbitrary")),
    )(h_slab, x_slab, d0, R, C, RT, *weights)


# ----------------------------- parameter init -----------------------------

def _xavier_uniform(key, fan_in, fan_out, gain=1.0):
    limit = gain * (6.0 / (fan_in + fan_out)) ** 0.5
    # stored transposed w.r.t. torch ([in, out]) so kernels do x @ W
    return jax.random.uniform(key, (fan_in, fan_out), F32, -limit, limit)


def _linear_params(key, fan_in, fan_out, gain=1.0, bias=True):
    kw, kb = jax.random.split(key)
    w = _xavier_uniform(kw, fan_in, fan_out, gain)
    if bias:
        bound = 1.0 / (fan_in ** 0.5)
        b = jax.random.uniform(kb, (1, fan_out), F32, -bound, bound)
    else:
        b = None
    return w, b


def init_egnn_params(key, in_nf, hidden_nf, out_nf,
                     n_layers=N_LAYERS, inv_sublayers=INV_SUBLAYERS,
                     edge_feat_nf=EDGE_FEAT_NF):
    keys = jax.random.split(key, 2 + n_layers)
    emb_w, emb_b = _linear_params(keys[0], in_nf, hidden_nf)
    out_w, out_b = _linear_params(keys[1], hidden_nf, out_nf)
    blocks = []
    for i in range(n_layers):
        bk = jax.random.split(keys[2 + i], inv_sublayers + 1)
        gcls = []
        for j in range(inv_sublayers):
            k = jax.random.split(bk[j], 4)
            w1, b1 = _linear_params(k[0], 2 * hidden_nf + edge_feat_nf, hidden_nf)
            w2, b2 = _linear_params(k[1], hidden_nf, hidden_nf)
            w3, b3 = _linear_params(k[2], 2 * hidden_nf, hidden_nf)
            w4, b4 = _linear_params(k[3], hidden_nf, hidden_nf)
            gcls.append(dict(
                w1h=w1[:hidden_nf], w1c=w1[hidden_nf:2 * hidden_nf],
                w1e=w1[2 * hidden_nf:], b1=b1,
                w2=w2, b2=b2,
                w3h=w3[:hidden_nf], w3a=w3[hidden_nf:], b3=b3,
                w4=w4, b4=b4))
        ke = jax.random.split(bk[inv_sublayers], 3)
        wc1, bc1 = _linear_params(ke[0], 2 * hidden_nf + edge_feat_nf, hidden_nf)
        wc2, bc2 = _linear_params(ke[1], hidden_nf, hidden_nf)
        wc3, _ = _linear_params(ke[2], hidden_nf, 1, gain=0.001, bias=False)
        equiv = dict(
            wc1h=wc1[:hidden_nf], wc1c=wc1[hidden_nf:2 * hidden_nf],
            wc1e=wc1[2 * hidden_nf:], bc1=bc1,
            wc2=wc2, bc2=bc2, wc3=wc3)
        blocks.append(dict(gcl=gcls, equiv=equiv))
    return dict(emb_w=emb_w, emb_b=emb_b, out_w=out_w, out_b=out_b, blocks=blocks)


# ----------------------------- slab / padding helpers -----------------------------

def _pad_rows(w, rows):
    return jnp.pad(w, ((0, rows - w.shape[0]), (0, 0)))


def _pad_cols(w, cols):
    return jnp.pad(w, ((0, 0), (0, cols - w.shape[1])))


def _pad_block_params(gcl, equiv, lanes):
    """Zero-pad the weights that touch the [N, lanes] node-feature slab (exact)."""
    return dict(
        gcl=dict(w1h=_pad_rows(gcl['w1h'], lanes), w1c=_pad_rows(gcl['w1c'], lanes),
                 w1e=gcl['w1e'], b1=gcl['b1'], w2=gcl['w2'], b2=gcl['b2'],
                 w3h=_pad_rows(gcl['w3h'], lanes), w3a=gcl['w3a'], b3=gcl['b3'],
                 w4=_pad_cols(gcl['w4'], lanes), b4=_pad_cols(gcl['b4'], lanes)),
        equiv=dict(wc1h=_pad_rows(equiv['wc1h'], lanes),
                   wc1c=_pad_rows(equiv['wc1c'], lanes),
                   wc1e=equiv['wc1e'], bc1=equiv['bc1'],
                   wc2=equiv['wc2'], bc2=equiv['bc2'], wc3=equiv['wc3']))


# ----------------------------- EGNN forward (Pallas) -----------------------------

def egnn_forward(h0, x0, row, col, params, *, edge_tile=128):
    """Pallas EGNN forward.  h0: [N, in_nf], x0: [N, 3], row/col: [E] int32."""
    N = h0.shape[0]
    E = row.shape[0]
    E_pad = ((E + edge_tile - 1) // edge_tile) * edge_tile

    # Dense one-hot gather/scatter operands, bf16 (exact for 0/1), edge-padded
    # (padded edges have all-zero rows/columns so they contribute nothing).
    R = jnp.pad(jax.nn.one_hot(row, N, dtype=jnp.bfloat16), ((0, E_pad - E), (0, 0)))
    C = jnp.pad(jax.nn.one_hot(col, N, dtype=jnp.bfloat16), ((0, E_pad - E), (0, 0)))
    RT = R.T                                                 # [N, E_pad]

    # distances_sq from the *initial* coordinates (EGNN.forward); second column
    # of edge_attr in every block; tiny -> plain JAX.
    d0 = jnp.sum((x0[row] - x0[col]) ** 2, axis=1, keepdims=True).astype(F32)
    d0 = jnp.pad(d0, ((0, E_pad - E), (0, 0)))

    # Lane-dense slabs: zero-pad x and the embedded h to 128 lanes so all HBM
    # round trips between blocks are full-width stores.
    x_slab = jnp.pad(x0.astype(F32), ((0, 0), (0, LANES - x0.shape[1])))
    emb_w = _pad_cols(params['emb_w'], LANES)
    emb_b = _pad_cols(params['emb_b'], LANES)
    h_slab = h0.astype(F32) @ emb_w + emb_b                  # embedding (plain JAX)

    for blk in params['blocks']:
        # TODO(synk): kernel assumes inv_sublayers == 1 (the EGNN default).
        assert len(blk['gcl']) == 1
        bp = _pad_block_params(blk['gcl'][0], blk['equiv'], LANES)
        h_slab, x_slab = egnn_block_pallas(h_slab, x_slab, d0, R, C, RT, bp,
                                           edge_tile=edge_tile)

    h_out = h_slab @ _pad_rows(params['out_w'], LANES) + params['out_b']
    x_out = x_slab[:, :x0.shape[1]]
    return h_out, x_out


# ----------------------------- pure-JAX reference -----------------------------

def _ref_coord2diff(x, row, col, norm_constant=1.0):
    diff = x[row] - x[col]
    radial = jnp.sum(diff ** 2, axis=1, keepdims=True)
    norm = jnp.sqrt(radial + 1e-8)
    return radial, diff / (norm + norm_constant)


def ref_forward(h, x, row, col, params):
    N = h.shape[0]
    dist0, _ = _ref_coord2diff(x, row, col, 1.0)
    h = h @ params['emb_w'] + params['emb_b']
    for blk in params['blocks']:
        rad, cd = _ref_coord2diff(x, row, col, NORM_CONSTANT)
        ea = jnp.concatenate([rad, dist0], axis=1)
        for g in blk['gcl']:
            hr, hc = h[row], h[col]
            m = _silu(hr @ g['w1h'] + hc @ g['w1c'] + ea @ g['w1e'] + g['b1'])
            m = _silu(m @ g['w2'] + g['b2'])
            agg = jax.ops.segment_sum(m, row, num_segments=N) / NORMALIZATION_FACTOR
            n = _silu(h @ g['w3h'] + agg @ g['w3a'] + g['b3'])
            h = h + n @ g['w4'] + g['b4']
        e = blk['equiv']
        hr, hc = h[row], h[col]
        m = _silu(hr @ e['wc1h'] + hc @ e['wc1c'] + ea @ e['wc1e'] + e['bc1'])
        m = _silu(m @ e['wc2'] + e['bc2'])
        phi = m @ e['wc3']
        if USE_TANH:
            phi = jnp.tanh(phi) * COORDS_RANGE
        trans = cd * phi
        agg = jax.ops.segment_sum(trans, row, num_segments=N) / NORMALIZATION_FACTOR
        x = x + agg
    h = h @ params['out_w'] + params['out_b']
    return h, x


# ----------------------------- main -----------------------------

if __name__ == "__main__":
    key = jax.random.PRNGKey(0)
    N_NODES, IN_NF, HIDDEN_NF, OUT_NF = 16, 8, 32, 8
    k1, k2, k3 = jax.random.split(key, 3)

    h0 = jax.random.normal(k1, (N_NODES, IN_NF), dtype=F32)
    x0 = jax.random.normal(k2, (N_NODES, 3), dtype=F32)

    # fully connected graph without self-loops: E = N*(N-1) = 240 edges
    # (pads to E_pad=256 -> 2 edge tiles of 128, exercising the tiled reduction)
    rows, cols = [], []
    for i in range(N_NODES):
        for j in range(N_NODES):
            if i != j:
                rows.append(i)
                cols.append(j)
    row = jnp.array(rows, dtype=jnp.int32)
    col = jnp.array(cols, dtype=jnp.int32)

    params = init_egnn_params(k3, IN_NF, HIDDEN_NF, OUT_NF)

    fwd = jax.jit(egnn_forward)
    h_out, x_out = fwd(h0, x0, row, col, params)
    jax.block_until_ready((h_out, x_out))

    h_ref, x_ref = ref_forward(h0, x0, row, col, params)
    assert h_out.shape == (N_NODES, OUT_NF) and x_out.shape == (N_NODES, 3)
    assert jnp.allclose(h_out, h_ref, atol=5e-4, rtol=5e-4), \
        float(jnp.max(jnp.abs(h_out - h_ref)))
    assert jnp.allclose(x_out, x_ref, atol=5e-4, rtol=5e-4), \
        float(jnp.max(jnp.abs(x_out - x_ref)))

    print("KERNEL_OK")
</pallas_src>

<mosaic_0001>
module attributes {stable_mosaic.version = 11 : i64} {
  func.func @_egnn_block_kernel(%arg0: i32, %arg1: i32, %arg2: memref<16x128xf32, #tpu.memory_space<vmem>>, %arg3: memref<16x128xf32, #tpu.memory_space<vmem>>, %arg4: memref<128x1xf32, #tpu.memory_space<vmem>>, %arg5: memref<128x16xbf16, #tpu.memory_space<vmem>>, %arg6: memref<128x16xbf16, #tpu.memory_space<vmem>>, %arg7: memref<16x128xbf16, #tpu.memory_space<vmem>>, %arg8: memref<128x32xf32, #tpu.memory_space<vmem>>, %arg9: memref<128x32xf32, #tpu.memory_space<vmem>>, %arg10: memref<2x32xf32, #tpu.memory_space<vmem>>, %arg11: memref<1x32xf32, #tpu.memory_space<vmem>>, %arg12: memref<32x32xf32, #tpu.memory_space<vmem>>, %arg13: memref<1x32xf32, #tpu.memory_space<vmem>>, %arg14: memref<128x32xf32, #tpu.memory_space<vmem>>, %arg15: memref<32x32xf32, #tpu.memory_space<vmem>>, %arg16: memref<1x32xf32, #tpu.memory_space<vmem>>, %arg17: memref<32x128xf32, #tpu.memory_space<vmem>>, %arg18: memref<1x128xf32, #tpu.memory_space<vmem>>, %arg19: memref<128x32xf32, #tpu.memory_space<vmem>>, %arg20: memref<128x32xf32, #tpu.memory_space<vmem>>, %arg21: memref<2x32xf32, #tpu.memory_space<vmem>>, %arg22: memref<1x32xf32, #tpu.memory_space<vmem>>, %arg23: memref<32x32xf32, #tpu.memory_space<vmem>>, %arg24: memref<1x32xf32, #tpu.memory_space<vmem>>, %arg25: memref<32x1xf32, #tpu.memory_space<vmem>>, %arg26: memref<16x128xf32, #tpu.memory_space<vmem>>, %arg27: memref<16x128xf32, #tpu.memory_space<vmem>>, %arg28: memref<16x32xf32, #tpu.memory_space<vmem>>, %arg29: memref<16x128xf32, #tpu.memory_space<vmem>>) attributes {dimension_semantics = [#tpu.dimension_semantics<arbitrary>, #tpu.dimension_semantics<arbitrary>], iteration_bounds = array<i64: 2, 2>, scalar_prefetch = 0 : i64, scratch_operands = 2 : i64, tpu.core_type = #tpu.core_type<tc>, window_params = [{pipeline_mode = #tpu.pipeline_mode<synchronous>, transform_indices = @transform_0, window_bounds = array<i64: 16, 128>}, {pipeline_mode = #tpu.pipeline_mode<synchronous>, transform_indices = @transform_1, window_bounds = array<i64: 16, 128>}, {transform_indices = @transform_2, window_bounds = array<i64: 128, 1>}, {transform_indices = @transform_3, window_bounds = array<i64: 128, 16>}, {transform_indices = @transform_4, window_bounds = array<i64: 128, 16>}, {transform_indices = @transform_5, window_bounds = array<i64: 16, 128>}, {pipeline_mode = #tpu.pipeline_mode<synchronous>, transform_indices = @transform_6, window_bounds = array<i64: 128, 32>}, {pipeline_mode = #tpu.pipeline_mode<synchronous>, transform_indices = @transform_7, window_bounds = array<i64: 128, 32>}, {pipeline_mode = #tpu.pipeline_mode<synchronous>, transform_indices = @transform_8, window_bounds = array<i64: 2, 32>}, {pipeline_mode = #tpu.pipeline_mode<synchronous>, transform_indices = @transform_9, window_bounds = array<i64: 1, 32>}, {pipeline_mode = #tpu.pipeline_mode<synchronous>, transform_indices = @transform_10, window_bounds = array<i64: 32, 32>}, {pipeline_mode = #tpu.pipeline_mode<synchronous>, transform_indices = @transform_11, window_bounds = array<i64: 1, 32>}, {pipeline_mode = #tpu.pipeline_mode<synchronous>, transform_indices = @transform_12, window_bounds = array<i64: 128, 32>}, {pipeline_mode = #tpu.pipeline_mode<synchronous>, transform_indices = @transform_13, window_bounds = array<i64: 32, 32>}, {pipeline_mode = #tpu.pipeline_mode<synchronous>, transform_indices = @transform_14, window_bounds = array<i64: 1, 32>}, {pipeline_mode = #tpu.pipeline_mode<synchronous>, transform_indices = @transform_15, window_bounds = array<i64: 32, 128>}, {pipeline_mode = #tpu.pipeline_mode<synchronous>, transform_indices = @transform_16, window_bounds = array<i64: 1, 128>}, {pipeline_mode = #tpu.pipeline_mode<synchronous>, transform_indices = @transform_17, window_bounds = array<i64: 128, 32>}, {pipeline_mode = #tpu.pipeline_mode<synchronous>, transform_indices = @transform_18, window_bounds = array<i64: 128, 32>}, {pipeline_mode = #tpu.pipeline_mode<synchronous>, transform_indices = @transform_19, window_bounds = array<i64: 2, 32>}, {pipeline_mode = #tpu.pipeline_mode<synchronous>, transform_indices = @transform_20, window_bounds = array<i64: 1, 32>}, {pipeline_mode = #tpu.pipeline_mode<synchronous>, transform_indices = @transform_21, window_bounds = array<i64: 32, 32>}, {pipeline_mode = #tpu.pipeline_mode<synchronous>, transform_indices = @transform_22, window_bounds = array<i64: 1, 32>}, {pipeline_mode = #tpu.pipeline_mode<synchronous>, transform_indices = @transform_23, window_bounds = array<i64: 32, 1>}, {pipeline_mode = #tpu.pipeline_mode<synchronous>, transform_indices = @transform_24, window_bounds = array<i64: 16, 128>}, {pipeline_mode = #tpu.pipeline_mode<synchronous>, transform_indices = @transform_25, window_bounds = array<i64: 16, 128>}]} {
    %c0 = arith.constant 0 : index
    %c0_0 = arith.constant 0 : index
    %0 = vector.load %arg5[%c0, %c0_0] : memref<128x16xbf16, #tpu.memory_space<vmem>>, vector<128x16xbf16>
    %1 = arith.extf %0 : vector<128x16xbf16> to vector<128x16xf32>
    %c0_1 = arith.constant 0 : index
    %c0_2 = arith.constant 0 : index
    %2 = vector.load %arg6[%c0_1, %c0_2] : memref<128x16xbf16, #tpu.memory_space<vmem>>, vector<128x16xbf16>
    %3 = arith.extf %2 : vector<128x16xbf16> to vector<128x16xf32>
    %c0_3 = arith.constant 0 : index
    %c0_4 = arith.constant 0 : index
    %4 = vector.load %arg7[%c0_3, %c0_4] : memref<16x128xbf16, #tpu.memory_space<vmem>>, vector<16x128xbf16>
    %5 = arith.extf %4 : vector<16x128xbf16> to vector<16x128xf32>
    %c0_5 = arith.constant 0 : index
    %c0_6 = arith.constant 0 : index
    %6 = vector.load %arg4[%c0_5, %c0_6] : memref<128x1xf32, #tpu.memory_space<vmem>>, vector<128x1xf32>
    %c0_7 = arith.constant 0 : index
    %c0_8 = arith.constant 0 : index
    %7 = vector.load %arg3[%c0_7, %c0_8] : memref<16x128xf32, #tpu.memory_space<vmem>>, vector<16x128xf32>
    %cst = arith.constant dense<0.000000e+00> : vector<128x128xf32>
    %8 = tpu.matmul %1, %7, %cst {dimension_numbers = #tpu.dot_dimension_numbers<[1], [0], [0], [1], [0, 0, 1, 1], [], []>} : vector<128x16xf32>, vector<16x128xf32>, vector<128x128xf32> -> vector<128x128xf32>
    %cst_9 = arith.constant dense<0.000000e+00> : vector<128x128xf32>
    %9 = tpu.matmul %3, %7, %cst_9 {dimension_numbers = #tpu.dot_dimension_numbers<[1], [0], [0], [1], [0, 0, 1, 1], [], []>} : vector<128x16xf32>, vector<16x128xf32>, vector<128x128xf32> -> vector<128x128xf32>
    %10 = arith.subf %8, %9 : vector<128x128xf32>
    %11 = arith.mulf %10, %10 : vector<128x128xf32>
    %cst_10 = arith.constant dense<0.000000e+00> : vector<128xf32>
    %12 = vector.multi_reduction <add>, %11, %cst_10 [1] : vector<128x128xf32> to vector<128xf32>
    %13 = vector.shape_cast %12 : vector<128xf32> to vector<128x1xf32>
    %c0_i32 = arith.constant 0 : i32
    %14 = arith.cmpi eq, %arg0, %c0_i32 : i32
    %15 = arith.extui %14 : i1 to i32
    %c0_i32_11 = arith.constant 0 : i32
    %16 = arith.cmpi ne, %15, %c0_i32_11 : i32
    scf.if %16 {
      %c0_i32_13 = arith.constant 0 : i32
      %20 = arith.cmpi eq, %arg1, %c0_i32_13 : i32
      %21 = arith.extui %20 : i1 to i32
      %c0_i32_14 = arith.constant 0 : i32
      %22 = arith.cmpi ne, %21, %c0_i32_14 : i32
      scf.if %22 {
        %cst_44 = arith.constant 0.000000e+00 : f32
        %68 = vector.broadcast %cst_44 : f32 to vector<16x32xf32>
        %c0_45 = arith.constant 0 : index
        %c0_46 = arith.constant 0 : index
        %69 = vector.load %arg28[%c0_45, %c0_46] : memref<16x32xf32, #tpu.memory_space<vmem>>, vector<16x32xf32>
        tpu.vector_store %arg28[%c0_45, %c0_46], %68 {strides = array<i32>} : memref<16x32xf32, #tpu.memory_space<vmem>>, vector<16x32xf32>,
      } else {
      }
      %c0_15 = arith.constant 0 : index
      %c0_16 = arith.constant 0 : index
      %23 = vector.load %arg2[%c0_15, %c0_16] : memref<16x128xf32, #tpu.memory_space<vmem>>, vector<16x128xf32>
      %cst_17 = arith.constant dense<0.000000e+00> : vector<128x128xf32>
      %24 = tpu.matmul %1, %23, %cst_17 {dimension_numbers = #tpu.dot_dimension_numbers<[1], [0], [0], [1], [0, 0, 1, 1], [], []>} : vector<128x16xf32>, vector<16x128xf32>, vector<128x128xf32> -> vector<128x128xf32>
      %cst_18 = arith.constant dense<0.000000e+00> : vector<128x128xf32>
      %25 = tpu.matmul %3, %23, %cst_18 {dimension_numbers = #tpu.dot_dimension_numbers<[1], [0], [0], [1], [0, 0, 1, 1], [], []>} : vector<128x16xf32>, vector<16x128xf32>, vector<128x128xf32> -> vector<128x128xf32>
      %c0_19 = arith.constant 0 : index
      %c0_20 = arith.constant 0 : index
      %26 = vector.load %arg8[%c0_19, %c0_20] : memref<128x32xf32, #tpu.memory_space<vmem>>, vector<128x32xf32>
      %cst_21 = arith.constant dense<0.000000e+00> : vector<128x32xf32>
      %27 = tpu.matmul %24, %26, %cst_21 {dimension_numbers = #tpu.dot_dimension_numbers<[1], [0], [0], [1], [0, 0, 1, 1], [], []>} : vector<128x128xf32>, vector<128x32xf32>, vector<128x32xf32> -> vector<128x32xf32>
      %c0_22 = arith.constant 0 : index
      %c0_23 = arith.constant 0 : index
      %28 = vector.load %arg9[%c0_22, %c0_23] : memref<128x32xf32, #tpu.memory_space<vmem>>, vector<128x32xf32>
      %cst_24 = arith.constant dense<0.000000e+00> : vector<128x32xf32>
      %29 = tpu.matmul %25, %28, %cst_24 {dimension_numbers = #tpu.dot_dimension_numbers<[1], [0], [0], [1], [0, 0, 1, 1], [], []>} : vector<128x128xf32>, vector<128x32xf32>, vector<128x32xf32> -> vector<128x32xf32>
      %30 = arith.addf %27, %29 : vector<128x32xf32>
      %c0_25 = arith.constant 0 : index
      %c0_26 = arith.constant 0 : index
      %31 = vector.load %arg10[%c0_25, %c0_26] : memref<2x32xf32, #tpu.memory_space<vmem>>, vector<1x32xf32>
      %32 = vector.broadcast %13 : vector<128x1xf32> to vector<128x32xf32>
      %33 = vector.broadcast %31 : vector<1x32xf32> to vector<128x32xf32>
      %34 = arith.mulf %32, %33 : vector<128x32xf32>
      %35 = arith.addf %30, %34 : vector<128x32xf32>
      %c1 = arith.constant 1 : index
      %c0_27 = arith.constant 0 : index
      %36 = vector.load %arg10[%c1, %c0_27] : memref<2x32xf32, #tpu.memory_space<vmem>>, vector<1x32xf32>
      %37 = vector.broadcast %6 : vector<128x1xf32> to vector<128x32xf32>
      %38 = vector.broadcast %36 : vector<1x32xf32> to vector<128x32xf32>
      %39 = arith.mulf %37, %38 : vector<128x32xf32>
      %40 = arith.addf %35, %39 : vector<128x32xf32>
      %c0_28 = arith.constant 0 : index
      %c0_29 = arith.constant 0 : index
      %41 = vector.load %arg11[%c0_28, %c0_29] : memref<1x32xf32, #tpu.memory_space<vmem>>, vector<1x32xf32>
      %42 = vector.broadcast %41 : vector<1x32xf32> to vector<128x32xf32>
      %43 = arith.addf %40, %42 : vector<128x32xf32>
      %44 = arith.negf %43 : vector<128x32xf32>
      %45 = math.exp %44 : vector<128x32xf32>
      %cst_30 = arith.constant 1.000000e+00 : f32
      %46 = vector.broadcast %cst_30 : f32 to vector<128x32xf32>
      %47 = arith.addf %46, %45 : vector<128x32xf32>
      %48 = arith.divf %46, %47 : vector<128x32xf32>
      %49 = arith.mulf %43, %48 : vector<128x32xf32>
      %c0_31 = arith.constant 0 : index
      %c0_32 = arith.constant 0 : index
      %50 = vector.load %arg12[%c0_31, %c0_32] : memref<32x32xf32, #tpu.memory_space<vmem>>, vector<32x32xf32>
      %cst_33 = arith.constant dense<0.000000e+00> : vector<128x32xf32>
      %51 = tpu.matmul %49, %50, %cst_33 {dimension_numbers = #tpu.dot_dimension_numbers<[1], [0], [0], [1], [0, 0, 1, 1], [], []>} : vector<128x32xf32>, vector<32x32xf32>, vector<128x32xf32> -> vector<128x32xf32>
      %c0_34 = arith.constant 0 : index
      %c0_35 = arith.constant 0 : index
      %52 = vector.load %arg13[%c0_34, %c0_35] : memref<1x32xf32, #tpu.memory_space<vmem>>, vector<1x32xf32>
      %53 = vector.broadcast %52 : vector<1x32xf32> to vector<128x32xf32>
      %54 = arith.addf %51, %53 : vector<128x32xf32>
      %55 = arith.negf %54 : vector<128x32xf32>
      %56 = math.exp %55 : vector<128x32xf32>
      %cst_36 = arith.constant 1.000000e+00 : f32
      %57 = vector.broadcast %cst_36 : f32 to vector<128x32xf32>
      %58 = arith.addf %57, %56 : vector<128x32xf32>
      %59 = arith.divf %57, %58 : vector<128x32xf32>
      %60 = arith.mulf %54, %59 : vector<128x32xf32>
      %cst_37 = arith.constant dense<0.000000e+00> : vector<16x32xf32>
      %61 = tpu.matmul %5, %60, %cst_37 {dimension_numbers = #tpu.dot_dimension_numbers<[1], [0], [0], [1], [0, 0, 1, 1], [], []>} : vector<16x128xf32>, vector<128x32xf32>, vector<16x32xf32> -> vector<16x32xf32>
      %c0_38 = arith.constant 0 : index
      %c0_39 = arith.constant 0 : index
      %62 = vector.load %arg28[%c0_38, %c0_39] : memref<16x32xf32, #tpu.memory_space<vmem>>, vector<16x32xf32>
      %63 = arith.addf %62, %61 : vector<16x32xf32>
      %c0_40 = arith.constant 0 : index
      %c0_41 = arith.constant 0 : index
      %64 = vector.load %arg28[%c0_40, %c0_41] : memref<16x32xf32, #tpu.memory_space<vmem>>, vector<16x32xf32>
      tpu.vector_store %arg28[%c0_40, %c0_41], %63 {strides = array<i32>} : memref<16x32xf32, #tpu.memory_space<vmem>>, vector<16x32xf32>,
      %c1_i32_42 = arith.constant 1 : i32
      %65 = arith.cmpi eq, %arg1, %c1_i32_42 : i32
      %66 = arith.extui %65 : i1 to i32
      %c0_i32_43 = arith.constant 0 : i32
      %67 = arith.cmpi ne, %66, %c0_i32_43 : i32
      scf.if %67 {
        %c0_44 = arith.constant 0 : index
        %c0_45 = arith.constant 0 : index
        %68 = vector.load %arg2[%c0_44, %c0_45] : memref<16x128xf32, #tpu.memory_space<vmem>>, vector<16x128xf32>
        %c0_46 = arith.constant 0 : index
        %c0_47 = arith.constant 0 : index
        %69 = vector.load %arg14[%c0_46, %c0_47] : memref<128x32xf32, #tpu.memory_space<vmem>>, vector<128x32xf32>
        %cst_48 = arith.constant dense<0.000000e+00> : vector<16x32xf32>
        %70 = tpu.matmul %68, %69, %cst_48 {dimension_numbers = #tpu.dot_dimension_numbers<[1], [0], [0], [1], [0, 0, 1, 1], [], []>} : vector<16x128xf32>, vector<128x32xf32>, vector<16x32xf32> -> vector<16x32xf32>
        %c0_49 = arith.constant 0 : index
        %c0_50 = arith.constant 0 : index
        %71 = vector.load %arg28[%c0_49, %c0_50] : memref<16x32xf32, #tpu.memory_space<vmem>>, vector<16x32xf32>
        %c0_51 = arith.constant 0 : index
        %c0_52 = arith.constant 0 : index
        %72 = vector.load %arg15[%c0_51, %c0_52] : memref<32x32xf32, #tpu.memory_space<vmem>>, vector<32x32xf32>
        %cst_53 = arith.constant dense<0.000000e+00> : vector<16x32xf32>
        %73 = tpu.matmul %71, %72, %cst_53 {dimension_numbers = #tpu.dot_dimension_numbers<[1], [0], [0], [1], [0, 0, 1, 1], [], []>} : vector<16x32xf32>, vector<32x32xf32>, vector<16x32xf32> -> vector<16x32xf32>
        %74 = arith.addf %70, %73 : vector<16x32xf32>
        %c0_54 = arith.constant 0 : index
        %c0_55 = arith.constant 0 : index
        %75 = vector.load %arg16[%c0_54, %c0_55] : memref<1x32xf32, #tpu.memory_space<vmem>>, vector<1x32xf32>
        %76 = vector.broadcast %75 : vector<1x32xf32> to vector<16x32xf32>
        %77 = arith.addf %74, %76 : vector<16x32xf32>
        %78 = arith.negf %77 : vector<16x32xf32>
        %79 = math.exp %78 : vector<16x32xf32>
        %cst_56 = arith.constant 1.000000e+00 : f32
        %80 = vector.broadcast %cst_56 : f32 to vector<16x32xf32>
        %81 = arith.addf %80, %79 : vector<16x32xf32>
        %82 = arith.divf %80, %81 : vector<16x32xf32>
        %83 = arith.mulf %77, %82 : vector<16x32xf32>
        %c0_57 = arith.constant 0 : index
        %c0_58 = arith.constant 0 : index
        %84 = vector.load %arg17[%c0_57, %c0_58] : memref<32x128xf32, #tpu.memory_space<vmem>>, vector<32x128xf32>
        %cst_59 = arith.constant dense<0.000000e+00> : vector<16x128xf32>
        %85 = tpu.matmul %83, %84, %cst_59 {dimension_numbers = #tpu.dot_dimension_numbers<[1], [0], [0], [1], [0, 0, 1, 1], [], []>} : vector<16x32xf32>, vector<32x128xf32>, vector<16x128xf32> -> vector<16x128xf32>
        %86 = arith.addf %68, %85 : vector<16x128xf32>
        %c0_60 = arith.constant 0 : index
        %c0_61 = arith.constant 0 : index
        %87 = vector.load %arg18[%c0_60, %c0_61] : memref<1x128xf32, #tpu.memory_space<vmem>>, vector<1x128xf32>
        %88 = vector.broadcast %87 : vector<1x128xf32> to vector<16x128xf32>
        %89 = arith.addf %86, %88 : vector<16x128xf32>
        %c0_62 = arith.constant 0 : index
        %c0_63 = arith.constant 0 : index
        %90 = vector.load %arg26[%c0_62, %c0_63] : memref<16x128xf32, #tpu.memory_space<vmem>>, vector<16x128xf32>
        tpu.vector_store %arg26[%c0_62, %c0_63], %89 {strides = array<i32>} : memref<16x128xf32, #tpu.memory_space<vmem>>, vector<16x128xf32>,
      } else {
      }
    } else {
    }
    %c1_i32 = arith.constant 1 : i32
    %17 = arith.cmpi eq, %arg0, %c1_i32 : i32
    %18 = arith.extui %17 : i1 to i32
    %c0_i32_12 = arith.constant 0 : i32
    %19 = arith.cmpi ne, %18, %c0_i32_12 : i32
    scf.if %19 {
      %c0_i32_13 = arith.constant 0 : i32
      %20 = arith.cmpi eq, %arg1, %c0_i32_13 : i32
      %21 = arith.extui %20 : i1 to i32
      %c0_i32_14 = arith.constant 0 : i32
      %22 = arith.cmpi ne, %21, %c0_i32_14 : i32
      scf.if %22 {
        %cst_50 = arith.constant 0.000000e+00 : f32
        %82 = vector.broadcast %cst_50 : f32 to vector<16x128xf32>
        %c0_51 = arith.constant 0 : index
        %c0_52 = arith.constant 0 : index
        %83 = vector.load %arg29[%c0_51, %c0_52] : memref<16x128xf32, #tpu.memory_space<vmem>>, vector<16x128xf32>
        tpu.vector_store %arg29[%c0_51, %c0_52], %82 {strides = array<i32>} : memref<16x128xf32, #tpu.memory_space<vmem>>, vector<16x128xf32>,
      } else {
      }
      %c0_15 = arith.constant 0 : index
      %c0_16 = arith.constant 0 : index
      %23 = vector.load %arg26[%c0_15, %c0_16] : memref<16x128xf32, #tpu.memory_space<vmem>>, vector<16x128xf32>
      %cst_17 = arith.constant dense<0.000000e+00> : vector<128x128xf32>
      %24 = tpu.matmul %1, %23, %cst_17 {dimension_numbers = #tpu.dot_dimension_numbers<[1], [0], [0], [1], [0, 0, 1, 1], [], []>} : vector<128x16xf32>, vector<16x128xf32>, vector<128x128xf32> -> vector<128x128xf32>
      %cst_18 = arith.constant dense<0.000000e+00> : vector<128x128xf32>
      %25 = tpu.matmul %3, %23, %cst_18 {dimension_numbers = #tpu.dot_dimension_numbers<[1], [0], [0], [1], [0, 0, 1, 1], [], []>} : vector<128x16xf32>, vector<16x128xf32>, vector<128x128xf32> -> vector<128x128xf32>
      %c0_19 = arith.constant 0 : index
      %c0_20 = arith.constant 0 : index
      %26 = vector.load %arg19[%c0_19, %c0_20] : memref<128x32xf32, #tpu.memory_space<vmem>>, vector<128x32xf32>
      %cst_21 = arith.constant dense<0.000000e+00> : vector<128x32xf32>
      %27 = tpu.matmul %24, %26, %cst_21 {dimension_numbers = #tpu.dot_dimension_numbers<[1], [0], [0], [1], [0, 0, 1, 1], [], []>} : vector<128x128xf32>, vector<128x32xf32>, vector<128x32xf32> -> vector<128x32xf32>
      %c0_22 = arith.constant 0 : index
      %c0_23 = arith.constant 0 : index
      %28 = vector.load %arg20[%c0_22, %c0_23] : memref<128x32xf32, #tpu.memory_space<vmem>>, vector<128x32xf32>
      %cst_24 = arith.constant dense<0.000000e+00> : vector<128x32xf32>
      %29 = tpu.matmul %25, %28, %cst_24 {dimension_numbers = #tpu.dot_dimension_numbers<[1], [0], [0], [1], [0, 0, 1, 1], [], []>} : vector<128x128xf32>, vector<128x32xf32>, vector<128x32xf32> -> vector<128x32xf32>
      %30 = arith.addf %27, %29 : vector<128x32xf32>
      %c0_25 = arith.constant 0 : index
      %c0_26 = arith.constant 0 : index
      %31 = vector.load %arg21[%c0_25, %c0_26] : memref<2x32xf32, #tpu.memory_space<vmem>>, vector<1x32xf32>
      %32 = vector.broadcast %13 : vector<128x1xf32> to vector<128x32xf32>
      %33 = vector.broadcast %31 : vector<1x32xf32> to vector<128x32xf32>
      %34 = arith.mulf %32, %33 : vector<128x32xf32>
      %35 = arith.addf %30, %34 : vector<128x32xf32>
      %c1 = arith.constant 1 : index
      %c0_27 = arith.constant 0 : index
      %36 = vector.load %arg21[%c1, %c0_27] : memref<2x32xf32, #tpu.memory_space<vmem>>, vector<1x32xf32>
      %37 = vector.broadcast %6 : vector<128x1xf32> to vector<128x32xf32>
      %38 = vector.broadcast %36 : vector<1x32xf32> to vector<128x32xf32>
      %39 = arith.mulf %37, %38 : vector<128x32xf32>
      %40 = arith.addf %35, %39 : vector<128x32xf32>
      %c0_28 = arith.constant 0 : index
      %c0_29 = arith.constant 0 : index
      %41 = vector.load %arg22[%c0_28, %c0_29] : memref<1x32xf32, #tpu.memory_space<vmem>>, vector<1x32xf32>
      %42 = vector.broadcast %41 : vector<1x32xf32> to vector<128x32xf32>
      %43 = arith.addf %40, %42 : vector<128x32xf32>
      %44 = arith.negf %43 : vector<128x32xf32>
      %45 = math.exp %44 : vector<128x32xf32>
      %cst_30 = arith.constant 1.000000e+00 : f32
      %46 = vector.broadcast %cst_30 : f32 to vector<128x32xf32>
      %47 = arith.addf %46, %45 : vector<128x32xf32>
      %48 = arith.divf %46, %47 : vector<128x32xf32>
      %49 = arith.mulf %43, %48 : vector<128x32xf32>
      %c0_31 = arith.constant 0 : index
      %c0_32 = arith.constant 0 : index
      %50 = vector.load %arg23[%c0_31, %c0_32] : memref<32x32xf32, #tpu.memory_space<vmem>>, vector<32x32xf32>
      %cst_33 = arith.constant dense<0.000000e+00> : vector<128x32xf32>
      %51 = tpu.matmul %49, %50, %cst_33 {dimension_numbers = #tpu.dot_dimension_numbers<[1], [0], [0], [1], [0, 0, 1, 1], [], []>} : vector<128x32xf32>, vector<32x32xf32>, vector<128x32xf32> -> vector<128x32xf32>
      %c0_34 = arith.constant 0 : index
      %c0_35 = arith.constant 0 : index
      %52 = vector.load %arg24[%c0_34, %c0_35] : memref<1x32xf32, #tpu.memory_space<vmem>>, vector<1x32xf32>
      %53 = vector.broadcast %52 : vector<1x32xf32> to vector<128x32xf32>
      %54 = arith.addf %51, %53 : vector<128x32xf32>
      %55 = arith.negf %54 : vector<128x32xf32>
      %56 = math.exp %55 : vector<128x32xf32>
      %cst_36 = arith.constant 1.000000e+00 : f32
      %57 = vector.broadcast %cst_36 : f32 to vector<128x32xf32>
      %58 = arith.addf %57, %56 : vector<128x32xf32>
      %59 = arith.divf %57, %58 : vector<128x32xf32>
      %60 = arith.mulf %54, %59 : vector<128x32xf32>
      %c0_37 = arith.constant 0 : index
      %c0_38 = arith.constant 0 : index
      %61 = vector.load %arg25[%c0_37, %c0_38] : memref<32x1xf32, #tpu.memory_space<vmem>>, vector<32x1xf32>
      %cst_39 = arith.constant dense<0.000000e+00> : vector<128x1xf32>
      %62 = tpu.matmul %60, %61, %cst_39 {dimension_numbers = #tpu.dot_dimension_numbers<[1], [0], [0], [1], [0, 0, 1, 1], [], []>} : vector<128x32xf32>, vector<32x1xf32>, vector<128x1xf32> -> vector<128x1xf32>
      %63 = math.tanh %62 : vector<128x1xf32>
      %cst_40 = arith.constant 1.500000e+01 : f32
      %64 = vector.broadcast %cst_40 : f32 to vector<128x1xf32>
      %65 = arith.mulf %63, %64 : vector<128x1xf32>
      %cst_41 = arith.constant 9.99999993E-9 : f32
      %66 = vector.broadcast %cst_41 : f32 to vector<128x1xf32>
      %67 = arith.addf %13, %66 : vector<128x1xf32>
      %68 = math.sqrt %67 : vector<128x1xf32>
      %cst_42 = arith.constant 1.000000e+00 : f32
      %69 = vector.broadcast %cst_42 : f32 to vector<128x1xf32>
      %70 = arith.addf %68, %69 : vector<128x1xf32>
      %71 = vector.broadcast %70 : vector<128x1xf32> to vector<128x128xf32>
      %72 = arith.divf %10, %71 : vector<128x128xf32>
      %73 = vector.broadcast %65 : vector<128x1xf32> to vector<128x128xf32>
      %74 = arith.mulf %72, %73 : vector<128x128xf32>
      %cst_43 = arith.constant dense<0.000000e+00> : vector<16x128xf32>
      %75 = tpu.matmul %5, %74, %cst_43 {dimension_numbers = #tpu.dot_dimension_numbers<[1], [0], [0], [1], [0, 0, 1, 1], [], []>} : vector<16x128xf32>, vector<128x128xf32>, vector<16x128xf32> -> vector<16x128xf32>
      %c0_44 = arith.constant 0 : index
      %c0_45 = arith.constant 0 : index
      %76 = vector.load %arg29[%c0_44, %c0_45] : memref<16x128xf32, #tpu.memory_space<vmem>>, vector<16x128xf32>
      %77 = arith.addf %76, %75 : vector<16x128xf32>
      %c0_46 = arith.constant 0 : index
      %c0_47 = arith.constant 0 : index
      %78 = vector.load %arg29[%c0_46, %c0_47] : memref<16x128xf32, #tpu.memory_space<vmem>>, vector<16x128xf32>
      tpu.vector_store %arg29[%c0_46, %c0_47], %77 {strides = array<i32>} : memref<16x128xf32, #tpu.memory_space<vmem>>, vector<16x128xf32>,
      %c1_i32_48 = arith.constant 1 : i32
      %79 = arith.cmpi eq, %arg1, %c1_i32_48 : i32
      %80 = arith.extui %79 : i1 to i32
      %c0_i32_49 = arith.constant 0 : i32
      %81 = arith.cmpi ne, %80, %c0_i32_49 : i32
      scf.if %81 {
        %c0_50 = arith.constant 0 : index
        %c0_51 = arith.constant 0 : index
        %82 = vector.load %arg3[%c0_50, %c0_51] : memref<16x128xf32, #tpu.memory_space<vmem>>, vector<16x128xf32>
        %c0_52 = arith.constant 0 : index
        %c0_53 = arith.constant 0 : index
        %83 = vector.load %arg29[%c0_52, %c0_53] : memref<16x128xf32, #tpu.memory_space<vmem>>, vector<16x128xf32>
        %84 = arith.addf %82, %83 : vector<16x128xf32>
        %c0_54 = arith.constant 0 : index
        %c0_55 = arith.constant 0 : index
        %85 = vector.load %arg27[%c0_54, %c0_55] : memref<16x128xf32, #tpu.memory_space<vmem>>, vector<16x128xf32>
        tpu.vector_store %arg27[%c0_54, %c0_55], %84 {strides = array<i32>} : memref<16x128xf32, #tpu.memory_space<vmem>>, vector<16x128xf32>,
      } else {
      }
    } else {
    }
    return
  }
  func.func @transform_0(%arg0: i32, %arg1: i32) -> (i32, i32) {
    %c0_i32 = arith.constant 0 : i32
    %c0_i32_0 = arith.constant 0 : i32
    %c0_i32_1 = arith.constant 0 : i32
    return %c0_i32, %c0_i32_0 : i32, i32
  }
  func.func @transform_1(%arg0: i32, %arg1: i32) -> (i32, i32) {
    %c0_i32 = arith.constant 0 : i32
    %c0_i32_0 = arith.constant 0 : i32
    %c0_i32_1 = arith.constant 0 : i32
    return %c0_i32, %c0_i32_0 : i32, i32
  }
  func.func @transform_2(%arg0: i32, %arg1: i32) -> (i32, i32) {
    %c0_i32 = arith.constant 0 : i32
    %c0_i32_0 = arith.constant 0 : i32
    return %arg1, %c0_i32 : i32, i32
  }
  func.func @transform_3(%arg0: i32, %arg1: i32) -> (i32, i32) {
    %c0_i32 = arith.constant 0 : i32
    %c0_i32_0 = arith.constant 0 : i32
    return %arg1, %c0_i32 : i32, i32
  }
  func.func @transform_4(%arg0: i32, %arg1: i32) -> (i32, i32) {
    %c0_i32 = arith.constant 0 : i32
    %c0_i32_0 = arith.constant 0 : i32
    return %arg1, %c0_i32 : i32, i32
  }
  func.func @transform_5(%arg0: i32, %arg1: i32) -> (i32, i32) {
    %c0_i32 = arith.constant 0 : i32
    %c0_i32_0 = arith.constant 0 : i32
    return %c0_i32, %arg1 : i32, i32
  }
  func.func @transform_6(%arg0: i32, %arg1: i32) -> (i32, i32) {
    %c0_i32 = arith.constant 0 : i32
    %c0_i32_0 = arith.constant 0 : i32
    %c0_i32_1 = arith.constant 0 : i32
    return %c0_i32, %c0_i32_0 : i32, i32
  }
  func.func @transform_7(%arg0: i32, %arg1: i32) -> (i32, i32) {
    %c0_i32 = arith.constant 0 : i32
    %c0_i32_0 = arith.constant 0 : i32
    %c0_i32_1 = arith.constant 0 : i32
    return %c0_i32, %c0_i32_0 : i32, i32
  }
  func.func @transform_8(%arg0: i32, %arg1: i32) -> (i32, i32) {
    %c0_i32 = arith.constant 0 : i32
    %c0_i32_0 = arith.constant 0 : i32
    %c0_i32_1 = arith.constant 0 : i32
    return %c0_i32, %c0_i32_0 : i32, i32
  }
  func.func @transform_9(%arg0: i32, %arg1: i32) -> (i32, i32) {
    %c0_i32 = arith.constant 0 : i32
    %c0_i32_0 = arith.constant 0 : i32
    %c0_i32_1 = arith.constant 0 : i32
    return %c0_i32, %c0_i32_0 : i32, i32
  }
  func.func @transform_10(%arg0: i32, %arg1: i32) -> (i32, i32) {
    %c0_i32 = arith.constant 0 : i32
    %c0_i32_0 = arith.constant 0 : i32
    %c0_i32_1 = arith.constant 0 : i32
    return %c0_i32, %c0_i32_0 : i32, i32
  }
  func.func @transform_11(%arg0: i32, %arg1: i32) -> (i32, i32) {
    %c0_i32 = arith.constant 0 : i32
    %c0_i32_0 = arith.constant 0 : i32
    %c0_i32_1 = arith.constant 0 : i32
    return %c0_i32, %c0_i32_0 : i32, i32
  }
  func.func @transform_12(%arg0: i32, %arg1: i32) -> (i32, i32) {
    %c0_i32 = arith.constant 0 : i32
    %c0_i32_0 = arith.constant 0 : i32
    %c0_i32_1 = arith.constant 0 : i32
    return %c0_i32, %c0_i32_0 : i32, i32
  }
  func.func @transform_13(%arg0: i32, %arg1: i32) -> (i32, i32) {
    %c0_i32 = arith.constant 0 : i32
    %c0_i32_0 = arith.constant 0 : i32
    %c0_i32_1 = arith.constant 0 : i32
    return %c0_i32, %c0_i32_0 : i32, i32
  }
  func.func @transform_14(%arg0: i32, %arg1: i32) -> (i32, i32) {
    %c0_i32 = arith.constant 0 : i32
    %c0_i32_0 = arith.constant 0 : i32
    %c0_i32_1 = arith.constant 0 : i32
    return %c0_i32, %c0_i32_0 : i32, i32
  }
  func.func @transform_15(%arg0: i32, %arg1: i32) -> (i32, i32) {
    %c0_i32 = arith.constant 0 : i32
    %c0_i32_0 = arith.constant 0 : i32
    %c0_i32_1 = arith.constant 0 : i32
    return %c0_i32, %c0_i32_0 : i32, i32
  }
  func.func @transform_16(%arg0: i32, %arg1: i32) -> (i32, i32) {
    %c0_i32 = arith.constant 0 : i32
    %c0_i32_0 = arith.constant 0 : i32
    %c0_i32_1 = arith.constant 0 : i32
    return %c0_i32, %c0_i32_0 : i32, i32
  }
  func.func @transform_17(%arg0: i32, %arg1: i32) -> (i32, i32) {
    %c0_i32 = arith.constant 0 : i32
    %c0_i32_0 = arith.constant 0 : i32
    %c0_i32_1 = arith.constant 0 : i32
    return %c0_i32, %c0_i32_0 : i32, i32
  }
  func.func @transform_18(%arg0: i32, %arg1: i32) -> (i32, i32) {
    %c0_i32 = arith.constant 0 : i32
    %c0_i32_0 = arith.constant 0 : i32
    %c0_i32_1 = arith.constant 0 : i32
    return %c0_i32, %c0_i32_0 : i32, i32
  }
  func.func @transform_19(%arg0: i32, %arg1: i32) -> (i32, i32) {
    %c0_i32 = arith.constant 0 : i32
    %c0_i32_0 = arith.constant 0 : i32
    %c0_i32_1 = arith.constant 0 : i32
    return %c0_i32, %c0_i32_0 : i32, i32
  }
  func.func @transform_20(%arg0: i32, %arg1: i32) -> (i32, i32) {
    %c0_i32 = arith.constant 0 : i32
    %c0_i32_0 = arith.constant 0 : i32
    %c0_i32_1 = arith.constant 0 : i32
    return %c0_i32, %c0_i32_0 : i32, i32
  }
  func.func @transform_21(%arg0: i32, %arg1: i32) -> (i32, i32) {
    %c0_i32 = arith.constant 0 : i32
    %c0_i32_0 = arith.constant 0 : i32
    %c0_i32_1 = arith.constant 0 : i32
    return %c0_i32, %c0_i32_0 : i32, i32
  }
  func.func @transform_22(%arg0: i32, %arg1: i32) -> (i32, i32) {
    %c0_i32 = arith.constant 0 : i32
    %c0_i32_0 = arith.constant 0 : i32
    %c0_i32_1 = arith.constant 0 : i32
    return %c0_i32, %c0_i32_0 : i32, i32
  }
  func.func @transform_23(%arg0: i32, %arg1: i32) -> (i32, i32) {
    %c0_i32 = arith.constant 0 : i32
    %c0_i32_0 = arith.constant 0 : i32
    %c0_i32_1 = arith.constant 0 : i32
    return %c0_i32, %c0_i32_0 : i32, i32
  }
  func.func @transform_24(%arg0: i32, %arg1: i32) -> (i32, i32) {
    %c0_i32 = arith.constant 0 : i32
    %c0_i32_0 = arith.constant 0 : i32
    %c0_i32_1 = arith.constant 0 : i32
    return %c0_i32, %c0_i32_0 : i32, i32
  }
  func.func @transform_25(%arg0: i32, %arg1: i32) -> (i32, i32) {
    %c0_i32 = arith.constant 0 : i32
    %c0_i32_0 = arith.constant 0 : i32
    %c0_i32_1 = arith.constant 0 : i32
    return %c0_i32, %c0_i32_0 : i32, i32
  }
}

</mosaic_0001>

<llo_original>
// kernel: egnn_forward.3
$region0: #{egnn_forward.3}
  #allocation0 [shape = 'u32[]', space=smem, size = 0x4, offset = 0x4, fixed_abs, tag = 'smem constant byte address 0x4 - core index']
  #allocation1 [shape = 'u32[144,128]{1,0:T(1,128)}', space=vmem, size = 0x12000, scoped, tag = 'internal scratch']
  #allocation2 [shape = 'f32[16,32]{1,0:T(8,128)}', space=vmem, size = 0x2000, scoped, tag = 'scratch operand']
  #allocation3 [shape = 'f32[16,128]{1,0:T(8,128)}', space=vmem, size = 0x2000, scoped, tag = 'scratch operand']
  %s0 = inlined_call_operand.vmem [shape: f32[16,128], index: 0, kind: input, shape index: {}, may-alias: {0,24}]
  %s1 = inlined_call_operand.vmem [shape: f32[16,128], index: 1, kind: input, shape index: {}, may-alias: {1,25}]
  %s2 = inlined_call_operand.vmem [shape: f32[256,1], index: 2, kind: input, shape index: {}]
  %s3 = inlined_call_operand.vmem [shape: bf16[256,16], index: 3, kind: input, shape index: {}]
  %s4 = inlined_call_operand.vmem [shape: bf16[256,16], index: 4, kind: input, shape index: {}]
  %s5 = inlined_call_operand.vmem [shape: bf16[16,256], index: 5, kind: input, shape index: {}]
  %s6 = inlined_call_operand.vmem [shape: f32[128,32], index: 6, kind: input, shape index: {}]
  %s7 = inlined_call_operand.vmem [shape: f32[128,32], index: 7, kind: input, shape index: {}]
  %s8 = inlined_call_operand.vmem [shape: f32[2,32], index: 8, kind: input, shape index: {}]
  %s9 = inlined_call_operand.vmem [shape: f32[1,32], index: 9, kind: input, shape index: {}]
  %s10 = inlined_call_operand.vmem [shape: f32[32,32], index: 10, kind: input, shape index: {}]
  %s11 = inlined_call_operand.vmem [shape: f32[1,32], index: 11, kind: input, shape index: {}]
  %s12 = inlined_call_operand.vmem [shape: f32[128,32], index: 12, kind: input, shape index: {}]
  %s13 = inlined_call_operand.vmem [shape: f32[32,32], index: 13, kind: input, shape index: {}]
  %s14 = inlined_call_operand.vmem [shape: f32[1,32], index: 14, kind: input, shape index: {}]
  %s15 = inlined_call_operand.vmem [shape: f32[32,128], index: 15, kind: input, shape index: {}]
  %s16 = inlined_call_operand.vmem [shape: f32[1,128], index: 16, kind: input, shape index: {}]
  %s17 = inlined_call_operand.vmem [shape: f32[128,32], index: 17, kind: input, shape index: {}]
  %s18 = inlined_call_operand.vmem [shape: f32[128,32], index: 18, kind: input, shape index: {}]
  %s19 = inlined_call_operand.vmem [shape: f32[2,32], index: 19, kind: input, shape index: {}]
  %s20 = inlined_call_operand.vmem [shape: f32[1,32], index: 20, kind: input, shape index: {}]
  %s21 = inlined_call_operand.vmem [shape: f32[32,32], index: 21, kind: input, shape index: {}]
  %s22 = inlined_call_operand.vmem [shape: f32[1,32], index: 22, kind: input, shape index: {}]
  %s23 = inlined_call_operand.vmem [shape: f32[32,1], index: 23, kind: input, shape index: {}]
  %s24 = inlined_call_operand.vmem [shape: f32[16,128], index: 24, kind: output, shape index: {0}, may-alias: {0,24}]
  %s25 = inlined_call_operand.vmem [shape: f32[16,128], index: 25, kind: output, shape index: {1}, may-alias: {1,25}]
  %26 = xla_tuple %s24, %s25
  %s27 = sld [smem:[#allocation0]]
  $region202: #{egnn_forward.3} parent=0
    _
  %s29 = ssub.s32 1, %s27
  %s30 = scalar_select 0, %s29, %s27
  $region1: #{egnn_forward.3} parent=0
    #allocation4 [shape = 'u8[8192]{0}', space=vmem, size = 0x2000, scoped, tag = 'input window, operand 5']
    loop: start=0, step=1, limit=6
    $region2: #{egnn_forward.3} parent=1 // loop_pre_header
      _
    $region3: #{egnn_forward.3} parent=1 // loop_header
      %s32 = sphi 0, %s36
      %p33 = scmp.ge.s32.totalorder %s32, 6
      %s39 = sphi 0, %s51
      %s40 = sphi 0, %s47
      %s41 = sphi 0, %s39
      %s42 = sphi 0, %s40
      %s43 = sphi 0, %s41
      %s44 = sphi 0, %s42
      %s52 = sphi 0, %s52
      %s54 = sphi 0, %s52
      %s55 = sphi 0, %s54
      %s69 = sphi 0, %s55
      %s73 = sphi 0, %s73
      %s75 = sphi 0, %s73
      %s76 = sphi 0, %s75
      %s90 = sphi 0, %s76
      %s96 = sphi 0, %s98
      %s99 = sphi 0, %s96
      %s100 = sphi 0, %s99
      %s116 = sphi 0, %s100
      %s122 = sphi 0, %s124
      %s125 = sphi 0, %s122
      %s126 = sphi 0, %s125
      %s142 = sphi 0, %s126
      %s148 = sphi 0, %s150
      %s151 = sphi 0, %s148
      %s152 = sphi 0, %s151
      %s168 = sphi 0, %s152
      %s174 = sphi 0, %s176
      %s177 = sphi 0, %s174
      %s178 = sphi 0, %s177
      %s194 = sphi 0, %s178
      %s198 = sphi 0, %s198
      %s200 = sphi 0, %s198
      %s201 = sphi 0, %s200
      %s215 = sphi 0, %s201
      %s219 = sphi 0, %s219
      %s221 = sphi 0, %s219
      %s222 = sphi 0, %s221
      %s236 = sphi 0, %s222
      %s240 = sphi 0, %s240
      %s242 = sphi 0, %s240
      %s243 = sphi 0, %s242
      %s257 = sphi 0, %s243
      %s261 = sphi 0, %s261
      %s263 = sphi 0, %s261
      %s264 = sphi 0, %s263
      %s278 = sphi 0, %s264
      %s282 = sphi 0, %s282
      %s284 = sphi 0, %s282
      %s285 = sphi 0, %s284
      %s299 = sphi 0, %s285
      %s303 = sphi 0, %s303
      %s305 = sphi 0, %s303
      %s306 = sphi 0, %s305
      %s320 = sphi 0, %s306
      %s324 = sphi 0, %s324
      %s326 = sphi 0, %s324
      %s327 = sphi 0, %s326
      %s341 = sphi 0, %s327
      %s345 = sphi 0, %s345
      %s347 = sphi 0, %s345
      %s348 = sphi 0, %s347
      %s362 = sphi 0, %s348
      %s366 = sphi 0, %s366
      %s368 = sphi 0, %s366
      %s369 = sphi 0, %s368
      %s383 = sphi 0, %s369
      %s387 = sphi 0, %s387
      %s389 = sphi 0, %s387
      %s390 = sphi 0, %s389
      %s404 = sphi 0, %s390
      %s408 = sphi 0, %s408
      %s410 = sphi 0, %s408
      %s411 = sphi 0, %s410
      %s425 = sphi 0, %s411
      %s429 = sphi 0, %s429
      %s431 = sphi 0, %s429
      %s432 = sphi 0, %s431
      %s446 = sphi 0, %s432
      %s450 = sphi 0, %s450
      %s452 = sphi 0, %s450
      %s453 = sphi 0, %s452
      %s467 = sphi 0, %s453
      %s471 = sphi 0, %s471
      %s473 = sphi 0, %s471
      %s474 = sphi 0, %s473
      %s488 = sphi 0, %s474
      %s492 = sphi 0, %s492
      %s494 = sphi 0, %s492
      %s495 = sphi 0, %s494
      %s509 = sphi 0, %s495
      %s513 = sphi 0, %s513
      %s515 = sphi 0, %s513
      %s516 = sphi 0, %s515
      %s530 = sphi 0, %s516
      %s534 = sphi 0, %s534
      %s536 = sphi 0, %s534
      %s537 = sphi 0, %s536
      %s551 = sphi 0, %s537
      %s555 = sphi 0, %s555
      %s557 = sphi 0, %s555
      %s558 = sphi 0, %s557
      %s572 = sphi 0, %s558
      %s576 = sphi 0, %s576
      %s578 = sphi 0, %s576
      %s579 = sphi 0, %s578
      %s593 = sphi 0, %s579
      %s597 = sphi 0, %s597
      %s599 = sphi 0, %s597
      %s600 = sphi 0, %s599
      %s614 = sphi 0, %s600
    $region4: #{egnn_forward.3} parent=1 // loop_header_branch
      %35 = sbr.rel (%p33) target = $region8
    $region5: #{egnn_forward.3} parent=1 // loop_body
      %s37 = ssub.s32 %s32, 1
      %s38 = ssub.s32 %s32, 2
      %s45 = sadd.s32 1, %s40
      %p46 = scmp.ge.s32.totalorder %s45, 2
      %s47 = scalar_select %p46, 0, %s45
      %s48 = sadd.s32 1, %s39
      %s49 = scalar_select %p46, %s48, %s39
      %p50 = scmp.ge.s32.totalorder %s49, 2
      %s51 = scalar_select %p50, 0, %s49
      %s53 = sadd.s32 %s52, 1
      %p56 = scmp.eq.s32.totalorder %s32, 3
      %p57 = scmp.ne.s32.totalorder %s52, %s54
      %p58 = scmp.eq.s32.totalorder %s32, 0
      %p59 = por %p57, %p58
      %p60 = scmp.ne.s32.totalorder %s52, %s54
      %p61 = scmp.eq.s32.totalorder %s37, 3
      %p62 = por %p60, %p61
      %p63 = scmp.ne.s32.totalorder %s54, %s55
      %p64 = scmp.eq.s32.totalorder %s37, 0
      %p65 = por %p63, %p64
      %p66 = scmp.ne.s32.totalorder %s54, %s55
      %p67 = scmp.eq.s32.totalorder %s38, 3
      %p68 = por %p66, %p67
      %p70 = scmp.ne.s32.totalorder %s55, %s69
      %p71 = scmp.eq.s32.totalorder %s38, 0
      %p72 = por %p70, %p71
      %s74 = sadd.s32 %s73, 1
      %p77 = scmp.eq.s32.totalorder %s32, 3
      %p78 = scmp.ne.s32.totalorder %s73, %s75
      %p79 = scmp.eq.s32.totalorder %s32, 0
      %p80 = por %p78, %p79
      %p81 = scmp.ne.s32.totalorder %s73, %s75
      %p82 = scmp.eq.s32.totalorder %s37, 3
      %p83 = por %p81, %p82
      %p84 = scmp.ne.s32.totalorder %s75, %s76
      %p85 = scmp.eq.s32.totalorder %s37, 0
      %p86 = por %p84, %p85
      %p87 = scmp.ne.s32.totalorder %s75, %s76
      %p88 = scmp.eq.s32.totalorder %s38, 3
      %p89 = por %p87, %p88
      %p91 = scmp.ne.s32.totalorder %s76, %s90
      %p92 = scmp.eq.s32.totalorder %s38, 0
      %p93 = por %p91, %p92
      %s94 = ssub.s32 %s40, %s47
      %p95 = scmp.eq.s32.totalorder %s94, 0
      %s97 = sadd.s32 %s96, 1
      %s98 = scalar_select %p95, %s96, %s97
      %p101 = pneg %p95
      %p102 = scmp.eq.s32.totalorder %s32, 3
      %p103 = por %p101, %p102
      %p104 = scmp.ne.s32.totalorder %s96, %s99
      %p105 = scmp.eq.s32.totalorder %s32, 0
      %p106 = por %p104, %p105
      %p107 = scmp.ne.s32.totalorder %s96, %s99
      %p108 = scmp.eq.s32.totalorder %s37, 3
      %p109 = por %p107, %p108
      %p110 = scmp.ne.s32.totalorder %s99, %s100
      %p111 = scmp.eq.s32.totalorder %s37, 0
      %p112 = por %p110, %p111
      %p113 = scmp.ne.s32.totalorder %s99, %s100
      %p114 = scmp.eq.s32.totalorder %s38, 3
      %p115 = por %p113, %p114
      %p117 = scmp.ne.s32.totalorder %s100, %s116
      %p118 = scmp.eq.s32.totalorder %s38, 0
      %p119 = por %p117, %p118
      %s120 = ssub.s32 %s40, %s47
      %p121 = scmp.eq.s32.totalorder %s120, 0
      %s123 = sadd.s32 %s122, 1
      %s124 = scalar_select %p121, %s122, %s123
      %p127 = pneg %p121
      %p128 = scmp.eq.s32.totalorder %s32, 3
      %p129 = por %p127, %p128
      %p130 = scmp.ne.s32.totalorder %s122, %s125
      %p131 = scmp.eq.s32.totalorder %s32, 0
      %p132 = por %p130, %p131
      %p133 = scmp.ne.s32.totalorder %s122, %s125
      %p134 = scmp.eq.s32.totalorder %s37, 3
      %p135 = por %p133, %p134
      %p136 = scmp.ne.s32.totalorder %s125, %s126
      %p137 = scmp.eq.s32.totalorder %s37, 0
      %p138 = por %p136, %p137
      %p139 = scmp.ne.s32.totalorder %s125, %s126
      %p140 = scmp.eq.s32.totalorder %s38, 3
      %p141 = por %p139, %p140
      %p143 = scmp.ne.s32.totalorder %s126, %s142
      %p144 = scmp.eq.s32.totalorder %s38, 0
      %p145 = por %p143, %p144
      %s146 = ssub.s32 %s40, %s47
      %p147 = scmp.eq.s32.totalorder %s146, 0
      %s149 = sadd.s32 %s148, 1
      %s150 = scalar_select %p147, %s148, %s149
      %p153 = pneg %p147
      %p154 = scmp.eq.s32.totalorder %s32, 3
      %p155 = por %p153, %p154
      %p156 = scmp.ne.s32.totalorder %s148, %s151
      %p157 = scmp.eq.s32.totalorder %s32, 0
      %p158 = por %p156, %p157
      %p159 = scmp.ne.s32.totalorder %s148, %s151
      %p160 = scmp.eq.s32.totalorder %s37, 3
      %p161 = por %p159, %p160
      %p162 = scmp.ne.s32.totalorder %s151, %s152
      %p163 = scmp.eq.s32.totalorder %s37, 0
      %p164 = por %p162, %p163
      %p165 = scmp.ne.s32.totalorder %s151, %s152
      %p166 = scmp.eq.s32.totalorder %s38, 3
      %p167 = por %p165, %p166
      %p169 = scmp.ne.s32.totalorder %s152, %s168
      %p170 = scmp.eq.s32.totalorder %s38, 0
      %p171 = por %p169, %p170
      %s172 = ssub.s32 %s40, %s47
      %p173 = scmp.eq.s32.totalorder %s172, 0
      %s175 = sadd.s32 %s174, 1
      %s176 = scalar_select %p173, %s174, %s175
      %p179 = pneg %p173
      %p180 = scmp.eq.s32.totalorder %s32, 3
      %p181 = por %p179, %p180
      %p182 = scmp.ne.s32.totalorder %s174, %s177
      %p183 = scmp.eq.s32.totalorder %s32, 0
      %p184 = por %p182, %p183
      %p185 = scmp.ne.s32.totalorder %s174, %s177
      %p186 = scmp.eq.s32.totalorder %s37, 3
      %p187 = por %p185, %p186
      %p188 = scmp.ne.s32.totalorder %s177, %s178
      %p189 = scmp.eq.s32.totalorder %s37, 0
      %p190 = por %p188, %p189
      %p191 = scmp.ne.s32.totalorder %s177, %s178
      %p192 = scmp.eq.s32.totalorder %s38, 3
      %p193 = por %p191, %p192
      %p195 = scmp.ne.s32.totalorder %s178, %s194
      %p196 = scmp.eq.s32.totalorder %s38, 0
      %p197 = por %p195, %p196
      %s199 = sadd.s32 %s198, 1
      %p202 = scmp.eq.s32.totalorder %s32, 3
      %p203 = scmp.ne.s32.totalorder %s198, %s200
      %p204 = scmp.eq.s32.totalorder %s32, 0
      %p205 = por %p203, %p204
      %p206 = scmp.ne.s32.totalorder %s198, %s200
      %p207 = scmp.eq.s32.totalorder %s37, 3
      %p208 = por %p206, %p207
      %p209 = scmp.ne.s32.totalorder %s200, %s201
      %p210 = scmp.eq.s32.totalorder %s37, 0
      %p211 = por %p209, %p210
      %p212 = scmp.ne.s32.totalorder %s200, %s201
      %p213 = scmp.eq.s32.totalorder %s38, 3
      %p214 = por %p212, %p213
      %p216 = scmp.ne.s32.totalorder %s201, %s215
      %p217 = scmp.eq.s32.totalorder %s38, 0
      %p218 = por %p216, %p217
      %s220 = sadd.s32 %s219, 1
      %p223 = scmp.eq.s32.totalorder %s32, 3
      %p224 = scmp.ne.s32.totalorder %s219, %s221
      %p225 = scmp.eq.s32.totalorder %s32, 0
      %p226 = por %p224, %p225
      %p227 = scmp.ne.s32.totalorder %s219, %s221
      %p228 = scmp.eq.s32.totalorder %s37, 3
      %p229 = por %p227, %p228
      %p230 = scmp.ne.s32.totalorder %s221, %s222
      %p231 = scmp.eq.s32.totalorder %s37, 0
      %p232 = por %p230, %p231
      %p233 = scmp.ne.s32.totalorder %s221, %s222
      %p234 = scmp.eq.s32.totalorder %s38, 3
      %p235 = por %p233, %p234
      %p237 = scmp.ne.s32.totalorder %s222, %s236
      %p238 = scmp.eq.s32.totalorder %s38, 0
      %p239 = por %p237, %p238
      %s241 = sadd.s32 %s240, 1
      %p244 = scmp.eq.s32.totalorder %s32, 3
      %p245 = scmp.ne.s32.totalorder %s240, %s242
      %p246 = scmp.eq.s32.totalorder %s32, 0
      %p247 = por %p245, %p246
      %p248 = scmp.ne.s32.totalorder %s240, %s242
      %p249 = scmp.eq.s32.totalorder %s37, 3
      %p250 = por %p248, %p249
      %p251 = scmp.ne.s32.totalorder %s242, %s243
      %p252 = scmp.eq.s32.totalorder %s37, 0
      %p253 = por %p251, %p252
      %p254 = scmp.ne.s32.totalorder %s242, %s243
      %p255 = scmp.eq.s32.totalorder %s38, 3
      %p256 = por %p254, %p255
      %p258 = scmp.ne.s32.totalorder %s243, %s257
      %p259 = scmp.eq.s32.totalorder %s38, 0
      %p260 = por %p258, %p259
      %s262 = sadd.s32 %s261, 1
      %p265 = scmp.eq.s32.totalorder %s32, 3
      %p266 = scmp.ne.s32.totalorder %s261, %s263
      %p267 = scmp.eq.s32.totalorder %s32, 0
      %p268 = por %p266, %p267
      %p269 = scmp.ne.s32.totalorder %s261, %s263
      %p270 = scmp.eq.s32.totalorder %s37, 3
      %p271 = por %p269, %p270
      %p272 = scmp.ne.s32.totalorder %s263, %s264
      %p273 = scmp.eq.s32.totalorder %s37, 0
      %p274 = por %p272, %p273
      %p275 = scmp.ne.s32.totalorder %s263, %s264
      %p276 = scmp.eq.s32.totalorder %s38, 3
      %p277 = por %p275, %p276
      %p279 = scmp.ne.s32.totalorder %s264, %s278
      %p280 = scmp.eq.s32.totalorder %s38, 0
      %p281 = por %p279, %p280
      %s283 = sadd.s32 %s282, 1
      %p286 = scmp.eq.s32.totalorder %s32, 3
      %p287 = scmp.ne.s32.totalorder %s282, %s284
      %p288 = scmp.eq.s32.totalorder %s32, 0
      %p289 = por %p287, %p288
      %p290 = scmp.ne.s32.totalorder %s282, %s284
      %p291 = scmp.eq.s32.totalorder %s37, 3
      %p292 = por %p290, %p291
      %p293 = scmp.ne.s32.totalorder %s284, %s285
      %p294 = scmp.eq.s32.totalorder %s37, 0
      %p295 = por %p293, %p294
      %p296 = scmp.ne.s32.totalorder %s284, %s285
      %p297 = scmp.eq.s32.totalorder %s38, 3
      %p298 = por %p296, %p297
      %p300 = scmp.ne.s32.totalorder %s285, %s299
      %p301 = scmp.eq.s32.totalorder %s38, 0
      %p302 = por %p300, %p301
      %s304 = sadd.s32 %s303, 1
      %p307 = scmp.eq.s32.totalorder %s32, 3
      %p308 = scmp.ne.s32.totalorder %s303, %s305
      %p309 = scmp.eq.s32.totalorder %s32, 0
      %p310 = por %p308, %p309
      %p311 = scmp.ne.s32.totalorder %s303, %s305
      %p312 = scmp.eq.s32.totalorder %s37, 3
      %p313 = por %p311, %p312
      %p314 = scmp.ne.s32.totalorder %s305, %s306
      %p315 = scmp.eq.s32.totalorder %s37, 0
      %p316 = por %p314, %p315
      %p317 = scmp.ne.s32.totalorder %s305, %s306
      %p318 = scmp.eq.s32.totalorder %s38, 3
      %p319 = por %p317, %p318
      %p321 = scmp.ne.s32.totalorder %s306, %s320
      %p322 = scmp.eq.s32.totalorder %s38, 0
      %p323 = por %p321, %p322
      %s325 = sadd.s32 %s324, 1
      %p328 = scmp.eq.s32.totalorder %s32, 3
      %p329 = scmp.ne.s32.totalorder %s324, %s326
      %p330 = scmp.eq.s32.totalorder %s32, 0
      %p331 = por %p329, %p330
      %p332 = scmp.ne.s32.totalorder %s324, %s326
      %p333 = scmp.eq.s32.totalorder %s37, 3
      %p334 = por %p332, %p333
      %p335 = scmp.ne.s32.totalorder %s326, %s327
      %p336 = scmp.eq.s32.totalorder %s37, 0
      %p337 = por %p335, %p336
      %p338 = scmp.ne.s32.totalorder %s326, %s327
      %p339 = scmp.eq.s32.totalorder %s38, 3
      %p340 = por %p338, %p339
      %p342 = scmp.ne.s32.totalorder %s327, %s341
      %p343 = scmp.eq.s32.totalorder %s38, 0
      %p344 = por %p342, %p343
      %s346 = sadd.s32 %s345, 1
      %p349 = scmp.eq.s32.totalorder %s32, 3
      %p350 = scmp.ne.s32.totalorder %s345, %s347
      %p351 = scmp.eq.s32.totalorder %s32, 0
      %p352 = por %p350, %p351
      %p353 = scmp.ne.s32.totalorder %s345, %s347
      %p354 = scmp.eq.s32.totalorder %s37, 3
      %p355 = por %p353, %p354
      %p356 = scmp.ne.s32.totalorder %s347, %s348
      %p357 = scmp.eq.s32.totalorder %s37, 0
      %p358 = por %p356, %p357
      %p359 = scmp.ne.s32.totalorder %s347, %s348
      %p360 = scmp.eq.s32.totalorder %s38, 3
      %p361 = por %p359, %p360
      %p363 = scmp.ne.s32.totalorder %s348, %s362
      %p364 = scmp.eq.s32.totalorder %s38, 0
      %p365 = por %p363, %p364
      %s367 = sadd.s32 %s366, 1
      %p370 = scmp.eq.s32.totalorder %s32, 3
      %p371 = scmp.ne.s32.totalorder %s366, %s368
      %p372 = scmp.eq.s32.totalorder %s32, 0
      %p373 = por %p371, %p372
      %p374 = scmp.ne.s32.totalorder %s366, %s368
      %p375 = scmp.eq.s32.totalorder %s37, 3
      %p376 = por %p374, %p375
      %p377 = scmp.ne.s32.totalorder %s368, %s369
      %p378 = scmp.eq.s32.totalorder %s37, 0
      %p379 = por %p377, %p378
      %p380 = scmp.ne.s32.totalorder %s368, %s369
      %p381 = scmp.eq.s32.totalorder %s38, 3
      %p382 = por %p380, %p381
      %p384 = scmp.ne.s32.totalorder %s369, %s383
      %p385 = scmp.eq.s32.totalorder %s38, 0
      %p386 = por %p384, %p385
      %s388 = sadd.s32 %s387, 1
      %p391 = scmp.eq.s32.totalorder %s32, 3
      %p392 = scmp.ne.s32.totalorder %s387, %s389
      %p393 = scmp.eq.s32.totalorder %s32, 0
      %p394 = por %p392, %p393
      %p395 = scmp.ne.s32.totalorder %s387, %s389
      %p396 = scmp.eq.s32.totalorder %s37, 3
      %p397 = por %p395, %p396
      %p398 = scmp.ne.s32.totalorder %s389, %s390
      %p399 = scmp.eq.s32.totalorder %s37, 0
      %p400 = por %p398, %p399
      %p401 = scmp.ne.s32.totalorder %s389, %s390
      %p402 = scmp.eq.s32.totalorder %s38, 3
      %p403 = por %p401, %p402
      %p405 = scmp.ne.s32.totalorder %s390, %s404
      %p406 = scmp.eq.s32.totalorder %s38, 0
      %p407 = por %p405, %p406
      %s409 = sadd.s32 %s408, 1
      %p412 = scmp.eq.s32.totalorder %s32, 3
      %p413 = scmp.ne.s32.totalorder %s408, %s410
      %p414 = scmp.eq.s32.totalorder %s32, 0
      %p415 = por %p413, %p414
      %p416 = scmp.ne.s32.totalorder %s408, %s410
      %p417 = scmp.eq.s32.totalorder %s37, 3
      %p418 = por %p416, %p417
      %p419 = scmp.ne.s32.totalorder %s410, %s411
      %p420 = scmp.eq.s32.totalorder %s37, 0
      %p421 = por %p419, %p420
      %p422 = scmp.ne.s32.totalorder %s410, %s411
      %p423 = scmp.eq.s32.totalorder %s38, 3
      %p424 = por %p422, %p423
      %p426 = scmp.ne.s32.totalorder %s411, %s425
      %p427 = scmp.eq.s32.totalorder %s38, 0
      %p428 = por %p426, %p427
      %s430 = sadd.s32 %s429, 1
      %p433 = scmp.eq.s32.totalorder %s32, 3
      %p434 = scmp.ne.s32.totalorder %s429, %s431
      %p435 = scmp.eq.s32.totalorder %s32, 0
      %p436 = por %p434, %p435
      %p437 = scmp.ne.s32.totalorder %s429, %s431
      %p438 = scmp.eq.s32.totalorder %s37, 3
      %p439 = por %p437, %p438
      %p440 = scmp.ne.s32.totalorder %s431, %s432
      %p441 = scmp.eq.s32.totalorder %s37, 0
      %p442 = por %p440, %p441
      %p443 = scmp.ne.s32.totalorder %s431, %s432
      %p444 = scmp.eq.s32.totalorder %s38, 3
      %p445 = por %p443, %p444
      %p447 = scmp.ne.s32.totalorder %s432, %s446
      %p448 = scmp.eq.s32.totalorder %s38, 0
      %p449 = por %p447, %p448
      %s451 = sadd.s32 %s450, 1
      %p454 = scmp.eq.s32.totalorder %s32, 3
      %p455 = scmp.ne.s32.totalorder %s450, %s452
      %p456 = scmp.eq.s32.totalorder %s32, 0
      %p457 = por %p455, %p456
      %p458 = scmp.ne.s32.totalorder %s450, %s452
      %p459 = scmp.eq.s32.totalorder %s37, 3
      %p460 = por %p458, %p459
      %p461 = scmp.ne.s32.totalorder %s452, %s453
      %p462 = scmp.eq.s32.totalorder %s37, 0
      %p463 = por %p461, %p462
      %p464 = scmp.ne.s32.totalorder %s452, %s453
      %p465 = scmp.eq.s32.totalorder %s38, 3
      %p466 = por %p464, %p465
      %p468 = scmp.ne.s32.totalorder %s453, %s467
      %p469 = scmp.eq.s32.totalorder %s38, 0
      %p470 = por %p468, %p469
      %s472 = sadd.s32 %s471, 1
      %p475 = scmp.eq.s32.totalorder %s32, 3
      %p476 = scmp.ne.s32.totalorder %s471, %s473
      %p477 = scmp.eq.s32.totalorder %s32, 0
      %p478 = por %p476, %p477
      %p479 = scmp.ne.s32.totalorder %s471, %s473
      %p480 = scmp.eq.s32.totalorder %s37, 3
      %p481 = por %p479, %p480
      %p482 = scmp.ne.s32.totalorder %s473, %s474
      %p483 = scmp.eq.s32.totalorder %s37, 0
      %p484 = por %p482, %p483
      %p485 = scmp.ne.s32.totalorder %s473, %s474
      %p486 = scmp.eq.s32.totalorder %s38, 3
      %p487 = por %p485, %p486
      %p489 = scmp.ne.s32.totalorder %s474, %s488
      %p490 = scmp.eq.s32.totalorder %s38, 0
      %p491 = por %p489, %p490
      %s493 = sadd.s32 %s492, 1
      %p496 = scmp.eq.s32.totalorder %s32, 3
      %p497 = scmp.ne.s32.totalorder %s492, %s494
      %p498 = scmp.eq.s32.totalorder %s32, 0
      %p499 = por %p497, %p498
      %p500 = scmp.ne.s32.totalorder %s492, %s494
      %p501 = scmp.eq.s32.totalorder %s37, 3
      %p502 = por %p500, %p501
      %p503 = scmp.ne.s32.totalorder %s494, %s495
      %p504 = scmp.eq.s32.totalorder %s37, 0
      %p505 = por %p503, %p504
      %p506 = scmp.ne.s32.totalorder %s494, %s495
      %p507 = scmp.eq.s32.totalorder %s38, 3
      %p508 = por %p506, %p507
      %p510 = scmp.ne.s32.totalorder %s495, %s509
      %p511 = scmp.eq.s32.totalorder %s38, 0
      %p512 = por %p510, %p511
      %s514 = sadd.s32 %s513, 1
      %p517 = scmp.eq.s32.totalorder %s32, 3
      %p518 = scmp.ne.s32.totalorder %s513, %s515
      %p519 = scmp.eq.s32.totalorder %s32, 0
      %p520 = por %p518, %p519
      %p521 = scmp.ne.s32.totalorder %s513, %s515
      %p522 = scmp.eq.s32.totalorder %s37, 3
      %p523 = por %p521, %p522
      %p524 = scmp.ne.s32.totalorder %s515, %s516
      %p525 = scmp.eq.s32.totalorder %s37, 0
      %p526 = por %p524, %p525
      %p527 = scmp.ne.s32.totalorder %s515, %s516
      %p528 = scmp.eq.s32.totalorder %s38, 3
      %p529 = por %p527, %p528
      %p531 = scmp.ne.s32.totalorder %s516, %s530
      %p532 = scmp.eq.s32.totalorder %s38, 0
      %p533 = por %p531, %p532
      %s535 = sadd.s32 %s534, 1
      %p538 = scmp.eq.s32.totalorder %s32, 3
      %p539 = scmp.ne.s32.totalorder %s534, %s536
      %p540 = scmp.eq.s32.totalorder %s32, 0
      %p541 = por %p539, %p540
      %p542 = scmp.ne.s32.totalorder %s534, %s536
      %p543 = scmp.eq.s32.totalorder %s37, 3
      %p544 = por %p542, %p543
      %p545 = scmp.ne.s32.totalorder %s536, %s537
      %p546 = scmp.eq.s32.totalorder %s37, 0
      %p547 = por %p545, %p546
      %p548 = scmp.ne.s32.totalorder %s536, %s537
      %p549 = scmp.eq.s32.totalorder %s38, 3
      %p550 = por %p548, %p549
      %p552 = scmp.ne.s32.totalorder %s537, %s551
      %p553 = scmp.eq.s32.totalorder %s38, 0
      %p554 = por %p552, %p553
      %s556 = sadd.s32 %s555, 1
      %p559 = scmp.eq.s32.totalorder %s32, 3
      %p560 = scmp.ne.s32.totalorder %s555, %s557
      %p561 = scmp.eq.s32.totalorder %s32, 0
      %p562 = por %p560, %p561
      %p563 = scmp.ne.s32.totalorder %s555, %s557
      %p564 = scmp.eq.s32.totalorder %s37, 3
      %p565 = por %p563, %p564
      %p566 = scmp.ne.s32.totalorder %s557, %s558
      %p567 = scmp.eq.s32.totalorder %s37, 0
      %p568 = por %p566, %p567
      %p569 = scmp.ne.s32.totalorder %s557, %s558
      %p570 = scmp.eq.s32.totalorder %s38, 3
      %p571 = por %p569, %p570
      %p573 = scmp.ne.s32.totalorder %s558, %s572
      %p574 = scmp.eq.s32.totalorder %s38, 0
      %p575 = por %p573, %p574
      %s577 = sadd.s32 %s576, 1
      %p580 = scmp.eq.s32.totalorder %s32, 3
      %p581 = scmp.ne.s32.totalorder %s576, %s578
      %p582 = scmp.eq.s32.totalorder %s32, 0
      %p583 = por %p581, %p582
      %p584 = scmp.ne.s32.totalorder %s576, %s578
      %p585 = scmp.eq.s32.totalorder %s37, 3
      %p586 = por %p584, %p585
      %p587 = scmp.ne.s32.totalorder %s578, %s579
      %p588 = scmp.eq.s32.totalorder %s37, 0
      %p589 = por %p587, %p588
      %p590 = scmp.ne.s32.totalorder %s578, %s579
      %p591 = scmp.eq.s32.totalorder %s38, 3
      %p592 = por %p590, %p591
      %p594 = scmp.ne.s32.totalorder %s579, %s593
      %p595 = scmp.eq.s32.totalorder %s38, 0
      %p596 = por %p594, %p595
      %s598 = sadd.s32 %s597, 1
      %p601 = scmp.eq.s32.totalorder %s32, 3
      %p602 = scmp.ne.s32.totalorder %s597, %s599
      %p603 = scmp.eq.s32.totalorder %s32, 0
      %p604 = por %p602, %p603
      %p605 = scmp.ne.s32.totalorder %s597, %s599
      %p606 = scmp.eq.s32.totalorder %s37, 3
      %p607 = por %p605, %p606
      %p608 = scmp.ne.s32.totalorder %s599, %s600
      %p609 = scmp.eq.s32.totalorder %s37, 0
      %p610 = por %p608, %p609
      %p611 = scmp.ne.s32.totalorder %s599, %s600
      %p612 = scmp.eq.s32.totalorder %s38, 3
      %p613 = por %p611, %p612
      %p615 = scmp.ne.s32.totalorder %s600, %s614
      %p616 = scmp.eq.s32.totalorder %s38, 0
      %p617 = por %p615, %p616
      %p618 = scmp.le.s32.totalorder 1, %s32
      %p619 = scmp.lt.s32.totalorder %s32, 5
      %p620 = pnand %p618, %p619
      %p621 = pneg %p620
      // Predicated region
      $region9: #{egnn_forward.3} parent=5 // pred_check
        _
      $region10: #{egnn_forward.3} parent=5 // pred_check_branch
        %623 = sbr.rel (%p620) target = $region12
      $region11: #{egnn_forward.3} parent=5 // pred_region
        %s624 = ssub.s32 %s32, 1
        // Predicated region
        $region13: #{egnn_forward.3} parent=11 // pred_check
          %p625 = pneg %p65
        $region14: #{egnn_forward.3} parent=11 // pred_check_branch
          %627 = sbr.rel (%p625) target = $region16
        $region15: #{egnn_forward.3} parent=11 // pred_region
          _
        $region16: #{egnn_forward.3} parent=11 // pred_fallthru
          _
        // Predicated region
        $region17: #{egnn_forward.3} parent=11 // pred_check
          %p628 = pneg %p86
        $region18: #{egnn_forward.3} parent=11 // pred_check_branch
          %630 = sbr.rel (%p628) target = $region20
        $region19: #{egnn_forward.3} parent=11 // pred_region
          _
        $region20: #{egnn_forward.3} parent=11 // pred_fallthru
          _
        // Predicated region
        $region21: #{egnn_forward.3} parent=11 // pred_check
          %p631 = pneg %p211
        $region22: #{egnn_forward.3} parent=11 // pred_check_branch
          %633 = sbr.rel (%p631) target = $region24
        $region23: #{egnn_forward.3} parent=11 // pred_region
          _
        $region24: #{egnn_forward.3} parent=11 // pred_fallthru
          _
        // Predicated region
        $region25: #{egnn_forward.3} parent=11 // pred_check
          %p634 = pneg %p232
        $region26: #{egnn_forward.3} parent=11 // pred_check_branch
          %636 = sbr.rel (%p634) target = $region28
        $region27: #{egnn_forward.3} parent=11 // pred_region
          _
        $region28: #{egnn_forward.3} parent=11 // pred_fallthru
          _
        // Predicated region
        $region29: #{egnn_forward.3} parent=11 // pred_check
          %p637 = pneg %p253
        $region30: #{egnn_forward.3} parent=11 // pred_check_branch
          %639 = sbr.rel (%p637) target = $region32
        $region31: #{egnn_forward.3} parent=11 // pred_region
          _
        $region32: #{egnn_forward.3} parent=11 // pred_fallthru
          _
        // Predicated region
        $region33: #{egnn_forward.3} parent=11 // pred_check
          %p640 = pneg %p274
        $region34: #{egnn_forward.3} parent=11 // pred_check_branch
          %642 = sbr.rel (%p640) target = $region36
        $region35: #{egnn_forward.3} parent=11 // pred_region
          _
        $region36: #{egnn_forward.3} parent=11 // pred_fallthru
          _
        // Predicated region
        $region37: #{egnn_forward.3} parent=11 // pred_check
          %p643 = pneg %p295
        $region38: #{egnn_forward.3} parent=11 // pred_check_branch
          %645 = sbr.rel (%p643) target = $region40
        $region39: #{egnn_forward.3} parent=11 // pred_region
          _
        $region40: #{egnn_forward.3} parent=11 // pred_fallthru
          _
        // Predicated region
        $region41: #{egnn_forward.3} parent=11 // pred_check
          %p646 = pneg %p316
        $region42: #{egnn_forward.3} parent=11 // pred_check_branch
          %648 = sbr.rel (%p646) target = $region44
        $region43: #{egnn_forward.3} parent=11 // pred_region
          _
        $region44: #{egnn_forward.3} parent=11 // pred_fallthru
          _
        // Predicated region
        $region45: #{egnn_forward.3} parent=11 // pred_check
          %p649 = pneg %p337
        $region46: #{egnn_forward.3} parent=11 // pred_check_branch
          %651 = sbr.rel (%p649) target = $region48
        $region47: #{egnn_forward.3} parent=11 // pred_region
          _
        $region48: #{egnn_forward.3} parent=11 // pred_fallthru
          _
        // Predicated region
        $region49: #{egnn_forward.3} parent=11 // pred_check
          %p652 = pneg %p358
        $region50: #{egnn_forward.3} parent=11 // pred_check_branch
          %654 = sbr.rel (%p652) target = $region52
        $region51: #{egnn_forward.3} parent=11 // pred_region
          _
        $region52: #{egnn_forward.3} parent=11 // pred_fallthru
          _
        // Predicated region
        $region53: #{egnn_forward.3} parent=11 // pred_check
          %p655 = pneg %p379
        $region54: #{egnn_forward.3} parent=11 // pred_check_branch
          %657 = sbr.rel (%p655) target = $region56
        $region55: #{egnn_forward.3} parent=11 // pred_region
          _
        $region56: #{egnn_forward.3} parent=11 // pred_fallthru
          _
        // Predicated region
        $region57: #{egnn_forward.3} parent=11 // pred_check
          %p658 = pneg %p400
        $region58: #{egnn_forward.3} parent=11 // pred_check_branch
          %660 = sbr.rel (%p658) target = $region60
        $region59: #{egnn_forward.3} parent=11 // pred_region
          _
        $region60: #{egnn_forward.3} parent=11 // pred_fallthru
          _
        // Predicated region
        $region61: #{egnn_forward.3} parent=11 // pred_check
          %p661 = pneg %p421
        $region62: #{egnn_forward.3} parent=11 // pred_check_branch
          %663 = sbr.rel (%p661) target = $region64
        $region63: #{egnn_forward.3} parent=11 // pred_region
          _
        $region64: #{egnn_forward.3} parent=11 // pred_fallthru
          _
        // Predicated region
        $region65: #{egnn_forward.3} parent=11 // pred_check
          %p664 = pneg %p442
        $region66: #{egnn_forward.3} parent=11 // pred_check_branch
          %666 = sbr.rel (%p664) target = $region68
        $region67: #{egnn_forward.3} parent=11 // pred_region
          _
        $region68: #{egnn_forward.3} parent=11 // pred_fallthru
          _
        // Predicated region
        $region69: #{egnn_forward.3} parent=11 // pred_check
          %p667 = pneg %p463
        $region70: #{egnn_forward.3} parent=11 // pred_check_branch
          %669 = sbr.rel (%p667) target = $region72
        $region71: #{egnn_forward.3} parent=11 // pred_region
          _
        $region72: #{egnn_forward.3} parent=11 // pred_fallthru
          _
        // Predicated region
        $region73: #{egnn_forward.3} parent=11 // pred_check
          %p670 = pneg %p484
        $region74: #{egnn_forward.3} parent=11 // pred_check_branch
          %672 = sbr.rel (%p670) target = $region76
        $region75: #{egnn_forward.3} parent=11 // pred_region
          _
        $region76: #{egnn_forward.3} parent=11 // pred_fallthru
          _
        // Predicated region
        $region77: #{egnn_forward.3} parent=11 // pred_check
          %p673 = pneg %p505
        $region78: #{egnn_forward.3} parent=11 // pred_check_branch
          %675 = sbr.rel (%p673) target = $region80
        $region79: #{egnn_forward.3} parent=11 // pred_region
          _
        $region80: #{egnn_forward.3} parent=11 // pred_fallthru
          _
        // Predicated region
        $region81: #{egnn_forward.3} parent=11 // pred_check
          %p676 = pneg %p526
        $region82: #{egnn_forward.3} parent=11 // pred_check_branch
          %678 = sbr.rel (%p676) target = $region84
        $region83: #{egnn_forward.3} parent=11 // pred_region
          _
        $region84: #{egnn_forward.3} parent=11 // pred_fallthru
          _
        // Predicated region
        $region85: #{egnn_forward.3} parent=11 // pred_check
          %p679 = pneg %p547
        $region86: #{egnn_forward.3} parent=11 // pred_check_branch
          %681 = sbr.rel (%p679) target = $region88
        $region87: #{egnn_forward.3} parent=11 // pred_region
          _
        $region88: #{egnn_forward.3} parent=11 // pred_fallthru
          _
        // Predicated region
        $region89: #{egnn_forward.3} parent=11 // pred_check
          %p682 = pneg %p568
        $region90: #{egnn_forward.3} parent=11 // pred_check_branch
          %684 = sbr.rel (%p682) target = $region92
        $region91: #{egnn_forward.3} parent=11 // pred_region
          _
        $region92: #{egnn_forward.3} parent=11 // pred_fallthru
          _
      $region12: #{egnn_forward.3} parent=5 // pred_fallthru
        _
      %p685 = scmp.lt.s32.totalorder %s32, 4
      // Predicated region
      $region93: #{egnn_forward.3} parent=5 // pred_check
        %p686 = pneg %p685
      $region94: #{egnn_forward.3} parent=5 // pred_check_branch
        %688 = sbr.rel (%p686) target = $region96
      $region95: #{egnn_forward.3} parent=5 // pred_region
        // Predicated region
        $region97: #{egnn_forward.3} parent=95 // pred_check
          %p689 = pneg %p106
        $region98: #{egnn_forward.3} parent=95 // pred_check_branch
          %691 = sbr.rel (%p689) target = $region100
        $region99: #{egnn_forward.3} parent=95 // pred_region
          %s692 = smul.u32 16, %s40
          %p693 = scmp.lt.s32.totalorder %s692, 31
          %s694 = scalar_select %p693, %s692, 31
          %s695 = smul.addr %s694, 8
          %s696 = scalar_lea.vmem %s2, %s695
          %s697 = smul.u32 16, %s40
        $region100: #{egnn_forward.3} parent=95 // pred_fallthru
          _
        // Predicated region
        $region101: #{egnn_forward.3} parent=95 // pred_check
          %p698 = pneg %p132
        $region102: #{egnn_forward.3} parent=95 // pred_check_branch
          %700 = sbr.rel (%p698) target = $region104
        $region103: #{egnn_forward.3} parent=95 // pred_region
          %s701 = smul.u32 16, %s40
          %p702 = scmp.lt.s32.totalorder %s701, 31
          %s703 = scalar_select %p702, %s701, 31
          %s704 = smul.addr %s703, 4
          %s705 = scalar_lea.vmem %s3, %s704
          %s706 = smul.u32 16, %s40
        $region104: #{egnn_forward.3} parent=95 // pred_fallthru
          _
        // Predicated region
        $region105: #{egnn_forward.3} parent=95 // pred_check
          %p707 = pneg %p158
        $region106: #{egnn_forward.3} parent=95 // pred_check_branch
          %709 = sbr.rel (%p707) target = $region108
        $region107: #{egnn_forward.3} parent=95 // pred_region
          %s710 = smul.u32 16, %s40
          %p711 = scmp.lt.s32.totalorder %s710, 31
          %s712 = scalar_select %p711, %s710, 31
          %s713 = smul.addr %s712, 4
          %s714 = scalar_lea.vmem %s4, %s713
          %s715 = smul.u32 16, %s40
        $region108: #{egnn_forward.3} parent=95 // pred_fallthru
          _
        // Predicated region
        $region109: #{egnn_forward.3} parent=95 // pred_check
          %p716 = pneg %p184
        $region110: #{egnn_forward.3} parent=95 // pred_check_branch
          %718 = sbr.rel (%p716) target = $region112
        $region111: #{egnn_forward.3} parent=95 // pred_region
          %s719 = sand.u32 %s174, 1
          %s720 = sand.u32 %s174, 1
          %s721 = smul.addr %s720, 8
          %s722 = scalar_lea.vmem [#allocation4], %s721
          %s723 = smul.addr %s40, 4
          %s724 = scalar_lea.vmem %s5, %s723
          // Predicated region
          $region113: #{egnn_forward.3} parent=111 // pred_check
            _
          $region114: #{egnn_forward.3} parent=111 // pred_check_branch
            %726 = sbr.rel (0) target = $region116
          $region115: #{egnn_forward.3} parent=111 // pred_region
            // Predicated region
            $region117: #{egnn_forward.3} parent=115 // pred_check
              _
            $region118: #{egnn_forward.3} parent=115 // pred_check_branch
              %728 = sbr.rel target = $region120
            $region119: #{egnn_forward.3} parent=115 // pred_region
              // Predicated region
              $region132: #{egnn_forward.3} parent=119 // pred_check
                _
              $region133: #{egnn_forward.3} parent=119 // pred_check_branch
                %746 = sbr.rel (0) target = $region135
              $region134: #{egnn_forward.3} parent=119 // pred_region
                loop: start=0, step=1, limit=1
                $region136: #{egnn_forward.3} parent=134 // loop_pre_header
                  _
                $region137: #{egnn_forward.3} parent=134 // loop_header
                  %s748 = sphi 0, %s752
                  %p749 = scmp.ge.s32.totalorder %s748, 1
                  %s753 = sphi %s724, %s724
                  %s754 = sphi %s722, %s722
                $region138: #{egnn_forward.3} parent=134 // loop_header_branch
                  %751 = sbr.rel (%p749) target = $region142
                $region139: #{egnn_forward.3} parent=134 // loop_body
                  _
                $region140: #{egnn_forward.3} parent=134 // loop_footer
                  %s752 = sadd.s32 1, %s748
                $region141: #{egnn_forward.3} parent=134 // loop_footer_branch
                  %747 = sbr.rel target = $region137
                $region142: #{egnn_forward.3} parent=134 // loop_exit
                  _
                %s756 = ssub.s32 16, 1
                loop: start=0, step=1, limit=1
                $region143: #{egnn_forward.3} parent=134 // loop_pre_header
                  _
                $region144: #{egnn_forward.3} parent=134 // loop_header
                  %s758 = sphi 0, %s762
                  %p759 = scmp.ge.s32.totalorder %s758, 1
                  %s763 = sphi %s724, %s724
                  %s764 = sphi %s722, %s722
                $region145: #{egnn_forward.3} parent=134 // loop_header_branch
                  %761 = sbr.rel (%p759) target = $region149
                $region146: #{egnn_forward.3} parent=134 // loop_body
                  %v765 = vld [vmem:[%s763] sm:%s756]
                  %766 = vst [vmem:[%s764] sm:%s756] %v765
                  %v767 = vld [vmem:[%s763 + $0x8] sm:%s756]
                  %768 = vst [vmem:[%s764 + $0x4] sm:%s756] %v767
                $region147: #{egnn_forward.3} parent=134 // loop_footer
                  %s762 = sadd.s32 1, %s758
                $region148: #{egnn_forward.3} parent=134 // loop_footer_branch
                  %757 = sbr.rel target = $region144
                $region149: #{egnn_forward.3} parent=134 // loop_exit
                  _
              $region135: #{egnn_forward.3} parent=119 // pred_fallthru
                _
            $region120: #{egnn_forward.3} parent=115 // pred_fallthru
              _
            // Predicated region
            $region121: #{egnn_forward.3} parent=115 // pred_check
              _
            $region122: #{egnn_forward.3} parent=115 // pred_check_branch
              %730 = sbr.rel (0) target = $region124
            $region123: #{egnn_forward.3} parent=115 // pred_region
              %s732 = ssub.s32 16, 1
              loop: start=0, step=1, limit=1
              $region125: #{egnn_forward.3} parent=123 // loop_pre_header
                _
              $region126: #{egnn_forward.3} parent=123 // loop_header
                %s734 = sphi 0, %s738
                %p735 = scmp.ge.s32.totalorder %s734, 1
                %s739 = sphi %s724, %s724
                %s740 = sphi %s722, %s722
              $region127: #{egnn_forward.3} parent=123 // loop_header_branch
                %737 = sbr.rel (%p735) target = $region131
              $region128: #{egnn_forward.3} parent=123 // loop_body
                %v741 = vld [vmem:[%s739] sm:%s732]
                %742 = vst [vmem:[%s740] sm:%s732] %v741
                %v743 = vld [vmem:[%s739 + $0x8] sm:%s732]
                %744 = vst [vmem:[%s740 + $0x4] sm:%s732] %v743
              $region129: #{egnn_forward.3} parent=123 // loop_footer
                %s738 = sadd.s32 1, %s734
              $region130: #{egnn_forward.3} parent=123 // loop_footer_branch
                %733 = sbr.rel target = $region126
              $region131: #{egnn_forward.3} parent=123 // loop_exit
                _
            $region124: #{egnn_forward.3} parent=115 // pred_fallthru
              _
          $region116: #{egnn_forward.3} parent=111 // pred_fallthru
            _
          %769 = vnop
        $region112: #{egnn_forward.3} parent=95 // pred_fallthru
          _
      $region96: #{egnn_forward.3} parent=5 // pred_fallthru
        _
      %p770 = scmp.le.s32.totalorder 1, %s32
      %p771 = scmp.lt.s32.totalorder %s32, 5
      %p772 = pnand %p770, %p771
      %p773 = pneg %p772
      // Predicated region
      $region150: #{egnn_forward.3} parent=5 // pred_check
        _
      $region151: #{egnn_forward.3} parent=5 // pred_check_branch
        %775 = sbr.rel (%p772) target = $region153
      $region152: #{egnn_forward.3} parent=5 // pred_region
        %s776 = ssub.s32 %s32, 1
        %s777 = sand.u32 %s177, 1
        %s778 = sand.u32 %s177, 1
        %s779 = smul.addr %s778, 8
        %s780 = scalar_lea.vmem [#allocation4], %s779
        // Predicated region
        $region154: #{egnn_forward.3} parent=152 // pred_check
          %p781 = pneg %p190
        $region155: #{egnn_forward.3} parent=152 // pred_check_branch
          %783 = sbr.rel (%p781) target = $region157
        $region156: #{egnn_forward.3} parent=152 // pred_region
          _
        $region157: #{egnn_forward.3} parent=152 // pred_fallthru
          _
        %p784 = pneg %p65
        %p785 = pneg %p62
        %p786 = pneg %p86
        %p787 = pneg %p83
        %s788 = smul.u32 16, %s42
        %p789 = scmp.lt.s32.totalorder %s788, 31
        %s790 = scalar_select %p789, %s788, 31
        %s791 = smul.addr %s790, 8
        %s792 = scalar_lea.vmem %s2, %s791
        %p793 = pneg %p112
        %p794 = pneg %p109
        %s795 = smul.u32 16, %s42
        %p796 = scmp.lt.s32.totalorder %s795, 31
        %s797 = scalar_select %p796, %s795, 31
        %s798 = smul.addr %s797, 4
        %s799 = scalar_lea.vmem %s3, %s798
        %p800 = pneg %p138
        %p801 = pneg %p135
        %s802 = smul.u32 16, %s42
        %p803 = scmp.lt.s32.totalorder %s802, 31
        %s804 = scalar_select %p803, %s802, 31
        %s805 = smul.addr %s804, 4
        %s806 = scalar_lea.vmem %s4, %s805
        %p807 = pneg %p164
        %p808 = pneg %p161
        %s809 = sand.u32 %s177, 1
        %s810 = sand.u32 %s177, 1
        %s811 = smul.addr %s810, 8
        %s812 = scalar_lea.vmem [#allocation4], %s811
        %p813 = pneg %p190
        %p814 = pneg %p187
        %p815 = pneg %p211
        %p816 = pneg %p208
        %p817 = pneg %p232
        %p818 = pneg %p229
        %p819 = pneg %p253
        %p820 = pneg %p250
        %p821 = pneg %p274
        %p822 = pneg %p271
        %p823 = pneg %p295
        %p824 = pneg %p292
        %p825 = pneg %p316
        %p826 = pneg %p313
        %p827 = pneg %p337
        %p828 = pneg %p334
        %p829 = pneg %p358
        %p830 = pneg %p355
        %p831 = pneg %p379
        %p832 = pneg %p376
        %p833 = pneg %p400
        %p834 = pneg %p397
        %p835 = pneg %p421
        %p836 = pneg %p418
        %p837 = pneg %p442
        %p838 = pneg %p439
        %p839 = pneg %p463
        %p840 = pneg %p460
        %p841 = pneg %p484
        %p842 = pneg %p481
        %p843 = pneg %p505
        %p844 = pneg %p502
        %p845 = pneg %p526
        %p846 = pneg %p523
        %p847 = pneg %p547
        %p848 = pneg %p544
        %p849 = pneg %p568
        %p850 = pneg %p565
        %p851 = pneg %p589
        %p852 = pneg %p586
        %p853 = pneg %p610
        %p854 = pneg %p607
        %s855 = smul.u32 16, %s42
        %p856 = scmp.lt.s32.totalorder %s855, 31
        %s857 = scalar_select %p856, %s855, 31
        %s858 = smul.addr %s857, 8
        %s859 = scalar_lea.vmem %s2, %s858
        %s860 = smul.u32 16, %s42
        %s861 = smul.u32 16, %s42
        %p862 = scmp.lt.s32.totalorder %s861, 31
        %s863 = scalar_select %p862, %s861, 31
        %s864 = smul.addr %s863, 4
        %s865 = scalar_lea.vmem %s3, %s864
        %s866 = smul.u32 16, %s42
        %s867 = smul.u32 16, %s42
        %p868 = scmp.lt.s32.totalorder %s867, 31
        %s869 = scalar_select %p868, %s867, 31
        %s870 = smul.addr %s869, 4
        %s871 = scalar_lea.vmem %s4, %s870
        %s872 = smul.u32 16, %s42
        %v873 = vld [vmem:[%s865] sm:$0xf]
        %v874 = vld [vmem:[%s865 + $0x4] sm:$0xf]
        %v875 = vld [vmem:[%s865 + $0x8] sm:$0xf]
        %v876 = vld [vmem:[%s865 + $0xc] sm:$0xf]
        %v877 = vld [vmem:[%s865 + $0x10] sm:$0xf]
        %v878 = vld [vmem:[%s865 + $0x14] sm:$0xf]
        %v879 = vld [vmem:[%s865 + $0x18] sm:$0xf]
        %v880 = vld [vmem:[%s865 + $0x1c] sm:$0xf]
        %v881 = vld [vmem:[%s865 + $0x20] sm:$0xf]
        %v882 = vld [vmem:[%s865 + $0x24] sm:$0xf]
        %v883 = vld [vmem:[%s865 + $0x28] sm:$0xf]
        %v884 = vld [vmem:[%s865 + $0x2c] sm:$0xf]
        %v885 = vld [vmem:[%s865 + $0x30] sm:$0xf]
        %v886 = vld [vmem:[%s865 + $0x34] sm:$0xf]
        %v887 = vld [vmem:[%s865 + $0x38] sm:$0xf]
        %v888 = vld [vmem:[%s865 + $0x3c] sm:$0xf]
        %v889 = vunpack.c.l.bf16 %v873
        %v890 = vunpack.c.l.bf16 %v874
        %v891 = vunpack.c.l.bf16 %v875
        %v892 = vunpack.c.l.bf16 %v876
        %v893 = vunpack.c.l.bf16 %v877
        %v894 = vunpack.c.l.bf16 %v878
        %v895 = vunpack.c.l.bf16 %v879
        %v896 = vunpack.c.l.bf16 %v880
        %v897 = vunpack.c.l.bf16 %v881
        %v898 = vunpack.c.l.bf16 %v882
        %v899 = vunpack.c.l.bf16 %v883
        %v900 = vunpack.c.l.bf16 %v884
        %v901 = vunpack.c.l.bf16 %v885
        %v902 = vunpack.c.l.bf16 %v886
        %v903 = vunpack.c.l.bf16 %v887
        %v904 = vunpack.c.l.bf16 %v888
        %v905 = vld [vmem:[%s871] sm:$0xf]
        %v906 = vld [vmem:[%s871 + $0x4] sm:$0xf]
        %v907 = vld [vmem:[%s871 + $0x8] sm:$0xf]
        %v908 = vld [vmem:[%s871 + $0xc] sm:$0xf]
        %v909 = vld [vmem:[%s871 + $0x10] sm:$0xf]
        %v910 = vld [vmem:[%s871 + $0x14] sm:$0xf]
        %v911 = vld [vmem:[%s871 + $0x18] sm:$0xf]
        %v912 = vld [vmem:[%s871 + $0x1c] sm:$0xf]
        %v913 = vld [vmem:[%s871 + $0x20] sm:$0xf]
        %v914 = vld [vmem:[%s871 + $0x24] sm:$0xf]
        %v915 = vld [vmem:[%s871 + $0x28] sm:$0xf]
        %v916 = vld [vmem:[%s871 + $0x2c] sm:$0xf]
        %v917 = vld [vmem:[%s871 + $0x30] sm:$0xf]
        %v918 = vld [vmem:[%s871 + $0x34] sm:$0xf]
        %v919 = vld [vmem:[%s871 + $0x38] sm:$0xf]
        %v920 = vld [vmem:[%s871 + $0x3c] sm:$0xf]
        %v921 = vunpack.c.l.bf16 %v905
        %v922 = vunpack.c.l.bf16 %v906
        %v923 = vunpack.c.l.bf16 %v907
        %v924 = vunpack.c.l.bf16 %v908
        %v925 = vunpack.c.l.bf16 %v909
        %v926 = vunpack.c.l.bf16 %v910
        %v927 = vunpack.c.l.bf16 %v911
        %v928 = vunpack.c.l.bf16 %v912
        %v929 = vunpack.c.l.bf16 %v913
        %v930 = vunpack.c.l.bf16 %v914
        %v931 = vunpack.c.l.bf16 %v915
        %v932 = vunpack.c.l.bf16 %v916
        %v933 = vunpack.c.l.bf16 %v917
        %v934 = vunpack.c.l.bf16 %v918
        %v935 = vunpack.c.l.bf16 %v919
        %v936 = vunpack.c.l.bf16 %v920
        %v937 = vld [vmem:[%s780] sm:$0xf]
        %v938 = vld [vmem:[%s780 + $0x4] sm:$0xf]
        %v939 = vunpack.c.l.bf16 %v937
        %v940 = vunpack.c.l.bf16 %v938
        %v941 = vld [vmem:[%s859] sm:$0xff]
        %v942 = vld [vmem:[%s859 + $0x8] sm:$0xff]
        %v943 = vld [vmem:[%s859 + $0x10] sm:$0xff]
        %v944 = vld [vmem:[%s859 + $0x18] sm:$0xff]
        %v945 = vld [vmem:[%s859 + $0x20] sm:$0xff]
        %v946 = vld [vmem:[%s859 + $0x28] sm:$0xff]
        %v947 = vld [vmem:[%s859 + $0x30] sm:$0xff]
        %v948 = vld [vmem:[%s859 + $0x38] sm:$0xff]
        %v949 = vld [vmem:[%s859 + $0x40] sm:$0xff]
        %v950 = vld [vmem:[%s859 + $0x48] sm:$0xff]
        %v951 = vld [vmem:[%s859 + $0x50] sm:$0xff]
        %v952 = vld [vmem:[%s859 + $0x58] sm:$0xff]
        %v953 = vld [vmem:[%s859 + $0x60] sm:$0xff]
        %v954 = vld [vmem:[%s859 + $0x68] sm:$0xff]
        %v955 = vld [vmem:[%s859 + $0x70] sm:$0xff]
        %v956 = vld [vmem:[%s859 + $0x78] sm:$0xff]
        %v957 = vld [vmem:[%s1] sm:$0xff]
        %v958 = vld [vmem:[%s1 + $0x8] sm:$0xff]
        %vm959 = vcmask 130048
        %v961 = vsel %vm959, %v889, 0
        %v964 = vsel %vm959, %v890, 0
        %v967 = vsel %vm959, %v891, 0
        %v970 = vsel %vm959, %v892, 0
        %v973 = vsel %vm959, %v893, 0
        %v976 = vsel %vm959, %v894, 0
        %v979 = vsel %vm959, %v895, 0
        %v982 = vsel %vm959, %v896, 0
        %v985 = vsel %vm959, %v897, 0
        %v988 = vsel %vm959, %v898, 0
        %v991 = vsel %vm959, %v899, 0
        %v994 = vsel %vm959, %v900, 0
        %v997 = vsel %vm959, %v901, 0
        %v1000 = vsel %vm959, %v902, 0
        %v1003 = vsel %vm959, %v903, 0
        %v1006 = vsel %vm959, %v904, 0
        %1008 = vmatprep.subr.mxu0 0.0
        %1009 = vmatpush1.msra.mxu0 0.0
        %1010 = vmatprep.subr.mxu0 0.0
        %1011 = vmatpush1.msra.mxu0 0.0
        %1012 = vmatprep.subr.mxu0 0.0
        %1013 = vmatpush1.msra.mxu0 0.0
        %1014 = vmatprep.subr.mxu0 0.0
        %1015 = vmatpush1.msra.mxu0 0.0
        %1016 = vmatprep.subr.mxu0 0.0
        %1017 = vmatpush1.msra.mxu0 0.0
        %1018 = vmatprep.subr.mxu0 0.0
        %1019 = vmatpush1.msra.mxu0 0.0
        %1020 = vmatprep.subr.mxu0 0.0
        %1021 = vmatpush1.msra.mxu0 0.0
        %1022 = vmatprep.subr.mxu0 0.0
        %1023 = vmatpush1.msra.mxu0 0.0
        %1024 = vmatprep.subr.mxu0 0.0
        %1025 = vmatpush1.msra.mxu0 0.0
        %1026 = vmatprep.subr.mxu0 0.0
        %1027 = vmatpush1.msra.mxu0 0.0
        %1028 = vmatprep.subr.mxu0 0.0
        %1029 = vmatpush1.msra.mxu0 0.0
        %1030 = vmatprep.subr.mxu0 0.0
        %1031 = vmatpush1.msra.mxu0 0.0
        %1032 = vmatprep.subr.mxu0 0.0
        %1033 = vmatpush1.msra.mxu0 0.0
        %1034 = vmatprep.subr.mxu0 0.0
        %1035 = vmatpush1.msra.mxu0 0.0
        %1036 = vmatprep.subr.mxu0 0.0
        %1037 = vmatpush1.msra.mxu0 %v958
        %1038 = vmatprep.subr.mxu0 0.0
        %1039 = vmatpush1.msra.mxu0 %v957
        %1040 = vmatprep.subr.mxu0 0.0
        %1041 = vmatpush2.msra.mxu0 0.0
        %1042 = vmatprep.subr.mxu0 0.0
        %1043 = vmatpush2.msra.mxu0 0.0
        %1044 = vmatprep.subr.mxu0 0.0
        %1045 = vmatpush2.msra.mxu0 0.0
        %1046 = vmatprep.subr.mxu0 0.0
        %1047 = vmatpush2.msra.mxu0 0.0
        %1048 = vmatprep.subr.mxu0 0.0
        %1049 = vmatpush2.msra.mxu0 0.0
        %1050 = vmatprep.subr.mxu0 0.0
        %1051 = vmatpush2.msra.mxu0 0.0
        %1052 = vmatprep.subr.mxu0 0.0
        %1053 = vmatpush2.msra.mxu0 0.0
        %1054 = vmatprep.subr.mxu0 0.0
        %1055 = vmatpush2.msra.mxu0 0.0
        %1056 = vmatprep.subr.mxu0 0.0
        %1057 = vmatpush2.msra.mxu0 0.0
        %1058 = vmatprep.subr.mxu0 0.0
        %1059 = vmatpush2.msra.mxu0 0.0
        %1060 = vmatprep.subr.mxu0 0.0
        %1061 = vmatpush2.msra.mxu0 0.0
        %1062 = vmatprep.subr.mxu0 0.0
        %1063 = vmatpush2.msra.mxu0 0.0
        %1064 = vmatprep.subr.mxu0 0.0
        %1065 = vmatpush2.msra.mxu0 0.0
        %1066 = vmatprep.subr.mxu0 0.0
        %1067 = vmatpush2.msra.mxu0 0.0
        %1068 = vmatprep.subr.mxu0 0.0
        %1069 = vmatpush2.msra.mxu0 0.0
        %1070 = vmatprep.subr.mxu0 0.0
        %1071 = vmatpush2.msra.mxu0 0.0
        %1072 = vmatprep.mubr.f32.mxu0 0.0
        %1073 = vmatmul.mubr.f32.gmra.mxu0 %v961
        %v1074 = vpop.f32.mrf.mxu0
        %v1075 = vadd.f32 0.0, %v1074
        %v1076 = vpop.f32.mrf.mxu0
        %1077 = vmatprep.mubr.f32.mxu0 0.0
        %1078 = vmatmul.mubr.f32.gmra.mxu0 %v964
        %v1079 = vpop.f32.mrf.mxu0
        %v1080 = vadd.f32 0.0, %v1079
        %v1081 = vpop.f32.mrf.mxu0
        %1082 = vmatprep.mubr.f32.mxu0 0.0
        %1083 = vmatmul.mubr.f32.gmra.mxu0 %v967
        %v1084 = vpop.f32.mrf.mxu0
        %v1085 = vadd.f32 0.0, %v1084
        %v1086 = vpop.f32.mrf.mxu0
        %1087 = vmatprep.mubr.f32.mxu0 0.0
        %1088 = vmatmul.mubr.f32.gmra.mxu0 %v970
        %v1089 = vpop.f32.mrf.mxu0
        %v1090 = vadd.f32 0.0, %v1089
        %v1091 = vpop.f32.mrf.mxu0
        %1092 = vmatprep.mubr.f32.mxu0 0.0
        %1093 = vmatmul.mubr.f32.gmra.mxu0 %v973
        %v1094 = vpop.f32.mrf.mxu0
        %v1095 = vadd.f32 0.0, %v1094
        %v1096 = vpop.f32.mrf.mxu0
        %1097 = vmatprep.mubr.f32.mxu0 0.0
        %1098 = vmatmul.mubr.f32.gmra.mxu0 %v976
        %v1099 = vpop.f32.mrf.mxu0
        %v1100 = vadd.f32 0.0, %v1099
        %v1101 = vpop.f32.mrf.mxu0
        %1102 = vmatprep.mubr.f32.mxu0 0.0
        %1103 = vmatmul.mubr.f32.gmra.mxu0 %v979
        %v1104 = vpop.f32.mrf.mxu0
        %v1105 = vadd.f32 0.0, %v1104
        %v1106 = vpop.f32.mrf.mxu0
        %1107 = vmatprep.mubr.f32.mxu0 0.0
        %1108 = vmatmul.mubr.f32.gmra.mxu0 %v982
        %v1109 = vpop.f32.mrf.mxu0
        %v1110 = vadd.f32 0.0, %v1109
        %v1111 = vpop.f32.mrf.mxu0
        %1112 = vmatprep.mubr.f32.mxu0 0.0
        %1113 = vmatmul.mubr.f32.gmra.mxu0 %v985
        %v1114 = vpop.f32.mrf.mxu0
        %v1115 = vadd.f32 0.0, %v1114
        %v1116 = vpop.f32.mrf.mxu0
        %1117 = vmatprep.mubr.f32.mxu0 0.0
        %1118 = vmatmul.mubr.f32.gmra.mxu0 %v988
        %v1119 = vpop.f32.mrf.mxu0
        %v1120 = vadd.f32 0.0, %v1119
        %v1121 = vpop.f32.mrf.mxu0
        %1122 = vmatprep.mubr.f32.mxu0 0.0
        %1123 = vmatmul.mubr.f32.gmra.mxu0 %v991
        %v1124 = vpop.f32.mrf.mxu0
        %v1125 = vadd.f32 0.0, %v1124
        %v1126 = vpop.f32.mrf.mxu0
        %1127 = vmatprep.mubr.f32.mxu0 0.0
        %1128 = vmatmul.mubr.f32.gmra.mxu0 %v994
        %v1129 = vpop.f32.mrf.mxu0
        %v1130 = vadd.f32 0.0, %v1129
        %v1131 = vpop.f32.mrf.mxu0
        %1132 = vmatprep.mubr.f32.mxu0 0.0
        %1133 = vmatmul.mubr.f32.gmra.mxu0 %v997
        %v1134 = vpop.f32.mrf.mxu0
        %v1135 = vadd.f32 0.0, %v1134
        %v1136 = vpop.f32.mrf.mxu0
        %1137 = vmatprep.mubr.f32.mxu0 0.0
        %1138 = vmatmul.mubr.f32.gmra.mxu0 %v1000
        %v1139 = vpop.f32.mrf.mxu0
        %v1140 = vadd.f32 0.0, %v1139
        %v1141 = vpop.f32.mrf.mxu0
        %1142 = vmatprep.mubr.f32.mxu0 0.0
        %1143 = vmatmul.mubr.f32.gmra.mxu0 %v1003
        %v1144 = vpop.f32.mrf.mxu0
        %v1145 = vadd.f32 0.0, %v1144
        %v1146 = vpop.f32.mrf.mxu0
        %1147 = vmatprep.mubr.f32.mxu0 0.0
        %1148 = vmatmul.mubr.f32.gmra.mxu0 %v1006
        %v1149 = vpop.f32.mrf.mxu0
        %v1150 = vadd.f32 0.0, %v1149
        %v1151 = vpop.f32.mrf.mxu0
        %1152 = vdwg.mxu0
        %v1154 = vsel %vm959, %v921, 0
        %v1157 = vsel %vm959, %v922, 0
        %v1160 = vsel %vm959, %v923, 0
        %v1163 = vsel %vm959, %v924, 0
        %v1166 = vsel %vm959, %v925, 0
        %v1169 = vsel %vm959, %v926, 0
        %v1172 = vsel %vm959, %v927, 0
        %v1175 = vsel %vm959, %v928, 0
        %v1178 = vsel %vm959, %v929, 0
        %v1181 = vsel %vm959, %v930, 0
        %v1184 = vsel %vm959, %v931, 0
        %v1187 = vsel %vm959, %v932, 0
        %v1190 = vsel %vm959, %v933, 0
        %v1193 = vsel %vm959, %v934, 0
        %v1196 = vsel %vm959, %v935, 0
        %v1199 = vsel %vm959, %v936, 0
        %1201 = vmatprep.subr.mxu0 0.0
        %1202 = vmatpush1.msra.mxu0 0.0
        %1203 = vmatprep.subr.mxu0 0.0
        %1204 = vmatpush1.msra.mxu0 0.0
        %1205 = vmatprep.subr.mxu0 0.0
        %1206 = vmatpush1.msra.mxu0 0.0
        %1207 = vmatprep.subr.mxu0 0.0
        %1208 = vmatpush1.msra.mxu0 0.0
        %1209 = vmatprep.subr.mxu0 0.0
        %1210 = vmatpush1.msra.mxu0 0.0
        %1211 = vmatprep.subr.mxu0 0.0
        %1212 = vmatpush1.msra.mxu0 0.0
        %1213 = vmatprep.subr.mxu0 0.0
        %1214 = vmatpush1.msra.mxu0 0.0
        %1215 = vmatprep.subr.mxu0 0.0
        %1216 = vmatpush1.msra.mxu0 0.0
        %1217 = vmatprep.subr.mxu0 0.0
        %1218 = vmatpush1.msra.mxu0 0.0
        %1219 = vmatprep.subr.mxu0 0.0
        %1220 = vmatpush1.msra.mxu0 0.0
        %1221 = vmatprep.subr.mxu0 0.0
        %1222 = vmatpush1.msra.mxu0 0.0
        %1223 = vmatprep.subr.mxu0 0.0
        %1224 = vmatpush1.msra.mxu0 0.0
        %1225 = vmatprep.subr.mxu0 0.0
        %1226 = vmatpush1.msra.mxu0 0.0
        %1227 = vmatprep.subr.mxu0 0.0
        %1228 = vmatpush1.msra.mxu0 0.0
        %1229 = vmatprep.subr.mxu0 0.0
        %1230 = vmatpush1.msra.mxu0 %v958
        %1231 = vmatprep.subr.mxu0 0.0
        %1232 = vmatpush1.msra.mxu0 %v957
        %1233 = vmatprep.subr.mxu0 0.0
        %1234 = vmatpush2.msra.mxu0 0.0
        %1235 = vmatprep.subr.mxu0 0.0
        %1236 = vmatpush2.msra.mxu0 0.0
        %1237 = vmatprep.subr.mxu0 0.0
        %1238 = vmatpush2.msra.mxu0 0.0
        %1239 = vmatprep.subr.mxu0 0.0
        %1240 = vmatpush2.msra.mxu0 0.0
        %1241 = vmatprep.subr.mxu0 0.0
        %1242 = vmatpush2.msra.mxu0 0.0
        %1243 = vmatprep.subr.mxu0 0.0
        %1244 = vmatpush2.msra.mxu0 0.0
        %1245 = vmatprep.subr.mxu0 0.0
        %1246 = vmatpush2.msra.mxu0 0.0
        %1247 = vmatprep.subr.mxu0 0.0
        %1248 = vmatpush2.msra.mxu0 0.0
        %1249 = vmatprep.subr.mxu0 0.0
        %1250 = vmatpush2.msra.mxu0 0.0
        %1251 = vmatprep.subr.mxu0 0.0
        %1252 = vmatpush2.msra.mxu0 0.0
        %1253 = vmatprep.subr.mxu0 0.0
        %1254 = vmatpush2.msra.mxu0 0.0
        %1255 = vmatprep.subr.mxu0 0.0
        %1256 = vmatpush2.msra.mxu0 0.0
        %1257 = vmatprep.subr.mxu0 0.0
        %1258 = vmatpush2.msra.mxu0 0.0
        %1259 = vmatprep.subr.mxu0 0.0
        %1260 = vmatpush2.msra.mxu0 0.0
        %1261 = vmatprep.subr.mxu0 0.0
        %1262 = vmatpush2.msra.mxu0 0.0
        %1263 = vmatprep.subr.mxu0 0.0
        %1264 = vmatpush2.msra.mxu0 0.0
        %1265 = vmatprep.mubr.f32.mxu0 0.0
        %1266 = vmatmul.mubr.f32.gmra.mxu0 %v1154
        %v1267 = vpop.f32.mrf.mxu0
        %v1268 = vadd.f32 0.0, %v1267
        %v1269 = vpop.f32.mrf.mxu0
        %1270 = vmatprep.mubr.f32.mxu0 0.0
        %1271 = vmatmul.mubr.f32.gmra.mxu0 %v1157
        %v1272 = vpop.f32.mrf.mxu0
        %v1273 = vadd.f32 0.0, %v1272
        %v1274 = vpop.f32.mrf.mxu0
        %1275 = vmatprep.mubr.f32.mxu0 0.0
        %1276 = vmatmul.mubr.f32.gmra.mxu0 %v1160
        %v1277 = vpop.f32.mrf.mxu0
        %v1278 = vadd.f32 0.0, %v1277
        %v1279 = vpop.f32.mrf.mxu0
        %1280 = vmatprep.mubr.f32.mxu0 0.0
        %1281 = vmatmul.mubr.f32.gmra.mxu0 %v1163
        %v1282 = vpop.f32.mrf.mxu0
        %v1283 = vadd.f32 0.0, %v1282
        %v1284 = vpop.f32.mrf.mxu0
        %1285 = vmatprep.mubr.f32.mxu0 0.0
        %1286 = vmatmul.mubr.f32.gmra.mxu0 %v1166
        %v1287 = vpop.f32.mrf.mxu0
        %v1288 = vadd.f32 0.0, %v1287
        %v1289 = vpop.f32.mrf.mxu0
        %1290 = vmatprep.mubr.f32.mxu0 0.0
        %1291 = vmatmul.mubr.f32.gmra.mxu0 %v1169
        %v1292 = vpop.f32.mrf.mxu0
        %v1293 = vadd.f32 0.0, %v1292
        %v1294 = vpop.f32.mrf.mxu0
        %1295 = vmatprep.mubr.f32.mxu0 0.0
        %1296 = vmatmul.mubr.f32.gmra.mxu0 %v1172
        %v1297 = vpop.f32.mrf.mxu0
        %v1298 = vadd.f32 0.0, %v1297
        %v1299 = vpop.f32.mrf.mxu0
        %1300 = vmatprep.mubr.f32.mxu0 0.0
        %1301 = vmatmul.mubr.f32.gmra.mxu0 %v1175
        %v1302 = vpop.f32.mrf.mxu0
        %v1303 = vadd.f32 0.0, %v1302
        %v1304 = vpop.f32.mrf.mxu0
        %1305 = vmatprep.mubr.f32.mxu0 0.0
        %1306 = vmatmul.mubr.f32.gmra.mxu0 %v1178
        %v1307 = vpop.f32.mrf.mxu0
        %v1308 = vadd.f32 0.0, %v1307
        %v1309 = vpop.f32.mrf.mxu0
        %1310 = vmatprep.mubr.f32.mxu0 0.0
        %1311 = vmatmul.mubr.f32.gmra.mxu0 %v1181
        %v1312 = vpop.f32.mrf.mxu0
        %v1313 = vadd.f32 0.0, %v1312
        %v1314 = vpop.f32.mrf.mxu0
        %1315 = vmatprep.mubr.f32.mxu0 0.0
        %1316 = vmatmul.mubr.f32.gmra.mxu0 %v1184
        %v1317 = vpop.f32.mrf.mxu0
        %v1318 = vadd.f32 0.0, %v1317
        %v1319 = vpop.f32.mrf.mxu0
        %1320 = vmatprep.mubr.f32.mxu0 0.0
        %1321 = vmatmul.mubr.f32.gmra.mxu0 %v1187
        %v1322 = vpop.f32.mrf.mxu0
        %v1323 = vadd.f32 0.0, %v1322
        %v1324 = vpop.f32.mrf.mxu0
        %1325 = vmatprep.mubr.f32.mxu0 0.0
        %1326 = vmatmul.mubr.f32.gmra.mxu0 %v1190
        %v1327 = vpop.f32.mrf.mxu0
        %v1328 = vadd.f32 0.0, %v1327
        %v1329 = vpop.f32.mrf.mxu0
        %1330 = vmatprep.mubr.f32.mxu0 0.0
        %1331 = vmatmul.mubr.f32.gmra.mxu0 %v1193
        %v1332 = vpop.f32.mrf.mxu0
        %v1333 = vadd.f32 0.0, %v1332
        %v1334 = vpop.f32.mrf.mxu0
        %1335 = vmatprep.mubr.f32.mxu0 0.0
        %1336 = vmatmul.mubr.f32.gmra.mxu0 %v1196
        %v1337 = vpop.f32.mrf.mxu0
        %v1338 = vadd.f32 0.0, %v1337
        %v1339 = vpop.f32.mrf.mxu0
        %1340 = vmatprep.mubr.f32.mxu0 0.0
        %1341 = vmatmul.mubr.f32.gmra.mxu0 %v1199
        %v1342 = vpop.f32.mrf.mxu0
        %v1343 = vadd.f32 0.0, %v1342
        %v1344 = vpop.f32.mrf.mxu0
        %1345 = vdwg.mxu0
        %v1346 = vsub.f32 %v1075, %v1268
        %v1347 = vsub.f32 %v1080, %v1273
        %v1348 = vsub.f32 %v1085, %v1278
        %v1349 = vsub.f32 %v1090, %v1283
        %v1350 = vsub.f32 %v1095, %v1288
        %v1351 = vsub.f32 %v1100, %v1293
        %v1352 = vsub.f32 %v1105, %v1298
        %v1353 = vsub.f32 %v1110, %v1303
        %v1354 = vsub.f32 %v1115, %v1308
        %v1355 = vsub.f32 %v1120, %v1313
        %v1356 = vsub.f32 %v1125, %v1318
        %v1357 = vsub.f32 %v1130, %v1323
        %v1358 = vsub.f32 %v1135, %v1328
        %v1359 = vsub.f32 %v1140, %v1333
        %v1360 = vsub.f32 %v1145, %v1338
        %v1361 = vsub.f32 %v1150, %v1343
        %v1362 = vmul.f32 %v1346, %v1346
        %v1363 = vmul.f32 %v1347, %v1347
        %v1364 = vmul.f32 %v1348, %v1348
        %v1365 = vmul.f32 %v1349, %v1349
        %v1366 = vmul.f32 %v1350, %v1350
        %v1367 = vmul.f32 %v1351, %v1351
        %v1368 = vmul.f32 %v1352, %v1352
        %v1369 = vmul.f32 %v1353, %v1353
        %v1370 = vmul.f32 %v1354, %v1354
        %v1371 = vmul.f32 %v1355, %v1355
        %v1372 = vmul.f32 %v1356, %v1356
        %v1373 = vmul.f32 %v1357, %v1357
        %v1374 = vmul.f32 %v1358, %v1358
        %v1375 = vmul.f32 %v1359, %v1359
        %v1376 = vmul.f32 %v1360, %v1360
        %v1377 = vmul.f32 %v1361, %v1361
        %1378 = vadd.xlane.f32.xlu0 %v1362
        %v1379 = vpop.xlane.xlu0 %1378
        %1380 = vadd.xlane.f32.xlu0 %v1363
        %v1381 = vpop.xlane.xlu0 %1380
        %1382 = vadd.xlane.f32.xlu0 %v1364
        %v1383 = vpop.xlane.xlu0 %1382
        %1384 = vadd.xlane.f32.xlu0 %v1365
        %v1385 = vpop.xlane.xlu0 %1384
        %1386 = vadd.xlane.f32.xlu0 %v1366
        %v1387 = vpop.xlane.xlu0 %1386
        %1388 = vadd.xlane.f32.xlu0 %v1367
        %v1389 = vpop.xlane.xlu0 %1388
        %1390 = vadd.xlane.f32.xlu0 %v1368
        %v1391 = vpop.xlane.xlu0 %1390
        %1392 = vadd.xlane.f32.xlu0 %v1369
        %v1393 = vpop.xlane.xlu0 %1392
        %1394 = vadd.xlane.f32.xlu0 %v1370
        %v1395 = vpop.xlane.xlu0 %1394
        %1396 = vadd.xlane.f32.xlu0 %v1371
        %v1397 = vpop.xlane.xlu0 %1396
        %1398 = vadd.xlane.f32.xlu0 %v1372
        %v1399 = vpop.xlane.xlu0 %1398
        %1400 = vadd.xlane.f32.xlu0 %v1373
        %v1401 = vpop.xlane.xlu0 %1400
        %1402 = vadd.xlane.f32.xlu0 %v1374
        %v1403 = vpop.xlane.xlu0 %1402
        %1404 = vadd.xlane.f32.xlu0 %v1375
        %v1405 = vpop.xlane.xlu0 %1404
        %1406 = vadd.xlane.f32.xlu0 %v1376
        %v1407 = vpop.xlane.xlu0 %1406
        %1408 = vadd.xlane.f32.xlu0 %v1377
        %v1409 = vpop.xlane.xlu0 %1408
        %p1410 = scmp.eq.s32.totalorder %s41, 0
        // Predicated region
        $region158: #{egnn_forward.3} parent=152 // pred_check
          %p1411 = pneg %p1410
        $region159: #{egnn_forward.3} parent=152 // pred_check_branch
          %1413 = sbr.rel (%p1411) target = $region161
        $region160: #{egnn_forward.3} parent=152 // pred_region
          %p1414 = scmp.eq.s32.totalorder %s42, 0
          // Predicated region
          $region162: #{egnn_forward.3} parent=160 // pred_check
            %p1415 = pneg %p1414
          $region163: #{egnn_forward.3} parent=160 // pred_check_branch
            %1417 = sbr.rel (%p1415) target = $region165
          $region164: #{egnn_forward.3} parent=160 // pred_region
            %vm1418 = vcmask 261120
            %1419 = vst.msk [vmem:[#allocation2] sm:$0xff] %vm1418, 0.0
            %1420 = vst.msk [vmem:[#allocation2 + $0x8] sm:$0xff] %vm1418, 0.0
          $region165: #{egnn_forward.3} parent=160 // pred_fallthru
            _
          %v1421 = vld [vmem:[%s0] sm:$0xff]
          %v1422 = vld [vmem:[%s0 + $0x8] sm:$0xff]
          %1423 = vmatprep.subr.mxu0 0.0
          %1424 = vmatpush1.msra.mxu0 0.0
          %1425 = vmatprep.subr.mxu0 0.0
          %1426 = vmatpush1.msra.mxu0 0.0
          %1427 = vmatprep.subr.mxu0 0.0
          %1428 = vmatpush1.msra.mxu0 0.0
          %1429 = vmatprep.subr.mxu0 0.0
          %1430 = vmatpush1.msra.mxu0 0.0
          %1431 = vmatprep.subr.mxu0 0.0
          %1432 = vmatpush1.msra.mxu0 0.0
          %1433 = vmatprep.subr.mxu0 0.0
          %1434 = vmatpush1.msra.mxu0 0.0
          %1435 = vmatprep.subr.mxu0 0.0
          %1436 = vmatpush1.msra.mxu0 0.0
          %1437 = vmatprep.subr.mxu0 0.0
          %1438 = vmatpush1.msra.mxu0 0.0
          %1439 = vmatprep.subr.mxu0 0.0
          %1440 = vmatpush1.msra.mxu0 0.0
          %1441 = vmatprep.subr.mxu0 0.0
          %1442 = vmatpush1.msra.mxu0 0.0
          %1443 = vmatprep.subr.mxu0 0.0
          %1444 = vmatpush1.msra.mxu0 0.0
          %1445 = vmatprep.subr.mxu0 0.0
          %1446 = vmatpush1.msra.mxu0 0.0
          %1447 = vmatprep.subr.mxu0 0.0
          %1448 = vmatpush1.msra.mxu0 0.0
          %1449 = vmatprep.subr.mxu0 0.0
          %1450 = vmatpush1.msra.mxu0 0.0
          %1451 = vmatprep.subr.mxu0 0.0
          %1452 = vmatpush1.msra.mxu0 %v1422
          %1453 = vmatprep.subr.mxu0 0.0
          %1454 = vmatpush1.msra.mxu0 %v1421
          %1455 = vmatprep.subr.mxu0 0.0
          %1456 = vmatpush2.msra.mxu0 0.0
          %1457 = vmatprep.subr.mxu0 0.0
          %1458 = vmatpush2.msra.mxu0 0.0
          %1459 = vmatprep.subr.mxu0 0.0
          %1460 = vmatpush2.msra.mxu0 0.0
          %1461 = vmatprep.subr.mxu0 0.0
          %1462 = vmatpush2.msra.mxu0 0.0
          %1463 = vmatprep.subr.mxu0 0.0
          %1464 = vmatpush2.msra.mxu0 0.0
          %1465 = vmatprep.subr.mxu0 0.0
          %1466 = vmatpush2.msra.mxu0 0.0
          %1467 = vmatprep.subr.mxu0 0.0
          %1468 = vmatpush2.msra.mxu0 0.0
          %1469 = vmatprep.subr.mxu0 0.0
          %1470 = vmatpush2.msra.mxu0 0.0
          %1471 = vmatprep.subr.mxu0 0.0
          %1472 = vmatpush2.msra.mxu0 0.0
          %1473 = vmatprep.subr.mxu0 0.0
          %1474 = vmatpush2.msra.mxu0 0.0
          %1475 = vmatprep.subr.mxu0 0.0
          %1476 = vmatpush2.msra.mxu0 0.0
          %1477 = vmatprep.subr.mxu0 0.0
          %1478 = vmatpush2.msra.mxu0 0.0
          %1479 = vmatprep.subr.mxu0 0.0
          %1480 = vmatpush2.msra.mxu0 0.0
          %1481 = vmatprep.subr.mxu0 0.0
          %1482 = vmatpush2.msra.mxu0 0.0
          %1483 = vmatprep.subr.mxu0 0.0
          %1484 = vmatpush2.msra.mxu0 0.0
          %1485 = vmatprep.subr.mxu0 0.0
          %1486 = vmatpush2.msra.mxu0 0.0
          %1487 = vmatprep.mubr.f32.mxu0 0.0
          %1488 = vmatmul.mubr.f32.gmra.mxu0 %v961
          %v1489 = vpop.f32.mrf.mxu0
          %v1490 = vadd.f32 0.0, %v1489
          %v1491 = vpop.f32.mrf.mxu0
          %1492 = vmatprep.mubr.f32.mxu0 0.0
          %1493 = vmatmul.mubr.f32.gmra.mxu0 %v964
          %v1494 = vpop.f32.mrf.mxu0
          %v1495 = vadd.f32 0.0, %v1494
          %v1496 = vpop.f32.mrf.mxu0
          %1497 = vmatprep.mubr.f32.mxu0 0.0
          %1498 = vmatmul.mubr.f32.gmra.mxu0 %v967
          %v1499 = vpop.f32.mrf.mxu0
          %v1500 = vadd.f32 0.0, %v1499
          %v1501 = vpop.f32.mrf.mxu0
          %1502 = vmatprep.mubr.f32.mxu0 0.0
          %1503 = vmatmul.mubr.f32.gmra.mxu0 %v970
          %v1504 = vpop.f32.mrf.mxu0
          %v1505 = vadd.f32 0.0, %v1504
          %v1506 = vpop.f32.mrf.mxu0
          %1507 = vmatprep.mubr.f32.mxu0 0.0
          %1508 = vmatmul.mubr.f32.gmra.mxu0 %v973
          %v1509 = vpop.f32.mrf.mxu0
          %v1510 = vadd.f32 0.0, %v1509
          %v1511 = vpop.f32.mrf.mxu0
          %1512 = vmatprep.mubr.f32.mxu0 0.0
          %1513 = vmatmul.mubr.f32.gmra.mxu0 %v976
          %v1514 = vpop.f32.mrf.mxu0
          %v1515 = vadd.f32 0.0, %v1514
          %v1516 = vpop.f32.mrf.mxu0
          %1517 = vmatprep.mubr.f32.mxu0 0.0
          %1518 = vmatmul.mubr.f32.gmra.mxu0 %v979
          %v1519 = vpop.f32.mrf.mxu0
          %v1520 = vadd.f32 0.0, %v1519
          %v1521 = vpop.f32.mrf.mxu0
          %1522 = vmatprep.mubr.f32.mxu0 0.0
          %1523 = vmatmul.mubr.f32.gmra.mxu0 %v982
          %v1524 = vpop.f32.mrf.mxu0
          %v1525 = vadd.f32 0.0, %v1524
          %v1526 = vpop.f32.mrf.mxu0
          %1527 = vmatprep.mubr.f32.mxu0 0.0
          %1528 = vmatmul.mubr.f32.gmra.mxu0 %v985
          %v1529 = vpop.f32.mrf.mxu0
          %v1530 = vadd.f32 0.0, %v1529
          %v1531 = vpop.f32.mrf.mxu0
          %1532 = vmatprep.mubr.f32.mxu0 0.0
          %1533 = vmatmul.mubr.f32.gmra.mxu0 %v988
          %v1534 = vpop.f32.mrf.mxu0
          %v1535 = vadd.f32 0.0, %v1534
          %v1536 = vpop.f32.mrf.mxu0
          %1537 = vmatprep.mubr.f32.mxu0 0.0
          %1538 = vmatmul.mubr.f32.gmra.mxu0 %v991
          %v1539 = vpop.f32.mrf.mxu0
          %v1540 = vadd.f32 0.0, %v1539
          %v1541 = vpop.f32.mrf.mxu0
          %1542 = vmatprep.mubr.f32.mxu0 0.0
          %1543 = vmatmul.mubr.f32.gmra.mxu0 %v994
          %v1544 = vpop.f32.mrf.mxu0
          %v1545 = vadd.f32 0.0, %v1544
          %v1546 = vpop.f32.mrf.mxu0
          %1547 = vmatprep.mubr.f32.mxu0 0.0
          %1548 = vmatmul.mubr.f32.gmra.mxu0 %v997
          %v1549 = vpop.f32.mrf.mxu0
          %v1550 = vadd.f32 0.0, %v1549
          %v1551 = vpop.f32.mrf.mxu0
          %1552 = vmatprep.mubr.f32.mxu0 0.0
          %1553 = vmatmul.mubr.f32.gmra.mxu0 %v1000
          %v1554 = vpop.f32.mrf.mxu0
          %v1555 = vadd.f32 0.0, %v1554
          %v1556 = vpop.f32.mrf.mxu0
          %1557 = vmatprep.mubr.f32.mxu0 0.0
          %1558 = vmatmul.mubr.f32.gmra.mxu0 %v1003
          %v1559 = vpop.f32.mrf.mxu0
          %v1560 = vadd.f32 0.0, %v1559
          %v1561 = vpop.f32.mrf.mxu0
          %1562 = vmatprep.mubr.f32.mxu0 0.0
          %1563 = vmatmul.mubr.f32.gmra.mxu0 %v1006
          %v1564 = vpop.f32.mrf.mxu0
          %v1565 = vadd.f32 0.0, %v1564
          %v1566 = vpop.f32.mrf.mxu0
          %1567 = vdwg.mxu0
          %1568 = vmatprep.subr.mxu0 0.0
          %1569 = vmatpush1.msra.mxu0 0.0
          %1570 = vmatprep.subr.mxu0 0.0
          %1571 = vmatpush1.msra.mxu0 0.0
          %1572 = vmatprep.subr.mxu0 0.0
          %1573 = vmatpush1.msra.mxu0 0.0
          %1574 = vmatprep.subr.mxu0 0.0
          %1575 = vmatpush1.msra.mxu0 0.0
          %1576 = vmatprep.subr.mxu0 0.0
          %1577 = vmatpush1.msra.mxu0 0.0
          %1578 = vmatprep.subr.mxu0 0.0
          %1579 = vmatpush1.msra.mxu0 0.0
          %1580 = vmatprep.subr.mxu0 0.0
          %1581 = vmatpush1.msra.mxu0 0.0
          %1582 = vmatprep.subr.mxu0 0.0
          %1583 = vmatpush1.msra.mxu0 0.0
          %1584 = vmatprep.subr.mxu0 0.0
          %1585 = vmatpush1.msra.mxu0 0.0
          %1586 = vmatprep.subr.mxu0 0.0
          %1587 = vmatpush1.msra.mxu0 0.0
          %1588 = vmatprep.subr.mxu0 0.0
          %1589 = vmatpush1.msra.mxu0 0.0
          %1590 = vmatprep.subr.mxu0 0.0
          %1591 = vmatpush1.msra.mxu0 0.0
          %1592 = vmatprep.subr.mxu0 0.0
          %1593 = vmatpush1.msra.mxu0 0.0
          %1594 = vmatprep.subr.mxu0 0.0
          %1595 = vmatpush1.msra.mxu0 0.0
          %1596 = vmatprep.subr.mxu0 0.0
          %1597 = vmatpush1.msra.mxu0 %v1422
          %1598 = vmatprep.subr.mxu0 0.0
          %1599 = vmatpush1.msra.mxu0 %v1421
          %1600 = vmatprep.subr.mxu0 0.0
          %1601 = vmatpush2.msra.mxu0 0.0
          %1602 = vmatprep.subr.mxu0 0.0
          %1603 = vmatpush2.msra.mxu0 0.0
          %1604 = vmatprep.subr.mxu0 0.0
          %1605 = vmatpush2.msra.mxu0 0.0
          %1606 = vmatprep.subr.mxu0 0.0
          %1607 = vmatpush2.msra.mxu0 0.0
          %1608 = vmatprep.subr.mxu0 0.0
          %1609 = vmatpush2.msra.mxu0 0.0
          %1610 = vmatprep.subr.mxu0 0.0
          %1611 = vmatpush2.msra.mxu0 0.0
          %1612 = vmatprep.subr.mxu0 0.0
          %1613 = vmatpush2.msra.mxu0 0.0
          %1614 = vmatprep.subr.mxu0 0.0
          %1615 = vmatpush2.msra.mxu0 0.0
          %1616 = vmatprep.subr.mxu0 0.0
          %1617 = vmatpush2.msra.mxu0 0.0
          %1618 = vmatprep.subr.mxu0 0.0
          %1619 = vmatpush2.msra.mxu0 0.0
          %1620 = vmatprep.subr.mxu0 0.0
          %1621 = vmatpush2.msra.mxu0 0.0
          %1622 = vmatprep.subr.mxu0 0.0
          %1623 = vmatpush2.msra.mxu0 0.0
          %1624 = vmatprep.subr.mxu0 0.0
          %1625 = vmatpush2.msra.mxu0 0.0
          %1626 = vmatprep.subr.mxu0 0.0
          %1627 = vmatpush2.msra.mxu0 0.0
          %1628 = vmatprep.subr.mxu0 0.0
          %1629 = vmatpush2.msra.mxu0 0.0
          %1630 = vmatprep.subr.mxu0 0.0
          %1631 = vmatpush2.msra.mxu0 0.0
          %1632 = vmatprep.mubr.f32.mxu0 0.0
          %1633 = vmatmul.mubr.f32.gmra.mxu0 %v1154
          %v1634 = vpop.f32.mrf.mxu0
          %v1635 = vadd.f32 0.0, %v1634
          %v1636 = vpop.f32.mrf.mxu0
          %1637 = vmatprep.mubr.f32.mxu0 0.0
          %1638 = vmatmul.mubr.f32.gmra.mxu0 %v1157
          %v1639 = vpop.f32.mrf.mxu0
          %v1640 = vadd.f32 0.0, %v1639
          %v1641 = vpop.f32.mrf.mxu0
          %1642 = vmatprep.mubr.f32.mxu0 0.0
          %1643 = vmatmul.mubr.f32.gmra.mxu0 %v1160
          %v1644 = vpop.f32.mrf.mxu0
          %v1645 = vadd.f32 0.0, %v1644
          %v1646 = vpop.f32.mrf.mxu0
          %1647 = vmatprep.mubr.f32.mxu0 0.0
          %1648 = vmatmul.mubr.f32.gmra.mxu0 %v1163
          %v1649 = vpop.f32.mrf.mxu0
          %v1650 = vadd.f32 0.0, %v1649
          %v1651 = vpop.f32.mrf.mxu0
          %1652 = vmatprep.mubr.f32.mxu0 0.0
          %1653 = vmatmul.mubr.f32.gmra.mxu0 %v1166
          %v1654 = vpop.f32.mrf.mxu0
          %v1655 = vadd.f32 0.0, %v1654
          %v1656 = vpop.f32.mrf.mxu0
          %1657 = vmatprep.mubr.f32.mxu0 0.0
          %1658 = vmatmul.mubr.f32.gmra.mxu0 %v1169
          %v1659 = vpop.f32.mrf.mxu0
          %v1660 = vadd.f32 0.0, %v1659
          %v1661 = vpop.f32.mrf.mxu0
          %1662 = vmatprep.mubr.f32.mxu0 0.0
          %1663 = vmatmul.mubr.f32.gmra.mxu0 %v1172
          %v1664 = vpop.f32.mrf.mxu0
          %v1665 = vadd.f32 0.0, %v1664
          %v1666 = vpop.f32.mrf.mxu0
          %1667 = vmatprep.mubr.f32.mxu0 0.0
          %1668 = vmatmul.mubr.f32.gmra.mxu0 %v1175
          %v1669 = vpop.f32.mrf.mxu0
          %v1670 = vadd.f32 0.0, %v1669
          %v1671 = vpop.f32.mrf.mxu0
          %1672 = vmatprep.mubr.f32.mxu0 0.0
          %1673 = vmatmul.mubr.f32.gmra.mxu0 %v1178
          %v1674 = vpop.f32.mrf.mxu0
          %v1675 = vadd.f32 0.0, %v1674
          %v1676 = vpop.f32.mrf.mxu0
          %1677 = vmatprep.mubr.f32.mxu0 0.0
          %1678 = vmatmul.mubr.f32.gmra.mxu0 %v1181
          %v1679 = vpop.f32.mrf.mxu0
          %v1680 = vadd.f32 0.0, %v1679
          %v1681 = vpop.f32.mrf.mxu0
          %1682 = vmatprep.mubr.f32.mxu0 0.0
          %1683 = vmatmul.mubr.f32.gmra.mxu0 %v1184
          %v1684 = vpop.f32.mrf.mxu0
          %v1685 = vadd.f32 0.0, %v1684
          %v1686 = vpop.f32.mrf.mxu0
          %1687 = vmatprep.mubr.f32.mxu0 0.0
          %1688 = vmatmul.mubr.f32.gmra.mxu0 %v1187
          %v1689 = vpop.f32.mrf.mxu0
          %v1690 = vadd.f32 0.0, %v1689
          %v1691 = vpop.f32.mrf.mxu0
          %1692 = vmatprep.mubr.f32.mxu0 0.0
          %1693 = vmatmul.mubr.f32.gmra.mxu0 %v1190
          %v1694 = vpop.f32.mrf.mxu0
          %v1695 = vadd.f32 0.0, %v1694
          %v1696 = vpop.f32.mrf.mxu0
          %1697 = vmatprep.mubr.f32.mxu0 0.0
          %1698 = vmatmul.mubr.f32.gmra.mxu0 %v1193
          %v1699 = vpop.f32.mrf.mxu0
          %v1700 = vadd.f32 0.0, %v1699
          %v1701 = vpop.f32.mrf.mxu0
          %1702 = vmatprep.mubr.f32.mxu0 0.0
          %1703 = vmatmul.mubr.f32.gmra.mxu0 %v1196
          %v1704 = vpop.f32.mrf.mxu0
          %v1705 = vadd.f32 0.0, %v1704
          %v1706 = vpop.f32.mrf.mxu0
          %1707 = vmatprep.mubr.f32.mxu0 0.0
          %1708 = vmatmul.mubr.f32.gmra.mxu0 %v1199
          %v1709 = vpop.f32.mrf.mxu0
          %v1710 = vadd.f32 0.0, %v1709
          %v1711 = vpop.f32.mrf.mxu0
          %1712 = vdwg.mxu0
          %v1713 = vld [vmem:[%s6] sm:$0xff]
          %v1714 = vld [vmem:[%s6 + $0x8] sm:$0xff]
          %v1715 = vld [vmem:[%s6 + $0x10] sm:$0xff]
          %v1716 = vld [vmem:[%s6 + $0x18] sm:$0xff]
          %v1717 = vld [vmem:[%s6 + $0x20] sm:$0xff]
          %v1718 = vld [vmem:[%s6 + $0x28] sm:$0xff]
          %v1719 = vld [vmem:[%s6 + $0x30] sm:$0xff]
          %v1720 = vld [vmem:[%s6 + $0x38] sm:$0xff]
          %v1721 = vld [vmem:[%s6 + $0x40] sm:$0xff]
          %v1722 = vld [vmem:[%s6 + $0x48] sm:$0xff]
          %v1723 = vld [vmem:[%s6 + $0x50] sm:$0xff]
          %v1724 = vld [vmem:[%s6 + $0x58] sm:$0xff]
          %v1725 = vld [vmem:[%s6 + $0x60] sm:$0xff]
          %v1726 = vld [vmem:[%s6 + $0x68] sm:$0xff]
          %v1727 = vld [vmem:[%s6 + $0x70] sm:$0xff]
          %v1728 = vld [vmem:[%s6 + $0x78] sm:$0xff]
          %v1729 = vld [vmem:[%s7] sm:$0xff]
          %v1730 = vld [vmem:[%s7 + $0x8] sm:$0xff]
          %v1731 = vld [vmem:[%s7 + $0x10] sm:$0xff]
          %v1732 = vld [vmem:[%s7 + $0x18] sm:$0xff]
          %v1733 = vld [vmem:[%s7 + $0x20] sm:$0xff]
          %v1734 = vld [vmem:[%s7 + $0x28] sm:$0xff]
          %v1735 = vld [vmem:[%s7 + $0x30] sm:$0xff]
          %v1736 = vld [vmem:[%s7 + $0x38] sm:$0xff]
          %v1737 = vld [vmem:[%s7 + $0x40] sm:$0xff]
          %v1738 = vld [vmem:[%s7 + $0x48] sm:$0xff]
          %v1739 = vld [vmem:[%s7 + $0x50] sm:$0xff]
          %v1740 = vld [vmem:[%s7 + $0x58] sm:$0xff]
          %v1741 = vld [vmem:[%s7 + $0x60] sm:$0xff]
          %v1742 = vld [vmem:[%s7 + $0x68] sm:$0xff]
          %v1743 = vld [vmem:[%s7 + $0x70] sm:$0xff]
          %v1744 = vld [vmem:[%s7 + $0x78] sm:$0xff]
          %1745 = vmatprep.subr.mxu0 0.0
          %1746 = vmatpush1.msra.mxu0 %v1744
          %1747 = vmatprep.subr.mxu0 0.0
          %1748 = vmatpush1.msra.mxu0 %v1743
          %1749 = vmatprep.subr.mxu0 0.0
          %1750 = vmatpush1.msra.mxu0 %v1742
          %1751 = vmatprep.subr.mxu0 0.0
          %1752 = vmatpush1.msra.mxu0 %v1741
          %1753 = vmatprep.subr.mxu0 0.0
          %1754 = vmatpush1.msra.mxu0 %v1740
          %1755 = vmatprep.subr.mxu0 0.0
          %1756 = vmatpush1.msra.mxu0 %v1739
          %1757 = vmatprep.subr.mxu0 0.0
          %1758 = vmatpush1.msra.mxu0 %v1738
          %1759 = vmatprep.subr.mxu0 0.0
          %1760 = vmatpush1.msra.mxu0 %v1737
          %1761 = vmatprep.subr.mxu0 0.0
          %1762 = vmatpush1.msra.mxu0 %v1736
          %1763 = vmatprep.subr.mxu0 0.0
          %1764 = vmatpush1.msra.mxu0 %v1735
          %1765 = vmatprep.subr.mxu0 0.0
          %1766 = vmatpush1.msra.mxu0 %v1734
          %1767 = vmatprep.subr.mxu0 0.0
          %1768 = vmatpush1.msra.mxu0 %v1733
          %1769 = vmatprep.subr.mxu0 0.0
          %1770 = vmatpush1.msra.mxu0 %v1732
          %1771 = vmatprep.subr.mxu0 0.0
          %1772 = vmatpush1.msra.mxu0 %v1731
          %1773 = vmatprep.subr.mxu0 0.0
          %1774 = vmatpush1.msra.mxu0 %v1730
          %1775 = vmatprep.subr.mxu0 0.0
          %1776 = vmatpush1.msra.mxu0 %v1729
          %1777 = vmatprep.subr.mxu0 0.0
          %1778 = vmatpush2.msra.mxu0 0.0
          %1779 = vmatprep.subr.mxu0 0.0
          %1780 = vmatpush2.msra.mxu0 0.0
          %1781 = vmatprep.subr.mxu0 0.0
          %1782 = vmatpush2.msra.mxu0 0.0
          %1783 = vmatprep.subr.mxu0 0.0
          %1784 = vmatpush2.msra.mxu0 0.0
          %1785 = vmatprep.subr.mxu0 0.0
          %1786 = vmatpush2.msra.mxu0 0.0
          %1787 = vmatprep.subr.mxu0 0.0
          %1788 = vmatpush2.msra.mxu0 0.0
          %1789 = vmatprep.subr.mxu0 0.0
          %1790 = vmatpush2.msra.mxu0 0.0
          %1791 = vmatprep.subr.mxu0 0.0
          %1792 = vmatpush2.msra.mxu0 0.0
          %1793 = vmatprep.subr.mxu0 0.0
          %1794 = vmatpush2.msra.mxu0 0.0
          %1795 = vmatprep.subr.mxu0 0.0
          %1796 = vmatpush2.msra.mxu0 0.0
          %1797 = vmatprep.subr.mxu0 0.0
          %1798 = vmatpush2.msra.mxu0 0.0
          %1799 = vmatprep.subr.mxu0 0.0
          %1800 = vmatpush2.msra.mxu0 0.0
          %1801 = vmatprep.subr.mxu0 0.0
          %1802 = vmatpush2.msra.mxu0 0.0
          %1803 = vmatprep.subr.mxu0 0.0
          %1804 = vmatpush2.msra.mxu0 0.0
          %1805 = vmatprep.subr.mxu0 0.0
          %1806 = vmatpush2.msra.mxu0 0.0
          %1807 = vmatprep.subr.mxu0 0.0
          %1808 = vmatpush2.msra.mxu0 0.0
          %1809 = vmatprep.mubr.f32.mxu0 0.0
          %1810 = vmatmul.mubr.f32.gmra.mxu0 %v1635
          %v1811 = vpop.f32.mrf.mxu0
          %v1812 = vadd.f32 0.0, %v1811
          %v1813 = vpop.f32.mrf.mxu0
          %1814 = vmatprep.mubr.f32.mxu0 0.0
          %1815 = vmatmul.mubr.f32.gmra.mxu0 %v1640
          %v1816 = vpop.f32.mrf.mxu0
          %v1817 = vadd.f32 0.0, %v1816
          %v1818 = vpop.f32.mrf.mxu0
          %1819 = vmatprep.mubr.f32.mxu0 0.0
          %1820 = vmatmul.mubr.f32.gmra.mxu0 %v1645
          %v1821 = vpop.f32.mrf.mxu0
          %v1822 = vadd.f32 0.0, %v1821
          %v1823 = vpop.f32.mrf.mxu0
          %1824 = vmatprep.mubr.f32.mxu0 0.0
          %1825 = vmatmul.mubr.f32.gmra.mxu0 %v1650
          %v1826 = vpop.f32.mrf.mxu0
          %v1827 = vadd.f32 0.0, %v1826
          %v1828 = vpop.f32.mrf.mxu0
          %1829 = vmatprep.mubr.f32.mxu0 0.0
          %1830 = vmatmul.mubr.f32.gmra.mxu0 %v1655
          %v1831 = vpop.f32.mrf.mxu0
          %v1832 = vadd.f32 0.0, %v1831
          %v1833 = vpop.f32.mrf.mxu0
          %1834 = vmatprep.mubr.f32.mxu0 0.0
          %1835 = vmatmul.mubr.f32.gmra.mxu0 %v1660
          %v1836 = vpop.f32.mrf.mxu0
          %v1837 = vadd.f32 0.0, %v1836
          %v1838 = vpop.f32.mrf.mxu0
          %1839 = vmatprep.mubr.f32.mxu0 0.0
          %1840 = vmatmul.mubr.f32.gmra.mxu0 %v1665
          %v1841 = vpop.f32.mrf.mxu0
          %v1842 = vadd.f32 0.0, %v1841
          %v1843 = vpop.f32.mrf.mxu0
          %1844 = vmatprep.mubr.f32.mxu0 0.0
          %1845 = vmatmul.mubr.f32.gmra.mxu0 %v1670
          %v1846 = vpop.f32.mrf.mxu0
          %v1847 = vadd.f32 0.0, %v1846
          %v1848 = vpop.f32.mrf.mxu0
          %1849 = vmatprep.mubr.f32.mxu0 0.0
          %1850 = vmatmul.mubr.f32.gmra.mxu0 %v1675
          %v1851 = vpop.f32.mrf.mxu0
          %v1852 = vadd.f32 0.0, %v1851
          %v1853 = vpop.f32.mrf.mxu0
          %1854 = vmatprep.mubr.f32.mxu0 0.0
          %1855 = vmatmul.mubr.f32.gmra.mxu0 %v1680
          %v1856 = vpop.f32.mrf.mxu0
          %v1857 = vadd.f32 0.0, %v1856
          %v1858 = vpop.f32.mrf.mxu0
          %1859 = vmatprep.mubr.f32.mxu0 0.0
          %1860 = vmatmul.mubr.f32.gmra.mxu0 %v1685
          %v1861 = vpop.f32.mrf.mxu0
          %v1862 = vadd.f32 0.0, %v1861
          %v1863 = vpop.f32.mrf.mxu0
          %1864 = vmatprep.mubr.f32.mxu0 0.0
          %1865 = vmatmul.mubr.f32.gmra.mxu0 %v1690
          %v1866 = vpop.f32.mrf.mxu0
          %v1867 = vadd.f32 0.0, %v1866
          %v1868 = vpop.f32.mrf.mxu0
          %1869 = vmatprep.mubr.f32.mxu0 0.0
          %1870 = vmatmul.mubr.f32.gmra.mxu0 %v1695
          %v1871 = vpop.f32.mrf.mxu0
          %v1872 = vadd.f32 0.0, %v1871
          %v1873 = vpop.f32.mrf.mxu0
          %1874 = vmatprep.mubr.f32.mxu0 0.0
          %1875 = vmatmul.mubr.f32.gmra.mxu0 %v1700
          %v1876 = vpop.f32.mrf.mxu0
          %v1877 = vadd.f32 0.0, %v1876
          %v1878 = vpop.f32.mrf.mxu0
          %1879 = vmatprep.mubr.f32.mxu0 0.0
          %1880 = vmatmul.mubr.f32.gmra.mxu0 %v1705
          %v1881 = vpop.f32.mrf.mxu0
          %v1882 = vadd.f32 0.0, %v1881
          %v1883 = vpop.f32.mrf.mxu0
          %1884 = vmatprep.mubr.f32.mxu0 0.0
          %1885 = vmatmul.mubr.f32.gmra.mxu0 %v1710
          %v1886 = vpop.f32.mrf.mxu0
          %v1887 = vadd.f32 0.0, %v1886
          %v1888 = vpop.f32.mrf.mxu0
          %1889 = vdwg.mxu0
          %1890 = vmatprep.subr.mxu0 0.0
          %1891 = vmatpush1.msra.mxu0 %v1728
          %1892 = vmatprep.subr.mxu0 0.0
          %1893 = vmatpush1.msra.mxu0 %v1727
          %1894 = vmatprep.subr.mxu0 0.0
          %1895 = vmatpush1.msra.mxu0 %v1726
          %1896 = vmatprep.subr.mxu0 0.0
          %1897 = vmatpush1.msra.mxu0 %v1725
          %1898 = vmatprep.subr.mxu0 0.0
          %1899 = vmatpush1.msra.mxu0 %v1724
          %1900 = vmatprep.subr.mxu0 0.0
          %1901 = vmatpush1.msra.mxu0 %v1723
          %1902 = vmatprep.subr.mxu0 0.0
          %1903 = vmatpush1.msra.mxu0 %v1722
          %1904 = vmatprep.subr.mxu0 0.0
          %1905 = vmatpush1.msra.mxu0 %v1721
          %1906 = vmatprep.subr.mxu0 0.0
          %1907 = vmatpush1.msra.mxu0 %v1720
          %1908 = vmatprep.subr.mxu0 0.0
          %1909 = vmatpush1.msra.mxu0 %v1719
          %1910 = vmatprep.subr.mxu0 0.0
          %1911 = vmatpush1.msra.mxu0 %v1718
          %1912 = vmatprep.subr.mxu0 0.0
          %1913 = vmatpush1.msra.mxu0 %v1717
          %1914 = vmatprep.subr.mxu0 0.0
          %1915 = vmatpush1.msra.mxu0 %v1716
          %1916 = vmatprep.subr.mxu0 0.0
          %1917 = vmatpush1.msra.mxu0 %v1715
          %1918 = vmatprep.subr.mxu0 0.0
          %1919 = vmatpush1.msra.mxu0 %v1714
          %1920 = vmatprep.subr.mxu0 0.0
          %1921 = vmatpush1.msra.mxu0 %v1713
          %1922 = vmatprep.subr.mxu0 0.0
          %1923 = vmatpush2.msra.mxu0 0.0
          %1924 = vmatprep.subr.mxu0 0.0
          %1925 = vmatpush2.msra.mxu0 0.0
          %1926 = vmatprep.subr.mxu0 0.0
          %1927 = vmatpush2.msra.mxu0 0.0
          %1928 = vmatprep.subr.mxu0 0.0
          %1929 = vmatpush2.msra.mxu0 0.0
          %1930 = vmatprep.subr.mxu0 0.0
          %1931 = vmatpush2.msra.mxu0 0.0
          %1932 = vmatprep.subr.mxu0 0.0
          %1933 = vmatpush2.msra.mxu0 0.0
          %1934 = vmatprep.subr.mxu0 0.0
          %1935 = vmatpush2.msra.mxu0 0.0
          %1936 = vmatprep.subr.mxu0 0.0
          %1937 = vmatpush2.msra.mxu0 0.0
          %1938 = vmatprep.subr.mxu0 0.0
          %1939 = vmatpush2.msra.mxu0 0.0
          %1940 = vmatprep.subr.mxu0 0.0
          %1941 = vmatpush2.msra.mxu0 0.0
          %1942 = vmatprep.subr.mxu0 0.0
          %1943 = vmatpush2.msra.mxu0 0.0
          %1944 = vmatprep.subr.mxu0 0.0
          %1945 = vmatpush2.msra.mxu0 0.0
          %1946 = vmatprep.subr.mxu0 0.0
          %1947 = vmatpush2.msra.mxu0 0.0
          %1948 = vmatprep.subr.mxu0 0.0
          %1949 = vmatpush2.msra.mxu0 0.0
          %1950 = vmatprep.subr.mxu0 0.0
          %1951 = vmatpush2.msra.mxu0 0.0
          %1952 = vmatprep.subr.mxu0 0.0
          %1953 = vmatpush2.msra.mxu0 0.0
          %1954 = vmatprep.mubr.f32.mxu0 0.0
          %1955 = vmatmul.mubr.f32.gmra.mxu0 %v1490
          %v1956 = vpop.f32.mrf.mxu0
          %v1957 = vadd.f32 %v1812, %v1956
          %v1958 = vpop.f32.mrf.mxu0
          %1959 = vmatprep.mubr.f32.mxu0 0.0
          %1960 = vmatmul.mubr.f32.gmra.mxu0 %v1495
          %v1961 = vpop.f32.mrf.mxu0
          %v1962 = vadd.f32 %v1817, %v1961
          %v1963 = vpop.f32.mrf.mxu0
          %1964 = vmatprep.mubr.f32.mxu0 0.0
          %1965 = vmatmul.mubr.f32.gmra.mxu0 %v1500
          %v1966 = vpop.f32.mrf.mxu0
          %v1967 = vadd.f32 %v1822, %v1966
          %v1968 = vpop.f32.mrf.mxu0
          %1969 = vmatprep.mubr.f32.mxu0 0.0
          %1970 = vmatmul.mubr.f32.gmra.mxu0 %v1505
          %v1971 = vpop.f32.mrf.mxu0
          %v1972 = vadd.f32 %v1827, %v1971
          %v1973 = vpop.f32.mrf.mxu0
          %1974 = vmatprep.mubr.f32.mxu0 0.0
          %1975 = vmatmul.mubr.f32.gmra.mxu0 %v1510
          %v1976 = vpop.f32.mrf.mxu0
          %v1977 = vadd.f32 %v1832, %v1976
          %v1978 = vpop.f32.mrf.mxu0
          %1979 = vmatprep.mubr.f32.mxu0 0.0
          %1980 = vmatmul.mubr.f32.gmra.mxu0 %v1515
          %v1981 = vpop.f32.mrf.mxu0
          %v1982 = vadd.f32 %v1837, %v1981
          %v1983 = vpop.f32.mrf.mxu0
          %1984 = vmatprep.mubr.f32.mxu0 0.0
          %1985 = vmatmul.mubr.f32.gmra.mxu0 %v1520
          %v1986 = vpop.f32.mrf.mxu0
          %v1987 = vadd.f32 %v1842, %v1986
          %v1988 = vpop.f32.mrf.mxu0
          %1989 = vmatprep.mubr.f32.mxu0 0.0
          %1990 = vmatmul.mubr.f32.gmra.mxu0 %v1525
          %v1991 = vpop.f32.mrf.mxu0
          %v1992 = vadd.f32 %v1847, %v1991
          %v1993 = vpop.f32.mrf.mxu0
          %1994 = vmatprep.mubr.f32.mxu0 0.0
          %1995 = vmatmul.mubr.f32.gmra.mxu0 %v1530
          %v1996 = vpop.f32.mrf.mxu0
          %v1997 = vadd.f32 %v1852, %v1996
          %v1998 = vpop.f32.mrf.mxu0
          %1999 = vmatprep.mubr.f32.mxu0 0.0
          %2000 = vmatmul.mubr.f32.gmra.mxu0 %v1535
          %v2001 = vpop.f32.mrf.mxu0
          %v2002 = vadd.f32 %v1857, %v2001
          %v2003 = vpop.f32.mrf.mxu0
          %2004 = vmatprep.mubr.f32.mxu0 0.0
          %2005 = vmatmul.mubr.f32.gmra.mxu0 %v1540
          %v2006 = vpop.f32.mrf.mxu0
          %v2007 = vadd.f32 %v1862, %v2006
          %v2008 = vpop.f32.mrf.mxu0
          %2009 = vmatprep.mubr.f32.mxu0 0.0
          %2010 = vmatmul.mubr.f32.gmra.mxu0 %v1545
          %v2011 = vpop.f32.mrf.mxu0
          %v2012 = vadd.f32 %v1867, %v2011
          %v2013 = vpop.f32.mrf.mxu0
          %2014 = vmatprep.mubr.f32.mxu0 0.0
          %2015 = vmatmul.mubr.f32.gmra.mxu0 %v1550
          %v2016 = vpop.f32.mrf.mxu0
          %v2017 = vadd.f32 %v1872, %v2016
          %v2018 = vpop.f32.mrf.mxu0
          %2019 = vmatprep.mubr.f32.mxu0 0.0
          %2020 = vmatmul.mubr.f32.gmra.mxu0 %v1555
          %v2021 = vpop.f32.mrf.mxu0
          %v2022 = vadd.f32 %v1877, %v2021
          %v2023 = vpop.f32.mrf.mxu0
          %2024 = vmatprep.mubr.f32.mxu0 0.0
          %2025 = vmatmul.mubr.f32.gmra.mxu0 %v1560
          %v2026 = vpop.f32.mrf.mxu0
          %v2027 = vadd.f32 %v1882, %v2026
          %v2028 = vpop.f32.mrf.mxu0
          %2029 = vmatprep.mubr.f32.mxu0 0.0
          %2030 = vmatmul.mubr.f32.gmra.mxu0 %v1565
          %v2031 = vpop.f32.mrf.mxu0
          %v2032 = vadd.f32 %v1887, %v2031
          %v2033 = vpop.f32.mrf.mxu0
          %2034 = vdwg.mxu0
          %v2035 = vld [vmem:[%s8] sm:$0x1]
          %v2036 = vlaneseq
          %v2037 = vshrl.u32 %v2036, 7
          %v2038 = vsub.s32 0, %v2037
          %v2039 = vrot.slane %v2035, %v2038
          %v2040 = vmul.f32 %v1379, %v2039
          %v2041 = vmul.f32 %v1381, %v2039
          %v2042 = vmul.f32 %v1383, %v2039
          %v2043 = vmul.f32 %v1385, %v2039
          %v2044 = vmul.f32 %v1387, %v2039
          %v2045 = vmul.f32 %v1389, %v2039
          %v2046 = vmul.f32 %v1391, %v2039
          %v2047 = vmul.f32 %v1393, %v2039
          %v2048 = vmul.f32 %v1395, %v2039
          %v2049 = vmul.f32 %v1397, %v2039
          %v2050 = vmul.f32 %v1399, %v2039
          %v2051 = vmul.f32 %v1401, %v2039
          %v2052 = vmul.f32 %v1403, %v2039
          %v2053 = vmul.f32 %v1405, %v2039
          %v2054 = vmul.f32 %v1407, %v2039
          %v2055 = vmul.f32 %v1409, %v2039
          %v2056 = vadd.f32 %v1957, %v2040
          %v2057 = vadd.f32 %v1962, %v2041
          %v2058 = vadd.f32 %v1967, %v2042
          %v2059 = vadd.f32 %v1972, %v2043
          %v2060 = vadd.f32 %v1977, %v2044
          %v2061 = vadd.f32 %v1982, %v2045
          %v2062 = vadd.f32 %v1987, %v2046
          %v2063 = vadd.f32 %v1992, %v2047
          %v2064 = vadd.f32 %v1997, %v2048
          %v2065 = vadd.f32 %v2002, %v2049
          %v2066 = vadd.f32 %v2007, %v2050
          %v2067 = vadd.f32 %v2012, %v2051
          %v2068 = vadd.f32 %v2017, %v2052
          %v2069 = vadd.f32 %v2022, %v2053
          %v2070 = vadd.f32 %v2027, %v2054
          %v2071 = vadd.f32 %v2032, %v2055
          %v2072 = vld [vmem:[%s8 + $0x1] sm:$0x1]
          %2074 = vset.pattern.permute.xlu0 0
          %2075 = vperm.xlu0 %2074, %v941
          %v2076 = vpop.permute.xlu0 %2075
          %2079 = vset.pattern.permute.xlu0 0
          %2080 = vperm.xlu0 %2079, %v942
          %v2081 = vpop.permute.xlu0 %2080
          %2084 = vset.pattern.permute.xlu0 0
          %2085 = vperm.xlu0 %2084, %v943
          %v2086 = vpop.permute.xlu0 %2085
          %2089 = vset.pattern.permute.xlu0 0
          %2090 = vperm.xlu0 %2089, %v944
          %v2091 = vpop.permute.xlu0 %2090
          %2094 = vset.pattern.permute.xlu0 0
          %2095 = vperm.xlu0 %2094, %v945
          %v2096 = vpop.permute.xlu0 %2095
          %2099 = vset.pattern.permute.xlu0 0
          %2100 = vperm.xlu0 %2099, %v946
          %v2101 = vpop.permute.xlu0 %2100
          %2104 = vset.pattern.permute.xlu0 0
          %2105 = vperm.xlu0 %2104, %v947
          %v2106 = vpop.permute.xlu0 %2105
          %2109 = vset.pattern.permute.xlu0 0
          %2110 = vperm.xlu0 %2109, %v948
          %v2111 = vpop.permute.xlu0 %2110
          %2114 = vset.pattern.permute.xlu0 0
          %2115 = vperm.xlu0 %2114, %v949
          %v2116 = vpop.permute.xlu0 %2115
          %2119 = vset.pattern.permute.xlu0 0
          %2120 = vperm.xlu0 %2119, %v950
          %v2121 = vpop.permute.xlu0 %2120
          %2124 = vset.pattern.permute.xlu0 0
          %2125 = vperm.xlu0 %2124, %v951
          %v2126 = vpop.permute.xlu0 %2125
          %2129 = vset.pattern.permute.xlu0 0
          %2130 = vperm.xlu0 %2129, %v952
          %v2131 = vpop.permute.xlu0 %2130
          %2134 = vset.pattern.permute.xlu0 0
          %2135 = vperm.xlu0 %2134, %v953
          %v2136 = vpop.permute.xlu0 %2135
          %2139 = vset.pattern.permute.xlu0 0
          %2140 = vperm.xlu0 %2139, %v954
          %v2141 = vpop.permute.xlu0 %2140
          %2144 = vset.pattern.permute.xlu0 0
          %2145 = vperm.xlu0 %2144, %v955
          %v2146 = vpop.permute.xlu0 %2145
          %2149 = vset.pattern.permute.xlu0 0
          %2150 = vperm.xlu0 %2149, %v956
          %v2151 = vpop.permute.xlu0 %2150
          %v2153 = vlaneseq
          %v2154 = vshrl.u32 %v2153, 7
          %v2155 = vsub.s32 0, %v2154
          %v2156 = vrot.slane %v2072, %v2155
          %v2157 = vmul.f32 %v2076, %v2156
          %v2158 = vmul.f32 %v2081, %v2156
          %v2159 = vmul.f32 %v2086, %v2156
          %v2160 = vmul.f32 %v2091, %v2156
          %v2161 = vmul.f32 %v2096, %v2156
          %v2162 = vmul.f32 %v2101, %v2156
          %v2163 = vmul.f32 %v2106, %v2156
          %v2164 = vmul.f32 %v2111, %v2156
          %v2165 = vmul.f32 %v2116, %v2156
          %v2166 = vmul.f32 %v2121, %v2156
          %v2167 = vmul.f32 %v2126, %v2156
          %v2168 = vmul.f32 %v2131, %v2156
          %v2169 = vmul.f32 %v2136, %v2156
          %v2170 = vmul.f32 %v2141, %v2156
          %v2171 = vmul.f32 %v2146, %v2156
          %v2172 = vmul.f32 %v2151, %v2156
          %v2173 = vadd.f32 %v2056, %v2157
          %v2174 = vadd.f32 %v2057, %v2158
          %v2175 = vadd.f32 %v2058, %v2159
          %v2176 = vadd.f32 %v2059, %v2160
          %v2177 = vadd.f32 %v2060, %v2161
          %v2178 = vadd.f32 %v2061, %v2162
          %v2179 = vadd.f32 %v2062, %v2163
          %v2180 = vadd.f32 %v2063, %v2164
          %v2181 = vadd.f32 %v2064, %v2165
          %v2182 = vadd.f32 %v2065, %v2166
          %v2183 = vadd.f32 %v2066, %v2167
          %v2184 = vadd.f32 %v2067, %v2168
          %v2185 = vadd.f32 %v2068, %v2169
          %v2186 = vadd.f32 %v2069, %v2170
          %v2187 = vadd.f32 %v2070, %v2171
          %v2188 = vadd.f32 %v2071, %v2172
          %v2189 = vld [vmem:[%s9] sm:$0x1]
          %v2191 = vlaneseq
          %v2192 = vshrl.u32 %v2191, 7
          %v2193 = vsub.s32 0, %v2192
          %v2194 = vrot.slane %v2189, %v2193
          %v2196 = vadd.f32 %v2173, %v2194
          %v2197 = vadd.f32 %v2174, %v2194
          %v2198 = vadd.f32 %v2175, %v2194
          %v2199 = vadd.f32 %v2176, %v2194
          %v2200 = vadd.f32 %v2177, %v2194
          %v2201 = vadd.f32 %v2178, %v2194
          %v2202 = vadd.f32 %v2179, %v2194
          %v2203 = vadd.f32 %v2180, %v2194
          %v2204 = vadd.f32 %v2181, %v2194
          %v2205 = vadd.f32 %v2182, %v2194
          %v2206 = vadd.f32 %v2183, %v2194
          %v2207 = vadd.f32 %v2184, %v2194
          %v2208 = vadd.f32 %v2185, %v2194
          %v2209 = vadd.f32 %v2186, %v2194
          %v2210 = vadd.f32 %v2187, %v2194
          %v2211 = vadd.f32 %v2188, %v2194
          %v2212 = vxor.u32 %v2196, 2147483648
          %v2213 = vxor.u32 %v2197, 2147483648
          %v2214 = vxor.u32 %v2198, 2147483648
          %v2215 = vxor.u32 %v2199, 2147483648
          %v2216 = vxor.u32 %v2200, 2147483648
          %v2217 = vxor.u32 %v2201, 2147483648
          %v2218 = vxor.u32 %v2202, 2147483648
          %v2219 = vxor.u32 %v2203, 2147483648
          %v2220 = vxor.u32 %v2204, 2147483648
          %v2221 = vxor.u32 %v2205, 2147483648
          %v2222 = vxor.u32 %v2206, 2147483648
          %v2223 = vxor.u32 %v2207, 2147483648
          %v2224 = vxor.u32 %v2208, 2147483648
          %v2225 = vxor.u32 %v2209, 2147483648
          %v2226 = vxor.u32 %v2210, 2147483648
          %v2227 = vxor.u32 %v2211, 2147483648
          %v2228 = vmul.f32 %v2212, 1.442695
          %v2229 = vpow.pop %v2228
          %v2230 = vmul.f32 %v2213, 1.442695
          %v2231 = vpow.pop %v2230
          %v2232 = vmul.f32 %v2214, 1.442695
          %v2233 = vpow.pop %v2232
          %v2234 = vmul.f32 %v2215, 1.442695
          %v2235 = vpow.pop %v2234
          %v2236 = vmul.f32 %v2216, 1.442695
          %v2237 = vpow.pop %v2236
          %v2238 = vmul.f32 %v2217, 1.442695
          %v2239 = vpow.pop %v2238
          %v2240 = vmul.f32 %v2218, 1.442695
          %v2241 = vpow.pop %v2240
          %v2242 = vmul.f32 %v2219, 1.442695
          %v2243 = vpow.pop %v2242
          %v2244 = vmul.f32 %v2220, 1.442695
          %v2245 = vpow.pop %v2244
          %v2246 = vmul.f32 %v2221, 1.442695
          %v2247 = vpow.pop %v2246
          %v2248 = vmul.f32 %v2222, 1.442695
          %v2249 = vpow.pop %v2248
          %v2250 = vmul.f32 %v2223, 1.442695
          %v2251 = vpow.pop %v2250
          %v2252 = vmul.f32 %v2224, 1.442695
          %v2253 = vpow.pop %v2252
          %v2254 = vmul.f32 %v2225, 1.442695
          %v2255 = vpow.pop %v2254
          %v2256 = vmul.f32 %v2226, 1.442695
          %v2257 = vpow.pop %v2256
          %v2258 = vmul.f32 %v2227, 1.442695
          %v2259 = vpow.pop %v2258
          %v2260 = vadd.f32 %v2229, 1.0
          %v2261 = vadd.f32 %v2231, 1.0
          %v2262 = vadd.f32 %v2233, 1.0
          %v2263 = vadd.f32 %v2235, 1.0
          %v2264 = vadd.f32 %v2237, 1.0
          %v2265 = vadd.f32 %v2239, 1.0
          %v2266 = vadd.f32 %v2241, 1.0
          %v2267 = vadd.f32 %v2243, 1.0
          %v2268 = vadd.f32 %v2245, 1.0
          %v2269 = vadd.f32 %v2247, 1.0
          %v2270 = vadd.f32 %v2249, 1.0
          %v2271 = vadd.f32 %v2251, 1.0
          %v2272 = vadd.f32 %v2253, 1.0
          %v2273 = vadd.f32 %v2255, 1.0
          %v2274 = vadd.f32 %v2257, 1.0
          %v2275 = vadd.f32 %v2259, 1.0
          %v2276 = vrcp.pop %v2260
          %v2277 = vmul.f32 1.0, %v2276
          %v2278 = vrcp.pop %v2261
          %v2279 = vmul.f32 1.0, %v2278
          %v2280 = vrcp.pop %v2262
          %v2281 = vmul.f32 1.0, %v2280
          %v2282 = vrcp.pop %v2263
          %v2283 = vmul.f32 1.0, %v2282
          %v2284 = vrcp.pop %v2264
          %v2285 = vmul.f32 1.0, %v2284
          %v2286 = vrcp.pop %v2265
          %v2287 = vmul.f32 1.0, %v2286
          %v2288 = vrcp.pop %v2266
          %v2289 = vmul.f32 1.0, %v2288
          %v2290 = vrcp.pop %v2267
          %v2291 = vmul.f32 1.0, %v2290
          %v2292 = vrcp.pop %v2268
          %v2293 = vmul.f32 1.0, %v2292
          %v2294 = vrcp.pop %v2269
          %v2295 = vmul.f32 1.0, %v2294
          %v2296 = vrcp.pop %v2270
          %v2297 = vmul.f32 1.0, %v2296
          %v2298 = vrcp.pop %v2271
          %v2299 = vmul.f32 1.0, %v2298
          %v2300 = vrcp.pop %v2272
          %v2301 = vmul.f32 1.0, %v2300
          %v2302 = vrcp.pop %v2273
          %v2303 = vmul.f32 1.0, %v2302
          %v2304 = vrcp.pop %v2274
          %v2305 = vmul.f32 1.0, %v2304
          %v2306 = vrcp.pop %v2275
          %v2307 = vmul.f32 1.0, %v2306
          %v2308 = vmul.f32 %v2196, %v2277
          %v2309 = vmul.f32 %v2197, %v2279
          %v2310 = vmul.f32 %v2198, %v2281
          %v2311 = vmul.f32 %v2199, %v2283
          %v2312 = vmul.f32 %v2200, %v2285
          %v2313 = vmul.f32 %v2201, %v2287
          %v2314 = vmul.f32 %v2202, %v2289
          %v2315 = vmul.f32 %v2203, %v2291
          %v2316 = vmul.f32 %v2204, %v2293
          %v2317 = vmul.f32 %v2205, %v2295
          %v2318 = vmul.f32 %v2206, %v2297
          %v2319 = vmul.f32 %v2207, %v2299
          %v2320 = vmul.f32 %v2208, %v2301
          %v2321 = vmul.f32 %v2209, %v2303
          %v2322 = vmul.f32 %v2210, %v2305
          %v2323 = vmul.f32 %v2211, %v2307
          %v2324 = vld [vmem:[%s10] sm:$0xff]
          %v2325 = vld [vmem:[%s10 + $0x8] sm:$0xff]
          %v2326 = vld [vmem:[%s10 + $0x10] sm:$0xff]
          %v2327 = vld [vmem:[%s10 + $0x18] sm:$0xff]
          %v2328 = vld [vmem:[%s11] sm:$0x1]
          %v2330 = vlaneseq
          %v2331 = vshrl.u32 %v2330, 7
          %v2332 = vsub.s32 0, %v2331
          %v2333 = vrot.slane %v2328, %v2332
          %vm2335 = vcmask 261120
          %v2337 = vsel %vm2335, %v2308, 0
          %v2340 = vsel %vm2335, %v2309, 0
          %v2343 = vsel %vm2335, %v2310, 0
          %v2346 = vsel %vm2335, %v2311, 0
          %v2349 = vsel %vm2335, %v2312, 0
          %v2352 = vsel %vm2335, %v2313, 0
          %v2355 = vsel %vm2335, %v2314, 0
          %v2358 = vsel %vm2335, %v2315, 0
          %v2361 = vsel %vm2335, %v2316, 0
          %v2364 = vsel %vm2335, %v2317, 0
          %v2367 = vsel %vm2335, %v2318, 0
          %v2370 = vsel %vm2335, %v2319, 0
          %v2373 = vsel %vm2335, %v2320, 0
          %v2376 = vsel %vm2335, %v2321, 0
          %v2379 = vsel %vm2335, %v2322, 0
          %v2382 = vsel %vm2335, %v2323, 0
          %2384 = vmatprep.subr.mxu0 0.0
          %2385 = vmatpush1.msra.mxu0 0.0
          %2386 = vmatprep.subr.mxu0 0.0
          %2387 = vmatpush1.msra.mxu0 0.0
          %2388 = vmatprep.subr.mxu0 0.0
          %2389 = vmatpush1.msra.mxu0 0.0
          %2390 = vmatprep.subr.mxu0 0.0
          %2391 = vmatpush1.msra.mxu0 0.0
          %2392 = vmatprep.subr.mxu0 0.0
          %2393 = vmatpush1.msra.mxu0 0.0
          %2394 = vmatprep.subr.mxu0 0.0
          %2395 = vmatpush1.msra.mxu0 0.0
          %2396 = vmatprep.subr.mxu0 0.0
          %2397 = vmatpush1.msra.mxu0 0.0
          %2398 = vmatprep.subr.mxu0 0.0
          %2399 = vmatpush1.msra.mxu0 0.0
          %2400 = vmatprep.subr.mxu0 0.0
          %2401 = vmatpush1.msra.mxu0 0.0
          %2402 = vmatprep.subr.mxu0 0.0
          %2403 = vmatpush1.msra.mxu0 0.0
          %2404 = vmatprep.subr.mxu0 0.0
          %2405 = vmatpush1.msra.mxu0 0.0
          %2406 = vmatprep.subr.mxu0 0.0
          %2407 = vmatpush1.msra.mxu0 0.0
          %2408 = vmatprep.subr.mxu0 0.0
          %2409 = vmatpush1.msra.mxu0 %v2327
          %2410 = vmatprep.subr.mxu0 0.0
          %2411 = vmatpush1.msra.mxu0 %v2326
          %2412 = vmatprep.subr.mxu0 0.0
          %2413 = vmatpush1.msra.mxu0 %v2325
          %2414 = vmatprep.subr.mxu0 0.0
          %2415 = vmatpush1.msra.mxu0 %v2324
          %2416 = vmatprep.subr.mxu0 0.0
          %2417 = vmatpush2.msra.mxu0 0.0
          %2418 = vmatprep.subr.mxu0 0.0
          %2419 = vmatpush2.msra.mxu0 0.0
          %2420 = vmatprep.subr.mxu0 0.0
          %2421 = vmatpush2.msra.mxu0 0.0
          %2422 = vmatprep.subr.mxu0 0.0
          %2423 = vmatpush2.msra.mxu0 0.0
          %2424 = vmatprep.subr.mxu0 0.0
          %2425 = vmatpush2.msra.mxu0 0.0
          %2426 = vmatprep.subr.mxu0 0.0
          %2427 = vmatpush2.msra.mxu0 0.0
          %2428 = vmatprep.subr.mxu0 0.0
          %2429 = vmatpush2.msra.mxu0 0.0
          %2430 = vmatprep.subr.mxu0 0.0
          %2431 = vmatpush2.msra.mxu0 0.0
          %2432 = vmatprep.subr.mxu0 0.0
          %2433 = vmatpush2.msra.mxu0 0.0
          %2434 = vmatprep.subr.mxu0 0.0
          %2435 = vmatpush2.msra.mxu0 0.0
          %2436 = vmatprep.subr.mxu0 0.0
          %2437 = vmatpush2.msra.mxu0 0.0
          %2438 = vmatprep.subr.mxu0 0.0
          %2439 = vmatpush2.msra.mxu0 0.0
          %2440 = vmatprep.subr.mxu0 0.0
          %2441 = vmatpush2.msra.mxu0 0.0
          %2442 = vmatprep.subr.mxu0 0.0
          %2443 = vmatpush2.msra.mxu0 0.0
          %2444 = vmatprep.subr.mxu0 0.0
          %2445 = vmatpush2.msra.mxu0 0.0
          %2446 = vmatprep.subr.mxu0 0.0
          %2447 = vmatpush2.msra.mxu0 0.0
          %2448 = vmatprep.mubr.f32.mxu0 0.0
          %2449 = vmatmul.mubr.f32.gmra.mxu0 %v2337
          %v2450 = vpop.f32.mrf.mxu0
          %v2451 = vadd.f32 %v2333, %v2450
          %v2452 = vpop.f32.mrf.mxu0
          %2453 = vmatprep.mubr.f32.mxu0 0.0
          %2454 = vmatmul.mubr.f32.gmra.mxu0 %v2340
          %v2455 = vpop.f32.mrf.mxu0
          %v2456 = vadd.f32 %v2333, %v2455
          %v2457 = vpop.f32.mrf.mxu0
          %2458 = vmatprep.mubr.f32.mxu0 0.0
          %2459 = vmatmul.mubr.f32.gmra.mxu0 %v2343
          %v2460 = vpop.f32.mrf.mxu0
          %v2461 = vadd.f32 %v2333, %v2460
          %v2462 = vpop.f32.mrf.mxu0
          %2463 = vmatprep.mubr.f32.mxu0 0.0
          %2464 = vmatmul.mubr.f32.gmra.mxu0 %v2346
          %v2465 = vpop.f32.mrf.mxu0
          %v2466 = vadd.f32 %v2333, %v2465
          %v2467 = vpop.f32.mrf.mxu0
          %2468 = vmatprep.mubr.f32.mxu0 0.0
          %2469 = vmatmul.mubr.f32.gmra.mxu0 %v2349
          %v2470 = vpop.f32.mrf.mxu0
          %v2471 = vadd.f32 %v2333, %v2470
          %v2472 = vpop.f32.mrf.mxu0
          %2473 = vmatprep.mubr.f32.mxu0 0.0
          %2474 = vmatmul.mubr.f32.gmra.mxu0 %v2352
          %v2475 = vpop.f32.mrf.mxu0
          %v2476 = vadd.f32 %v2333, %v2475
          %v2477 = vpop.f32.mrf.mxu0
          %2478 = vmatprep.mubr.f32.mxu0 0.0
          %2479 = vmatmul.mubr.f32.gmra.mxu0 %v2355
          %v2480 = vpop.f32.mrf.mxu0
          %v2481 = vadd.f32 %v2333, %v2480
          %v2482 = vpop.f32.mrf.mxu0
          %2483 = vmatprep.mubr.f32.mxu0 0.0
          %2484 = vmatmul.mubr.f32.gmra.mxu0 %v2358
          %v2485 = vpop.f32.mrf.mxu0
          %v2486 = vadd.f32 %v2333, %v2485
          %v2487 = vpop.f32.mrf.mxu0
          %2488 = vmatprep.mubr.f32.mxu0 0.0
          %2489 = vmatmul.mubr.f32.gmra.mxu0 %v2361
          %v2490 = vpop.f32.mrf.mxu0
          %v2491 = vadd.f32 %v2333, %v2490
          %v2492 = vpop.f32.mrf.mxu0
          %2493 = vmatprep.mubr.f32.mxu0 0.0
          %2494 = vmatmul.mubr.f32.gmra.mxu0 %v2364
          %v2495 = vpop.f32.mrf.mxu0
          %v2496 = vadd.f32 %v2333, %v2495
          %v2497 = vpop.f32.mrf.mxu0
          %2498 = vmatprep.mubr.f32.mxu0 0.0
          %2499 = vmatmul.mubr.f32.gmra.mxu0 %v2367
          %v2500 = vpop.f32.mrf.mxu0
          %v2501 = vadd.f32 %v2333, %v2500
          %v2502 = vpop.f32.mrf.mxu0
          %2503 = vmatprep.mubr.f32.mxu0 0.0
          %2504 = vmatmul.mubr.f32.gmra.mxu0 %v2370
          %v2505 = vpop.f32.mrf.mxu0
          %v2506 = vadd.f32 %v2333, %v2505
          %v2507 = vpop.f32.mrf.mxu0
          %2508 = vmatprep.mubr.f32.mxu0 0.0
          %2509 = vmatmul.mubr.f32.gmra.mxu0 %v2373
          %v2510 = vpop.f32.mrf.mxu0
          %v2511 = vadd.f32 %v2333, %v2510
          %v2512 = vpop.f32.mrf.mxu0
          %2513 = vmatprep.mubr.f32.mxu0 0.0
          %2514 = vmatmul.mubr.f32.gmra.mxu0 %v2376
          %v2515 = vpop.f32.mrf.mxu0
          %v2516 = vadd.f32 %v2333, %v2515
          %v2517 = vpop.f32.mrf.mxu0
          %2518 = vmatprep.mubr.f32.mxu0 0.0
          %2519 = vmatmul.mubr.f32.gmra.mxu0 %v2379
          %v2520 = vpop.f32.mrf.mxu0
          %v2521 = vadd.f32 %v2333, %v2520
          %v2522 = vpop.f32.mrf.mxu0
          %2523 = vmatprep.mubr.f32.mxu0 0.0
          %2524 = vmatmul.mubr.f32.gmra.mxu0 %v2382
          %v2525 = vpop.f32.mrf.mxu0
          %v2526 = vadd.f32 %v2333, %v2525
          %v2527 = vpop.f32.mrf.mxu0
          %2528 = vdwg.mxu0
          %v2529 = vxor.u32 %v2451, 2147483648
          %v2530 = vxor.u32 %v2456, 2147483648
          %v2531 = vxor.u32 %v2461, 2147483648
          %v2532 = vxor.u32 %v2466, 2147483648
          %v2533 = vxor.u32 %v2471, 2147483648
          %v2534 = vxor.u32 %v2476, 2147483648
          %v2535 = vxor.u32 %v2481, 2147483648
          %v2536 = vxor.u32 %v2486, 2147483648
          %v2537 = vxor.u32 %v2491, 2147483648
          %v2538 = vxor.u32 %v2496, 2147483648
          %v2539 = vxor.u32 %v2501, 2147483648
          %v2540 = vxor.u32 %v2506, 2147483648
          %v2541 = vxor.u32 %v2511, 2147483648
          %v2542 = vxor.u32 %v2516, 2147483648
          %v2543 = vxor.u32 %v2521, 2147483648
          %v2544 = vxor.u32 %v2526, 2147483648
          %v2545 = vmul.f32 %v2529, 1.442695
          %v2546 = vpow.pop %v2545
          %v2547 = vmul.f32 %v2530, 1.442695
          %v2548 = vpow.pop %v2547
          %v2549 = vmul.f32 %v2531, 1.442695
          %v2550 = vpow.pop %v2549
          %v2551 = vmul.f32 %v2532, 1.442695
          %v2552 = vpow.pop %v2551
          %v2553 = vmul.f32 %v2533, 1.442695
          %v2554 = vpow.pop %v2553
          %v2555 = vmul.f32 %v2534, 1.442695
          %v2556 = vpow.pop %v2555
          %v2557 = vmul.f32 %v2535, 1.442695
          %v2558 = vpow.pop %v2557
          %v2559 = vmul.f32 %v2536, 1.442695
          %v2560 = vpow.pop %v2559
          %v2561 = vmul.f32 %v2537, 1.442695
          %v2562 = vpow.pop %v2561
          %v2563 = vmul.f32 %v2538, 1.442695
          %v2564 = vpow.pop %v2563
          %v2565 = vmul.f32 %v2539, 1.442695
          %v2566 = vpow.pop %v2565
          %v2567 = vmul.f32 %v2540, 1.442695
          %v2568 = vpow.pop %v2567
          %v2569 = vmul.f32 %v2541, 1.442695
          %v2570 = vpow.pop %v2569
          %v2571 = vmul.f32 %v2542, 1.442695
          %v2572 = vpow.pop %v2571
          %v2573 = vmul.f32 %v2543, 1.442695
          %v2574 = vpow.pop %v2573
          %v2575 = vmul.f32 %v2544, 1.442695
          %v2576 = vpow.pop %v2575
          %v2577 = vadd.f32 %v2546, 1.0
          %v2578 = vadd.f32 %v2548, 1.0
          %v2579 = vadd.f32 %v2550, 1.0
          %v2580 = vadd.f32 %v2552, 1.0
          %v2581 = vadd.f32 %v2554, 1.0
          %v2582 = vadd.f32 %v2556, 1.0
          %v2583 = vadd.f32 %v2558, 1.0
          %v2584 = vadd.f32 %v2560, 1.0
          %v2585 = vadd.f32 %v2562, 1.0
          %v2586 = vadd.f32 %v2564, 1.0
          %v2587 = vadd.f32 %v2566, 1.0
          %v2588 = vadd.f32 %v2568, 1.0
          %v2589 = vadd.f32 %v2570, 1.0
          %v2590 = vadd.f32 %v2572, 1.0
          %v2591 = vadd.f32 %v2574, 1.0
          %v2592 = vadd.f32 %v2576, 1.0
          %v2593 = vrcp.pop %v2577
          %v2594 = vmul.f32 1.0, %v2593
          %v2595 = vrcp.pop %v2578
          %v2596 = vmul.f32 1.0, %v2595
          %v2597 = vrcp.pop %v2579
          %v2598 = vmul.f32 1.0, %v2597
          %v2599 = vrcp.pop %v2580
          %v2600 = vmul.f32 1.0, %v2599
          %v2601 = vrcp.pop %v2581
          %v2602 = vmul.f32 1.0, %v2601
          %v2603 = vrcp.pop %v2582
          %v2604 = vmul.f32 1.0, %v2603
          %v2605 = vrcp.pop %v2583
          %v2606 = vmul.f32 1.0, %v2605
          %v2607 = vrcp.pop %v2584
          %v2608 = vmul.f32 1.0, %v2607
          %v2609 = vrcp.pop %v2585
          %v2610 = vmul.f32 1.0, %v2609
          %v2611 = vrcp.pop %v2586
          %v2612 = vmul.f32 1.0, %v2611
          %v2613 = vrcp.pop %v2587
          %v2614 = vmul.f32 1.0, %v2613
          %v2615 = vrcp.pop %v2588
          %v2616 = vmul.f32 1.0, %v2615
          %v2617 = vrcp.pop %v2589
          %v2618 = vmul.f32 1.0, %v2617
          %v2619 = vrcp.pop %v2590
          %v2620 = vmul.f32 1.0, %v2619
          %v2621 = vrcp.pop %v2591
          %v2622 = vmul.f32 1.0, %v2621
          %v2623 = vrcp.pop %v2592
          %v2624 = vmul.f32 1.0, %v2623
          %v2625 = vmul.f32 %v2451, %v2594
          %v2626 = vmul.f32 %v2456, %v2596
          %v2627 = vmul.f32 %v2461, %v2598
          %v2628 = vmul.f32 %v2466, %v2600
          %v2629 = vmul.f32 %v2471, %v2602
          %v2630 = vmul.f32 %v2476, %v2604
          %v2631 = vmul.f32 %v2481, %v2606
          %v2632 = vmul.f32 %v2486, %v2608
          %v2633 = vmul.f32 %v2491, %v2610
          %v2634 = vmul.f32 %v2496, %v2612
          %v2635 = vmul.f32 %v2501, %v2614
          %v2636 = vmul.f32 %v2506, %v2616
          %v2637 = vmul.f32 %v2511, %v2618
          %v2638 = vmul.f32 %v2516, %v2620
          %v2639 = vmul.f32 %v2521, %v2622
          %v2640 = vmul.f32 %v2526, %v2624
          %2641 = vmatprep.subr.mxu0 0.0
          %2642 = vmatpush1.msra.mxu0 %v2640
          %2643 = vmatprep.subr.mxu0 0.0
          %2644 = vmatpush1.msra.mxu0 %v2639
          %2645 = vmatprep.subr.mxu0 0.0
          %2646 = vmatpush1.msra.mxu0 %v2638
          %2647 = vmatprep.subr.mxu0 0.0
          %2648 = vmatpush1.msra.mxu0 %v2637
          %2649 = vmatprep.subr.mxu0 0.0
          %2650 = vmatpush1.msra.mxu0 %v2636
          %2651 = vmatprep.subr.mxu0 0.0
          %2652 = vmatpush1.msra.mxu0 %v2635
          %2653 = vmatprep.subr.mxu0 0.0
          %2654 = vmatpush1.msra.mxu0 %v2634
          %2655 = vmatprep.subr.mxu0 0.0
          %2656 = vmatpush1.msra.mxu0 %v2633
          %2657 = vmatprep.subr.mxu0 0.0
          %2658 = vmatpush1.msra.mxu0 %v2632
          %2659 = vmatprep.subr.mxu0 0.0
          %2660 = vmatpush1.msra.mxu0 %v2631
          %2661 = vmatprep.subr.mxu0 0.0
          %2662 = vmatpush1.msra.mxu0 %v2630
          %2663 = vmatprep.subr.mxu0 0.0
          %2664 = vmatpush1.msra.mxu0 %v2629
          %2665 = vmatprep.subr.mxu0 0.0
          %2666 = vmatpush1.msra.mxu0 %v2628
          %2667 = vmatprep.subr.mxu0 0.0
          %2668 = vmatpush1.msra.mxu0 %v2627
          %2669 = vmatprep.subr.mxu0 0.0
          %2670 = vmatpush1.msra.mxu0 %v2626
          %2671 = vmatprep.subr.mxu0 0.0
          %2672 = vmatpush1.msra.mxu0 %v2625
          %2673 = vmatprep.subr.mxu0 0.0
          %2674 = vmatpush2.msra.mxu0 0.0
          %2675 = vmatprep.subr.mxu0 0.0
          %2676 = vmatpush2.msra.mxu0 0.0
          %2677 = vmatprep.subr.mxu0 0.0
          %2678 = vmatpush2.msra.mxu0 0.0
          %2679 = vmatprep.subr.mxu0 0.0
          %2680 = vmatpush2.msra.mxu0 0.0
          %2681 = vmatprep.subr.mxu0 0.0
          %2682 = vmatpush2.msra.mxu0 0.0
          %2683 = vmatprep.subr.mxu0 0.0
          %2684 = vmatpush2.msra.mxu0 0.0
          %2685 = vmatprep.subr.mxu0 0.0
          %2686 = vmatpush2.msra.mxu0 0.0
          %2687 = vmatprep.subr.mxu0 0.0
          %2688 = vmatpush2.msra.mxu0 0.0
          %2689 = vmatprep.subr.mxu0 0.0
          %2690 = vmatpush2.msra.mxu0 0.0
          %2691 = vmatprep.subr.mxu0 0.0
          %2692 = vmatpush2.msra.mxu0 0.0
          %2693 = vmatprep.subr.mxu0 0.0
          %2694 = vmatpush2.msra.mxu0 0.0
          %2695 = vmatprep.subr.mxu0 0.0
          %2696 = vmatpush2.msra.mxu0 0.0
          %2697 = vmatprep.subr.mxu0 0.0
          %2698 = vmatpush2.msra.mxu0 0.0
          %2699 = vmatprep.subr.mxu0 0.0
          %2700 = vmatpush2.msra.mxu0 0.0
          %2701 = vmatprep.subr.mxu0 0.0
          %2702 = vmatpush2.msra.mxu0 0.0
          %2703 = vmatprep.subr.mxu0 0.0
          %2704 = vmatpush2.msra.mxu0 0.0
          %2705 = vmatprep.mubr.f32.mxu0 0.0
          %2706 = vmatmul.mubr.f32.gmra.mxu0 %v939
          %v2707 = vpop.f32.mrf.mxu0
          %v2708 = vadd.f32 0.0, %v2707
          %v2709 = vpop.f32.mrf.mxu0
          %2710 = vmatprep.mubr.f32.mxu0 0.0
          %2711 = vmatmul.mubr.f32.gmra.mxu0 %v940
          %v2712 = vpop.f32.mrf.mxu0
          %v2713 = vadd.f32 0.0, %v2712
          %v2714 = vpop.f32.mrf.mxu0
          %2715 = vdwg.mxu0
          %v2716 = vld [vmem:[#allocation2] sm:$0xff]
          %v2717 = vld [vmem:[#allocation2 + $0x8] sm:$0xff]
          %v2718 = vadd.f32 %v2716, %v2708
          %v2719 = vadd.f32 %v2717, %v2713
          %2720 = vst.msk [vmem:[#allocation2] sm:$0xff] %vm2335, %v2718
          %2721 = vst.msk [vmem:[#allocation2 + $0x8] sm:$0xff] %vm2335, %v2719
          %p2722 = scmp.eq.s32.totalorder %s42, 1
          // Predicated region
          $region166: #{egnn_forward.3} parent=160 // pred_check
            %p2723 = pneg %p2722
          $region167: #{egnn_forward.3} parent=160 // pred_check_branch
            %2725 = sbr.rel (%p2723) target = $region169
          $region168: #{egnn_forward.3} parent=160 // pred_region
            %v2726 = vld [vmem:[%s0] sm:$0xff]
            %v2727 = vld [vmem:[%s0 + $0x8] sm:$0xff]
            %v2728 = vld [vmem:[%s12] sm:$0xff]
            %v2729 = vld [vmem:[%s12 + $0x8] sm:$0xff]
            %v2730 = vld [vmem:[%s12 + $0x10] sm:$0xff]
            %v2731 = vld [vmem:[%s12 + $0x18] sm:$0xff]
            %v2732 = vld [vmem:[%s12 + $0x20] sm:$0xff]
            %v2733 = vld [vmem:[%s12 + $0x28] sm:$0xff]
            %v2734 = vld [vmem:[%s12 + $0x30] sm:$0xff]
            %v2735 = vld [vmem:[%s12 + $0x38] sm:$0xff]
            %v2736 = vld [vmem:[%s12 + $0x40] sm:$0xff]
            %v2737 = vld [vmem:[%s12 + $0x48] sm:$0xff]
            %v2738 = vld [vmem:[%s12 + $0x50] sm:$0xff]
            %v2739 = vld [vmem:[%s12 + $0x58] sm:$0xff]
            %v2740 = vld [vmem:[%s12 + $0x60] sm:$0xff]
            %v2741 = vld [vmem:[%s12 + $0x68] sm:$0xff]
            %v2742 = vld [vmem:[%s12 + $0x70] sm:$0xff]
            %v2743 = vld [vmem:[%s12 + $0x78] sm:$0xff]
            %v2744 = vld [vmem:[#allocation2] sm:$0xff]
            %v2745 = vld [vmem:[#allocation2 + $0x8] sm:$0xff]
            %v2746 = vld [vmem:[%s13] sm:$0xff]
            %v2747 = vld [vmem:[%s13 + $0x8] sm:$0xff]
            %v2748 = vld [vmem:[%s13 + $0x10] sm:$0xff]
            %v2749 = vld [vmem:[%s13 + $0x18] sm:$0xff]
            %v2751 = vsel %vm2335, %v2744, 0
            %v2754 = vsel %vm2335, %v2745, 0
            %2756 = vmatprep.subr.mxu0 0.0
            %2757 = vmatpush1.msra.mxu0 0.0
            %2758 = vmatprep.subr.mxu0 0.0
            %2759 = vmatpush1.msra.mxu0 0.0
            %2760 = vmatprep.subr.mxu0 0.0
            %2761 = vmatpush1.msra.mxu0 0.0
            %2762 = vmatprep.subr.mxu0 0.0
            %2763 = vmatpush1.msra.mxu0 0.0
            %2764 = vmatprep.subr.mxu0 0.0
            %2765 = vmatpush1.msra.mxu0 0.0
            %2766 = vmatprep.subr.mxu0 0.0
            %2767 = vmatpush1.msra.mxu0 0.0
            %2768 = vmatprep.subr.mxu0 0.0
            %2769 = vmatpush1.msra.mxu0 0.0
            %2770 = vmatprep.subr.mxu0 0.0
            %2771 = vmatpush1.msra.mxu0 0.0
            %2772 = vmatprep.subr.mxu0 0.0
            %2773 = vmatpush1.msra.mxu0 0.0
            %2774 = vmatprep.subr.mxu0 0.0
            %2775 = vmatpush1.msra.mxu0 0.0
            %2776 = vmatprep.subr.mxu0 0.0
            %2777 = vmatpush1.msra.mxu0 0.0
            %2778 = vmatprep.subr.mxu0 0.0
            %2779 = vmatpush1.msra.mxu0 0.0
            %2780 = vmatprep.subr.mxu0 0.0
            %2781 = vmatpush1.msra.mxu0 %v2749
            %2782 = vmatprep.subr.mxu0 0.0
            %2783 = vmatpush1.msra.mxu0 %v2748
            %2784 = vmatprep.subr.mxu0 0.0
            %2785 = vmatpush1.msra.mxu0 %v2747
            %2786 = vmatprep.subr.mxu0 0.0
            %2787 = vmatpush1.msra.mxu0 %v2746
            %2788 = vmatprep.subr.mxu0 0.0
            %2789 = vmatpush2.msra.mxu0 0.0
            %2790 = vmatprep.subr.mxu0 0.0
            %2791 = vmatpush2.msra.mxu0 0.0
            %2792 = vmatprep.subr.mxu0 0.0
            %2793 = vmatpush2.msra.mxu0 0.0
            %2794 = vmatprep.subr.mxu0 0.0
            %2795 = vmatpush2.msra.mxu0 0.0
            %2796 = vmatprep.subr.mxu0 0.0
            %2797 = vmatpush2.msra.mxu0 0.0
            %2798 = vmatprep.subr.mxu0 0.0
            %2799 = vmatpush2.msra.mxu0 0.0
            %2800 = vmatprep.subr.mxu0 0.0
            %2801 = vmatpush2.msra.mxu0 0.0
            %2802 = vmatprep.subr.mxu0 0.0
            %2803 = vmatpush2.msra.mxu0 0.0
            %2804 = vmatprep.subr.mxu0 0.0
            %2805 = vmatpush2.msra.mxu0 0.0
            %2806 = vmatprep.subr.mxu0 0.0
            %2807 = vmatpush2.msra.mxu0 0.0
            %2808 = vmatprep.subr.mxu0 0.0
            %2809 = vmatpush2.msra.mxu0 0.0
            %2810 = vmatprep.subr.mxu0 0.0
            %2811 = vmatpush2.msra.mxu0 0.0
            %2812 = vmatprep.subr.mxu0 0.0
            %2813 = vmatpush2.msra.mxu0 0.0
            %2814 = vmatprep.subr.mxu0 0.0
            %2815 = vmatpush2.msra.mxu0 0.0
            %2816 = vmatprep.subr.mxu0 0.0
            %2817 = vmatpush2.msra.mxu0 0.0
            %2818 = vmatprep.subr.mxu0 0.0
            %2819 = vmatpush2.msra.mxu0 0.0
            %2820 = vmatprep.mubr.f32.mxu0 0.0
            %2821 = vmatmul.mubr.f32.gmra.mxu0 %v2751
            %v2822 = vpop.f32.mrf.mxu0
            %v2823 = vadd.f32 0.0, %v2822
            %v2824 = vpop.f32.mrf.mxu0
            %2825 = vmatprep.mubr.f32.mxu0 0.0
            %2826 = vmatmul.mubr.f32.gmra.mxu0 %v2754
            %v2827 = vpop.f32.mrf.mxu0
            %v2828 = vadd.f32 0.0, %v2827
            %v2829 = vpop.f32.mrf.mxu0
            %2830 = vdwg.mxu0
            %2831 = vmatprep.subr.mxu0 0.0
            %2832 = vmatpush1.msra.mxu0 %v2743
            %2833 = vmatprep.subr.mxu0 0.0
            %2834 = vmatpush1.msra.mxu0 %v2742
            %2835 = vmatprep.subr.mxu0 0.0
            %2836 = vmatpush1.msra.mxu0 %v2741
            %2837 = vmatprep.subr.mxu0 0.0
            %2838 = vmatpush1.msra.mxu0 %v2740
            %2839 = vmatprep.subr.mxu0 0.0
            %2840 = vmatpush1.msra.mxu0 %v2739
            %2841 = vmatprep.subr.mxu0 0.0
            %2842 = vmatpush1.msra.mxu0 %v2738
            %2843 = vmatprep.subr.mxu0 0.0
            %2844 = vmatpush1.msra.mxu0 %v2737
            %2845 = vmatprep.subr.mxu0 0.0
            %2846 = vmatpush1.msra.mxu0 %v2736
            %2847 = vmatprep.subr.mxu0 0.0
            %2848 = vmatpush1.msra.mxu0 %v2735
            %2849 = vmatprep.subr.mxu0 0.0
            %2850 = vmatpush1.msra.mxu0 %v2734
            %2851 = vmatprep.subr.mxu0 0.0
            %2852 = vmatpush1.msra.mxu0 %v2733
            %2853 = vmatprep.subr.mxu0 0.0
            %2854 = vmatpush1.msra.mxu0 %v2732
            %2855 = vmatprep.subr.mxu0 0.0
            %2856 = vmatpush1.msra.mxu0 %v2731
            %2857 = vmatprep.subr.mxu0 0.0
            %2858 = vmatpush1.msra.mxu0 %v2730
            %2859 = vmatprep.subr.mxu0 0.0
            %2860 = vmatpush1.msra.mxu0 %v2729
            %2861 = vmatprep.subr.mxu0 0.0
            %2862 = vmatpush1.msra.mxu0 %v2728
            %2863 = vmatprep.subr.mxu0 0.0
            %2864 = vmatpush2.msra.mxu0 0.0
            %2865 = vmatprep.subr.mxu0 0.0
            %2866 = vmatpush2.msra.mxu0 0.0
            %2867 = vmatprep.subr.mxu0 0.0
            %2868 = vmatpush2.msra.mxu0 0.0
            %2869 = vmatprep.subr.mxu0 0.0
            %2870 = vmatpush2.msra.mxu0 0.0
            %2871 = vmatprep.subr.mxu0 0.0
            %2872 = vmatpush2.msra.mxu0 0.0
            %2873 = vmatprep.subr.mxu0 0.0
            %2874 = vmatpush2.msra.mxu0 0.0
            %2875 = vmatprep.subr.mxu0 0.0
            %2876 = vmatpush2.msra.mxu0 0.0
            %2877 = vmatprep.subr.mxu0 0.0
            %2878 = vmatpush2.msra.mxu0 0.0
            %2879 = vmatprep.subr.mxu0 0.0
            %2880 = vmatpush2.msra.mxu0 0.0
            %2881 = vmatprep.subr.mxu0 0.0
            %2882 = vmatpush2.msra.mxu0 0.0
            %2883 = vmatprep.subr.mxu0 0.0
            %2884 = vmatpush2.msra.mxu0 0.0
            %2885 = vmatprep.subr.mxu0 0.0
            %2886 = vmatpush2.msra.mxu0 0.0
            %2887 = vmatprep.subr.mxu0 0.0
            %2888 = vmatpush2.msra.mxu0 0.0
            %2889 = vmatprep.subr.mxu0 0.0
            %2890 = vmatpush2.msra.mxu0 0.0
            %2891 = vmatprep.subr.mxu0 0.0
            %2892 = vmatpush2.msra.mxu0 0.0
            %2893 = vmatprep.subr.mxu0 0.0
            %2894 = vmatpush2.msra.mxu0 0.0
            %2895 = vmatprep.mubr.f32.mxu0 0.0
            %2896 = vmatmul.mubr.f32.gmra.mxu0 %v2726
            %v2897 = vpop.f32.mrf.mxu0
            %v2898 = vadd.f32 %v2823, %v2897
            %v2899 = vpop.f32.mrf.mxu0
            %2900 = vmatprep.mubr.f32.mxu0 0.0
            %2901 = vmatmul.mubr.f32.gmra.mxu0 %v2727
            %v2902 = vpop.f32.mrf.mxu0
            %v2903 = vadd.f32 %v2828, %v2902
            %v2904 = vpop.f32.mrf.mxu0
            %2905 = vdwg.mxu0
            %v2906 = vld [vmem:[%s14] sm:$0x1]
            %v2908 = vlaneseq
            %v2909 = vshrl.u32 %v2908, 7
            %v2910 = vsub.s32 0, %v2909
            %v2911 = vrot.slane %v2906, %v2910
            %v2913 = vadd.f32 %v2898, %v2911
            %v2914 = vadd.f32 %v2903, %v2911
            %v2915 = vxor.u32 %v2913, 2147483648
            %v2916 = vxor.u32 %v2914, 2147483648
            %v2917 = vmul.f32 %v2915, 1.442695
            %v2918 = vpow.pop %v2917
            %v2919 = vmul.f32 %v2916, 1.442695
            %v2920 = vpow.pop %v2919
            %v2921 = vadd.f32 %v2918, 1.0
            %v2922 = vadd.f32 %v2920, 1.0
            %v2923 = vrcp.pop %v2921
            %v2924 = vmul.f32 1.0, %v2923
            %v2925 = vrcp.pop %v2922
            %v2926 = vmul.f32 1.0, %v2925
            %v2927 = vmul.f32 %v2913, %v2924
            %v2928 = vmul.f32 %v2914, %v2926
            %v2929 = vld [vmem:[%s15] sm:$0xff]
            %v2930 = vld [vmem:[%s15 + $0x8] sm:$0xff]
            %v2931 = vld [vmem:[%s15 + $0x10] sm:$0xff]
            %v2932 = vld [vmem:[%s15 + $0x18] sm:$0xff]
            %v2934 = vsel %vm2335, %v2927, 0
            %v2937 = vsel %vm2335, %v2928, 0
            %2939 = vmatprep.subr.mxu0 0.0
            %2940 = vmatpush1.msra.mxu0 0.0
            %2941 = vmatprep.subr.mxu0 0.0
            %2942 = vmatpush1.msra.mxu0 0.0
            %2943 = vmatprep.subr.mxu0 0.0
            %2944 = vmatpush1.msra.mxu0 0.0
            %2945 = vmatprep.subr.mxu0 0.0
            %2946 = vmatpush1.msra.mxu0 0.0
            %2947 = vmatprep.subr.mxu0 0.0
            %2948 = vmatpush1.msra.mxu0 0.0
            %2949 = vmatprep.subr.mxu0 0.0
            %2950 = vmatpush1.msra.mxu0 0.0
            %2951 = vmatprep.subr.mxu0 0.0
            %2952 = vmatpush1.msra.mxu0 0.0
            %2953 = vmatprep.subr.mxu0 0.0
            %2954 = vmatpush1.msra.mxu0 0.0
            %2955 = vmatprep.subr.mxu0 0.0
            %2956 = vmatpush1.msra.mxu0 0.0
            %2957 = vmatprep.subr.mxu0 0.0
            %2958 = vmatpush1.msra.mxu0 0.0
            %2959 = vmatprep.subr.mxu0 0.0
            %2960 = vmatpush1.msra.mxu0 0.0
            %2961 = vmatprep.subr.mxu0 0.0
            %2962 = vmatpush1.msra.mxu0 0.0
            %2963 = vmatprep.subr.mxu0 0.0
            %2964 = vmatpush1.msra.mxu0 %v2932
            %2965 = vmatprep.subr.mxu0 0.0
            %2966 = vmatpush1.msra.mxu0 %v2931
            %2967 = vmatprep.subr.mxu0 0.0
            %2968 = vmatpush1.msra.mxu0 %v2930
            %2969 = vmatprep.subr.mxu0 0.0
            %2970 = vmatpush1.msra.mxu0 %v2929
            %2971 = vmatprep.subr.mxu0 0.0
            %2972 = vmatpush2.msra.mxu0 0.0
            %2973 = vmatprep.subr.mxu0 0.0
            %2974 = vmatpush2.msra.mxu0 0.0
            %2975 = vmatprep.subr.mxu0 0.0
            %2976 = vmatpush2.msra.mxu0 0.0
            %2977 = vmatprep.subr.mxu0 0.0
            %2978 = vmatpush2.msra.mxu0 0.0
            %2979 = vmatprep.subr.mxu0 0.0
            %2980 = vmatpush2.msra.mxu0 0.0
            %2981 = vmatprep.subr.mxu0 0.0
            %2982 = vmatpush2.msra.mxu0 0.0
            %2983 = vmatprep.subr.mxu0 0.0
            %2984 = vmatpush2.msra.mxu0 0.0
            %2985 = vmatprep.subr.mxu0 0.0
            %2986 = vmatpush2.msra.mxu0 0.0
            %2987 = vmatprep.subr.mxu0 0.0
            %2988 = vmatpush2.msra.mxu0 0.0
            %2989 = vmatprep.subr.mxu0 0.0
            %2990 = vmatpush2.msra.mxu0 0.0
            %2991 = vmatprep.subr.mxu0 0.0
            %2992 = vmatpush2.msra.mxu0 0.0
            %2993 = vmatprep.subr.mxu0 0.0
            %2994 = vmatpush2.msra.mxu0 0.0
            %2995 = vmatprep.subr.mxu0 0.0
            %2996 = vmatpush2.msra.mxu0 0.0
            %2997 = vmatprep.subr.mxu0 0.0
            %2998 = vmatpush2.msra.mxu0 0.0
            %2999 = vmatprep.subr.mxu0 0.0
            %3000 = vmatpush2.msra.mxu0 0.0
            %3001 = vmatprep.subr.mxu0 0.0
            %3002 = vmatpush2.msra.mxu0 0.0
            %3003 = vmatprep.mubr.f32.mxu0 0.0
            %3004 = vmatmul.mubr.f32.gmra.mxu0 %v2934
            %v3005 = vpop.f32.mrf.mxu0
            %v3006 = vadd.f32 0.0, %v3005
            %v3007 = vpop.f32.mrf.mxu0
            %3008 = vmatprep.mubr.f32.mxu0 0.0
            %3009 = vmatmul.mubr.f32.gmra.mxu0 %v2937
            %v3010 = vpop.f32.mrf.mxu0
            %v3011 = vadd.f32 0.0, %v3010
            %v3012 = vpop.f32.mrf.mxu0
            %3013 = vdwg.mxu0
            %v3014 = vadd.f32 %v2726, %v3006
            %v3015 = vadd.f32 %v2727, %v3011
            %v3016 = vld [vmem:[%s16] sm:$0x1]
            %v3018 = vlaneseq
            %v3019 = vshrl.u32 %v3018, 7
            %v3020 = vsub.s32 0, %v3019
            %v3021 = vrot.slane %v3016, %v3020
            %v3023 = vadd.f32 %v3014, %v3021
            %v3024 = vadd.f32 %v3015, %v3021
            %3025 = vst [vmem:[%s24] sm:$0xff] %v3023
            %3026 = vst [vmem:[%s24 + $0x8] sm:$0xff] %v3024
          $region169: #{egnn_forward.3} parent=160 // pred_fallthru
            _
        $region161: #{egnn_forward.3} parent=152 // pred_fallthru
          _
        %p3027 = scmp.eq.s32.totalorder %s41, 1
        // Predicated region
        $region170: #{egnn_forward.3} parent=152 // pred_check
          %p3028 = pneg %p3027
        $region171: #{egnn_forward.3} parent=152 // pred_check_branch
          %3030 = sbr.rel (%p3028) target = $region173
        $region172: #{egnn_forward.3} parent=152 // pred_region
          %p3031 = scmp.eq.s32.totalorder %s42, 0
          // Predicated region
          $region174: #{egnn_forward.3} parent=172 // pred_check
            %p3032 = pneg %p3031
          $region175: #{egnn_forward.3} parent=172 // pred_check_branch
            %3034 = sbr.rel (%p3032) target = $region177
          $region176: #{egnn_forward.3} parent=172 // pred_region
            %3035 = vst [vmem:[#allocation3] sm:$0xff] 0.0
            %3036 = vst [vmem:[#allocation3 + $0x8] sm:$0xff] 0.0
          $region177: #{egnn_forward.3} parent=172 // pred_fallthru
            _
          %v3037 = vld [vmem:[%s24] sm:$0xff]
          %v3038 = vld [vmem:[%s24 + $0x8] sm:$0xff]
          %3039 = vmatprep.subr.mxu0 0.0
          %3040 = vmatpush1.msra.mxu0 0.0
          %3041 = vmatprep.subr.mxu0 0.0
          %3042 = vmatpush1.msra.mxu0 0.0
          %3043 = vmatprep.subr.mxu0 0.0
          %3044 = vmatpush1.msra.mxu0 0.0
          %3045 = vmatprep.subr.mxu0 0.0
          %3046 = vmatpush1.msra.mxu0 0.0
          %3047 = vmatprep.subr.mxu0 0.0
          %3048 = vmatpush1.msra.mxu0 0.0
          %3049 = vmatprep.subr.mxu0 0.0
          %3050 = vmatpush1.msra.mxu0 0.0
          %3051 = vmatprep.subr.mxu0 0.0
          %3052 = vmatpush1.msra.mxu0 0.0
          %3053 = vmatprep.subr.mxu0 0.0
          %3054 = vmatpush1.msra.mxu0 0.0
          %3055 = vmatprep.subr.mxu0 0.0
          %3056 = vmatpush1.msra.mxu0 0.0
          %3057 = vmatprep.subr.mxu0 0.0
          %3058 = vmatpush1.msra.mxu0 0.0
          %3059 = vmatprep.subr.mxu0 0.0
          %3060 = vmatpush1.msra.mxu0 0.0
          %3061 = vmatprep.subr.mxu0 0.0
          %3062 = vmatpush1.msra.mxu0 0.0
          %3063 = vmatprep.subr.mxu0 0.0
          %3064 = vmatpush1.msra.mxu0 0.0
          %3065 = vmatprep.subr.mxu0 0.0
          %3066 = vmatpush1.msra.mxu0 0.0
          %3067 = vmatprep.subr.mxu0 0.0
          %3068 = vmatpush1.msra.mxu0 %v3038
          %3069 = vmatprep.subr.mxu0 0.0
          %3070 = vmatpush1.msra.mxu0 %v3037
          %3071 = vmatprep.subr.mxu0 0.0
          %3072 = vmatpush2.msra.mxu0 0.0
          %3073 = vmatprep.subr.mxu0 0.0
          %3074 = vmatpush2.msra.mxu0 0.0
          %3075 = vmatprep.subr.mxu0 0.0
          %3076 = vmatpush2.msra.mxu0 0.0
          %3077 = vmatprep.subr.mxu0 0.0
          %3078 = vmatpush2.msra.mxu0 0.0
          %3079 = vmatprep.subr.mxu0 0.0
          %3080 = vmatpush2.msra.mxu0 0.0
          %3081 = vmatprep.subr.mxu0 0.0
          %3082 = vmatpush2.msra.mxu0 0.0
          %3083 = vmatprep.subr.mxu0 0.0
          %3084 = vmatpush2.msra.mxu0 0.0
          %3085 = vmatprep.subr.mxu0 0.0
          %3086 = vmatpush2.msra.mxu0 0.0
          %3087 = vmatprep.subr.mxu0 0.0
          %3088 = vmatpush2.msra.mxu0 0.0
          %3089 = vmatprep.subr.mxu0 0.0
          %3090 = vmatpush2.msra.mxu0 0.0
          %3091 = vmatprep.subr.mxu0 0.0
          %3092 = vmatpush2.msra.mxu0 0.0
          %3093 = vmatprep.subr.mxu0 0.0
          %3094 = vmatpush2.msra.mxu0 0.0
          %3095 = vmatprep.subr.mxu0 0.0
          %3096 = vmatpush2.msra.mxu0 0.0
          %3097 = vmatprep.subr.mxu0 0.0
          %3098 = vmatpush2.msra.mxu0 0.0
          %3099 = vmatprep.subr.mxu0 0.0
          %3100 = vmatpush2.msra.mxu0 0.0
          %3101 = vmatprep.subr.mxu0 0.0
          %3102 = vmatpush2.msra.mxu0 0.0
          %3103 = vmatprep.mubr.f32.mxu0 0.0
          %3104 = vmatmul.mubr.f32.gmra.mxu0 %v961
          %v3105 = vpop.f32.mrf.mxu0
          %v3106 = vadd.f32 0.0, %v3105
          %v3107 = vpop.f32.mrf.mxu0
          %3108 = vmatprep.mubr.f32.mxu0 0.0
          %3109 = vmatmul.mubr.f32.gmra.mxu0 %v964
          %v3110 = vpop.f32.mrf.mxu0
          %v3111 = vadd.f32 0.0, %v3110
          %v3112 = vpop.f32.mrf.mxu0
          %3113 = vmatprep.mubr.f32.mxu0 0.0
          %3114 = vmatmul.mubr.f32.gmra.mxu0 %v967
          %v3115 = vpop.f32.mrf.mxu0
          %v3116 = vadd.f32 0.0, %v3115
          %v3117 = vpop.f32.mrf.mxu0
          %3118 = vmatprep.mubr.f32.mxu0 0.0
          %3119 = vmatmul.mubr.f32.gmra.mxu0 %v970
          %v3120 = vpop.f32.mrf.mxu0
          %v3121 = vadd.f32 0.0, %v3120
          %v3122 = vpop.f32.mrf.mxu0
          %3123 = vmatprep.mubr.f32.mxu0 0.0
          %3124 = vmatmul.mubr.f32.gmra.mxu0 %v973
          %v3125 = vpop.f32.mrf.mxu0
          %v3126 = vadd.f32 0.0, %v3125
          %v3127 = vpop.f32.mrf.mxu0
          %3128 = vmatprep.mubr.f32.mxu0 0.0
          %3129 = vmatmul.mubr.f32.gmra.mxu0 %v976
          %v3130 = vpop.f32.mrf.mxu0
          %v3131 = vadd.f32 0.0, %v3130
          %v3132 = vpop.f32.mrf.mxu0
          %3133 = vmatprep.mubr.f32.mxu0 0.0
          %3134 = vmatmul.mubr.f32.gmra.mxu0 %v979
          %v3135 = vpop.f32.mrf.mxu0
          %v3136 = vadd.f32 0.0, %v3135
          %v3137 = vpop.f32.mrf.mxu0
          %3138 = vmatprep.mubr.f32.mxu0 0.0
          %3139 = vmatmul.mubr.f32.gmra.mxu0 %v982
          %v3140 = vpop.f32.mrf.mxu0
          %v3141 = vadd.f32 0.0, %v3140
          %v3142 = vpop.f32.mrf.mxu0
          %3143 = vmatprep.mubr.f32.mxu0 0.0
          %3144 = vmatmul.mubr.f32.gmra.mxu0 %v985
          %v3145 = vpop.f32.mrf.mxu0
          %v3146 = vadd.f32 0.0, %v3145
          %v3147 = vpop.f32.mrf.mxu0
          %3148 = vmatprep.mubr.f32.mxu0 0.0
          %3149 = vmatmul.mubr.f32.gmra.mxu0 %v988
          %v3150 = vpop.f32.mrf.mxu0
          %v3151 = vadd.f32 0.0, %v3150
          %v3152 = vpop.f32.mrf.mxu0
          %3153 = vmatprep.mubr.f32.mxu0 0.0
          %3154 = vmatmul.mubr.f32.gmra.mxu0 %v991
          %v3155 = vpop.f32.mrf.mxu0
          %v3156 = vadd.f32 0.0, %v3155
          %v3157 = vpop.f32.mrf.mxu0
          %3158 = vmatprep.mubr.f32.mxu0 0.0
          %3159 = vmatmul.mubr.f32.gmra.mxu0 %v994
          %v3160 = vpop.f32.mrf.mxu0
          %v3161 = vadd.f32 0.0, %v3160
          %v3162 = vpop.f32.mrf.mxu0
          %3163 = vmatprep.mubr.f32.mxu0 0.0
          %3164 = vmatmul.mubr.f32.gmra.mxu0 %v997
          %v3165 = vpop.f32.mrf.mxu0
          %v3166 = vadd.f32 0.0, %v3165
          %v3167 = vpop.f32.mrf.mxu0
          %3168 = vmatprep.mubr.f32.mxu0 0.0
          %3169 = vmatmul.mubr.f32.gmra.mxu0 %v1000
          %v3170 = vpop.f32.mrf.mxu0
          %v3171 = vadd.f32 0.0, %v3170
          %v3172 = vpop.f32.mrf.mxu0
          %3173 = vmatprep.mubr.f32.mxu0 0.0
          %3174 = vmatmul.mubr.f32.gmra.mxu0 %v1003
          %v3175 = vpop.f32.mrf.mxu0
          %v3176 = vadd.f32 0.0, %v3175
          %v3177 = vpop.f32.mrf.mxu0
          %3178 = vmatprep.mubr.f32.mxu0 0.0
          %3179 = vmatmul.mubr.f32.gmra.mxu0 %v1006
          %v3180 = vpop.f32.mrf.mxu0
          %v3181 = vadd.f32 0.0, %v3180
          %v3182 = vpop.f32.mrf.mxu0
          %3183 = vdwg.mxu0
          %3184 = vmatprep.subr.mxu0 0.0
          %3185 = vmatpush1.msra.mxu0 0.0
          %3186 = vmatprep.subr.mxu0 0.0
          %3187 = vmatpush1.msra.mxu0 0.0
          %3188 = vmatprep.subr.mxu0 0.0
          %3189 = vmatpush1.msra.mxu0 0.0
          %3190 = vmatprep.subr.mxu0 0.0
          %3191 = vmatpush1.msra.mxu0 0.0
          %3192 = vmatprep.subr.mxu0 0.0
          %3193 = vmatpush1.msra.mxu0 0.0
          %3194 = vmatprep.subr.mxu0 0.0
          %3195 = vmatpush1.msra.mxu0 0.0
          %3196 = vmatprep.subr.mxu0 0.0
          %3197 = vmatpush1.msra.mxu0 0.0
          %3198 = vmatprep.subr.mxu0 0.0
          %3199 = vmatpush1.msra.mxu0 0.0
          %3200 = vmatprep.subr.mxu0 0.0
          %3201 = vmatpush1.msra.mxu0 0.0
          %3202 = vmatprep.subr.mxu0 0.0
          %3203 = vmatpush1.msra.mxu0 0.0
          %3204 = vmatprep.subr.mxu0 0.0
          %3205 = vmatpush1.msra.mxu0 0.0
          %3206 = vmatprep.subr.mxu0 0.0
          %3207 = vmatpush1.msra.mxu0 0.0
          %3208 = vmatprep.subr.mxu0 0.0
          %3209 = vmatpush1.msra.mxu0 0.0
          %3210 = vmatprep.subr.mxu0 0.0
          %3211 = vmatpush1.msra.mxu0 0.0
          %3212 = vmatprep.subr.mxu0 0.0
          %3213 = vmatpush1.msra.mxu0 %v3038
          %3214 = vmatprep.subr.mxu0 0.0
          %3215 = vmatpush1.msra.mxu0 %v3037
          %3216 = vmatprep.subr.mxu0 0.0
          %3217 = vmatpush2.msra.mxu0 0.0
          %3218 = vmatprep.subr.mxu0 0.0
          %3219 = vmatpush2.msra.mxu0 0.0
          %3220 = vmatprep.subr.mxu0 0.0
          %3221 = vmatpush2.msra.mxu0 0.0
          %3222 = vmatprep.subr.mxu0 0.0
          %3223 = vmatpush2.msra.mxu0 0.0
          %3224 = vmatprep.subr.mxu0 0.0
          %3225 = vmatpush2.msra.mxu0 0.0
          %3226 = vmatprep.subr.mxu0 0.0
          %3227 = vmatpush2.msra.mxu0 0.0
          %3228 = vmatprep.subr.mxu0 0.0
          %3229 = vmatpush2.msra.mxu0 0.0
          %3230 = vmatprep.subr.mxu0 0.0
          %3231 = vmatpush2.msra.mxu0 0.0
          %3232 = vmatprep.subr.mxu0 0.0
          %3233 = vmatpush2.msra.mxu0 0.0
          %3234 = vmatprep.subr.mxu0 0.0
          %3235 = vmatpush2.msra.mxu0 0.0
          %3236 = vmatprep.subr.mxu0 0.0
          %3237 = vmatpush2.msra.mxu0 0.0
          %3238 = vmatprep.subr.mxu0 0.0
          %3239 = vmatpush2.msra.mxu0 0.0
          %3240 = vmatprep.subr.mxu0 0.0
          %3241 = vmatpush2.msra.mxu0 0.0
          %3242 = vmatprep.subr.mxu0 0.0
          %3243 = vmatpush2.msra.mxu0 0.0
          %3244 = vmatprep.subr.mxu0 0.0
          %3245 = vmatpush2.msra.mxu0 0.0
          %3246 = vmatprep.subr.mxu0 0.0
          %3247 = vmatpush2.msra.mxu0 0.0
          %3248 = vmatprep.mubr.f32.mxu0 0.0
          %3249 = vmatmul.mubr.f32.gmra.mxu0 %v1154
          %v3250 = vpop.f32.mrf.mxu0
          %v3251 = vadd.f32 0.0, %v3250
          %v3252 = vpop.f32.mrf.mxu0
          %3253 = vmatprep.mubr.f32.mxu0 0.0
          %3254 = vmatmul.mubr.f32.gmra.mxu0 %v1157
          %v3255 = vpop.f32.mrf.mxu0
          %v3256 = vadd.f32 0.0, %v3255
          %v3257 = vpop.f32.mrf.mxu0
          %3258 = vmatprep.mubr.f32.mxu0 0.0
          %3259 = vmatmul.mubr.f32.gmra.mxu0 %v1160
          %v3260 = vpop.f32.mrf.mxu0
          %v3261 = vadd.f32 0.0, %v3260
          %v3262 = vpop.f32.mrf.mxu0
          %3263 = vmatprep.mubr.f32.mxu0 0.0
          %3264 = vmatmul.mubr.f32.gmra.mxu0 %v1163
          %v3265 = vpop.f32.mrf.mxu0
          %v3266 = vadd.f32 0.0, %v3265
          %v3267 = vpop.f32.mrf.mxu0
          %3268 = vmatprep.mubr.f32.mxu0 0.0
          %3269 = vmatmul.mubr.f32.gmra.mxu0 %v1166
          %v3270 = vpop.f32.mrf.mxu0
          %v3271 = vadd.f32 0.0, %v3270
          %v3272 = vpop.f32.mrf.mxu0
          %3273 = vmatprep.mubr.f32.mxu0 0.0
          %3274 = vmatmul.mubr.f32.gmra.mxu0 %v1169
          %v3275 = vpop.f32.mrf.mxu0
          %v3276 = vadd.f32 0.0, %v3275
          %v3277 = vpop.f32.mrf.mxu0
          %3278 = vmatprep.mubr.f32.mxu0 0.0
          %3279 = vmatmul.mubr.f32.gmra.mxu0 %v1172
          %v3280 = vpop.f32.mrf.mxu0
          %v3281 = vadd.f32 0.0, %v3280
          %v3282 = vpop.f32.mrf.mxu0
          %3283 = vmatprep.mubr.f32.mxu0 0.0
          %3284 = vmatmul.mubr.f32.gmra.mxu0 %v1175
          %v3285 = vpop.f32.mrf.mxu0
          %v3286 = vadd.f32 0.0, %v3285
          %v3287 = vpop.f32.mrf.mxu0
          %3288 = vmatprep.mubr.f32.mxu0 0.0
          %3289 = vmatmul.mubr.f32.gmra.mxu0 %v1178
          %v3290 = vpop.f32.mrf.mxu0
          %v3291 = vadd.f32 0.0, %v3290
          %v3292 = vpop.f32.mrf.mxu0
          %3293 = vmatprep.mubr.f32.mxu0 0.0
          %3294 = vmatmul.mubr.f32.gmra.mxu0 %v1181
          %v3295 = vpop.f32.mrf.mxu0
          %v3296 = vadd.f32 0.0, %v3295
          %v3297 = vpop.f32.mrf.mxu0
          %3298 = vmatprep.mubr.f32.mxu0 0.0
          %3299 = vmatmul.mubr.f32.gmra.mxu0 %v1184
          %v3300 = vpop.f32.mrf.mxu0
          %v3301 = vadd.f32 0.0, %v3300
          %v3302 = vpop.f32.mrf.mxu0
          %3303 = vmatprep.mubr.f32.mxu0 0.0
          %3304 = vmatmul.mubr.f32.gmra.mxu0 %v1187
          %v3305 = vpop.f32.mrf.mxu0
          %v3306 = vadd.f32 0.0, %v3305
          %v3307 = vpop.f32.mrf.mxu0
          %3308 = vmatprep.mubr.f32.mxu0 0.0
          %3309 = vmatmul.mubr.f32.gmra.mxu0 %v1190
          %v3310 = vpop.f32.mrf.mxu0
          %v3311 = vadd.f32 0.0, %v3310
          %v3312 = vpop.f32.mrf.mxu0
          %3313 = vmatprep.mubr.f32.mxu0 0.0
          %3314 = vmatmul.mubr.f32.gmra.mxu0 %v1193
          %v3315 = vpop.f32.mrf.mxu0
          %v3316 = vadd.f32 0.0, %v3315
          %v3317 = vpop.f32.mrf.mxu0
          %3318 = vmatprep.mubr.f32.mxu0 0.0
          %3319 = vmatmul.mubr.f32.gmra.mxu0 %v1196
          %v3320 = vpop.f32.mrf.mxu0
          %v3321 = vadd.f32 0.0, %v3320
          %v3322 = vpop.f32.mrf.mxu0
          %3323 = vmatprep.mubr.f32.mxu0 0.0
          %3324 = vmatmul.mubr.f32.gmra.mxu0 %v1199
          %v3325 = vpop.f32.mrf.mxu0
          %v3326 = vadd.f32 0.0, %v3325
          %v3327 = vpop.f32.mrf.mxu0
          %3328 = vdwg.mxu0
          %v3329 = vld [vmem:[%s17] sm:$0xff]
          %v3330 = vld [vmem:[%s17 + $0x8] sm:$0xff]
          %v3331 = vld [vmem:[%s17 + $0x10] sm:$0xff]
          %v3332 = vld [vmem:[%s17 + $0x18] sm:$0xff]
          %v3333 = vld [vmem:[%s17 + $0x20] sm:$0xff]
          %v3334 = vld [vmem:[%s17 + $0x28] sm:$0xff]
          %v3335 = vld [vmem:[%s17 + $0x30] sm:$0xff]
          %v3336 = vld [vmem:[%s17 + $0x38] sm:$0xff]
          %v3337 = vld [vmem:[%s17 + $0x40] sm:$0xff]
          %v3338 = vld [vmem:[%s17 + $0x48] sm:$0xff]
          %v3339 = vld [vmem:[%s17 + $0x50] sm:$0xff]
          %v3340 = vld [vmem:[%s17 + $0x58] sm:$0xff]
          %v3341 = vld [vmem:[%s17 + $0x60] sm:$0xff]
          %v3342 = vld [vmem:[%s17 + $0x68] sm:$0xff]
          %v3343 = vld [vmem:[%s17 + $0x70] sm:$0xff]
          %v3344 = vld [vmem:[%s17 + $0x78] sm:$0xff]
          %v3345 = vld [vmem:[%s18] sm:$0xff]
          %v3346 = vld [vmem:[%s18 + $0x8] sm:$0xff]
          %v3347 = vld [vmem:[%s18 + $0x10] sm:$0xff]
          %v3348 = vld [vmem:[%s18 + $0x18] sm:$0xff]
          %v3349 = vld [vmem:[%s18 + $0x20] sm:$0xff]
          %v3350 = vld [vmem:[%s18 + $0x28] sm:$0xff]
          %v3351 = vld [vmem:[%s18 + $0x30] sm:$0xff]
          %v3352 = vld [vmem:[%s18 + $0x38] sm:$0xff]
          %v3353 = vld [vmem:[%s18 + $0x40] sm:$0xff]
          %v3354 = vld [vmem:[%s18 + $0x48] sm:$0xff]
          %v3355 = vld [vmem:[%s18 + $0x50] sm:$0xff]
          %v3356 = vld [vmem:[%s18 + $0x58] sm:$0xff]
          %v3357 = vld [vmem:[%s18 + $0x60] sm:$0xff]
          %v3358 = vld [vmem:[%s18 + $0x68] sm:$0xff]
          %v3359 = vld [vmem:[%s18 + $0x70] sm:$0xff]
          %v3360 = vld [vmem:[%s18 + $0x78] sm:$0xff]
          %3361 = vmatprep.subr.mxu0 0.0
          %3362 = vmatpush1.msra.mxu0 %v3360
          %3363 = vmatprep.subr.mxu0 0.0
          %3364 = vmatpush1.msra.mxu0 %v3359
          %3365 = vmatprep.subr.mxu0 0.0
          %3366 = vmatpush1.msra.mxu0 %v3358
          %3367 = vmatprep.subr.mxu0 0.0
          %3368 = vmatpush1.msra.mxu0 %v3357
          %3369 = vmatprep.subr.mxu0 0.0
          %3370 = vmatpush1.msra.mxu0 %v3356
          %3371 = vmatprep.subr.mxu0 0.0
          %3372 = vmatpush1.msra.mxu0 %v3355
          %3373 = vmatprep.subr.mxu0 0.0
          %3374 = vmatpush1.msra.mxu0 %v3354
          %3375 = vmatprep.subr.mxu0 0.0
          %3376 = vmatpush1.msra.mxu0 %v3353
          %3377 = vmatprep.subr.mxu0 0.0
          %3378 = vmatpush1.msra.mxu0 %v3352
          %3379 = vmatprep.subr.mxu0 0.0
          %3380 = vmatpush1.msra.mxu0 %v3351
          %3381 = vmatprep.subr.mxu0 0.0
          %3382 = vmatpush1.msra.mxu0 %v3350
          %3383 = vmatprep.subr.mxu0 0.0
          %3384 = vmatpush1.msra.mxu0 %v3349
          %3385 = vmatprep.subr.mxu0 0.0
          %3386 = vmatpush1.msra.mxu0 %v3348
          %3387 = vmatprep.subr.mxu0 0.0
          %3388 = vmatpush1.msra.mxu0 %v3347
          %3389 = vmatprep.subr.mxu0 0.0
          %3390 = vmatpush1.msra.mxu0 %v3346
          %3391 = vmatprep.subr.mxu0 0.0
          %3392 = vmatpush1.msra.mxu0 %v3345
          %3393 = vmatprep.subr.mxu0 0.0
          %3394 = vmatpush2.msra.mxu0 0.0
          %3395 = vmatprep.subr.mxu0 0.0
          %3396 = vmatpush2.msra.mxu0 0.0
          %3397 = vmatprep.subr.mxu0 0.0
          %3398 = vmatpush2.msra.mxu0 0.0
          %3399 = vmatprep.subr.mxu0 0.0
          %3400 = vmatpush2.msra.mxu0 0.0
          %3401 = vmatprep.subr.mxu0 0.0
          %3402 = vmatpush2.msra.mxu0 0.0
          %3403 = vmatprep.subr.mxu0 0.0
          %3404 = vmatpush2.msra.mxu0 0.0
          %3405 = vmatprep.subr.mxu0 0.0
          %3406 = vmatpush2.msra.mxu0 0.0
          %3407 = vmatprep.subr.mxu0 0.0
          %3408 = vmatpush2.msra.mxu0 0.0
          %3409 = vmatprep.subr.mxu0 0.0
          %3410 = vmatpush2.msra.mxu0 0.0
          %3411 = vmatprep.subr.mxu0 0.0
          %3412 = vmatpush2.msra.mxu0 0.0
          %3413 = vmatprep.subr.mxu0 0.0
          %3414 = vmatpush2.msra.mxu0 0.0
          %3415 = vmatprep.subr.mxu0 0.0
          %3416 = vmatpush2.msra.mxu0 0.0
          %3417 = vmatprep.subr.mxu0 0.0
          %3418 = vmatpush2.msra.mxu0 0.0
          %3419 = vmatprep.subr.mxu0 0.0
          %3420 = vmatpush2.msra.mxu0 0.0
          %3421 = vmatprep.subr.mxu0 0.0
          %3422 = vmatpush2.msra.mxu0 0.0
          %3423 = vmatprep.subr.mxu0 0.0
          %3424 = vmatpush2.msra.mxu0 0.0
          %3425 = vmatprep.mubr.f32.mxu0 0.0
          %3426 = vmatmul.mubr.f32.gmra.mxu0 %v3251
          %v3427 = vpop.f32.mrf.mxu0
          %v3428 = vadd.f32 0.0, %v3427
          %v3429 = vpop.f32.mrf.mxu0
          %3430 = vmatprep.mubr.f32.mxu0 0.0
          %3431 = vmatmul.mubr.f32.gmra.mxu0 %v3256
          %v3432 = vpop.f32.mrf.mxu0
          %v3433 = vadd.f32 0.0, %v3432
          %v3434 = vpop.f32.mrf.mxu0
          %3435 = vmatprep.mubr.f32.mxu0 0.0
          %3436 = vmatmul.mubr.f32.gmra.mxu0 %v3261
          %v3437 = vpop.f32.mrf.mxu0
          %v3438 = vadd.f32 0.0, %v3437
          %v3439 = vpop.f32.mrf.mxu0
          %3440 = vmatprep.mubr.f32.mxu0 0.0
          %3441 = vmatmul.mubr.f32.gmra.mxu0 %v3266
          %v3442 = vpop.f32.mrf.mxu0
          %v3443 = vadd.f32 0.0, %v3442
          %v3444 = vpop.f32.mrf.mxu0
          %3445 = vmatprep.mubr.f32.mxu0 0.0
          %3446 = vmatmul.mubr.f32.gmra.mxu0 %v3271
          %v3447 = vpop.f32.mrf.mxu0
          %v3448 = vadd.f32 0.0, %v3447
          %v3449 = vpop.f32.mrf.mxu0
          %3450 = vmatprep.mubr.f32.mxu0 0.0
          %3451 = vmatmul.mubr.f32.gmra.mxu0 %v3276
          %v3452 = vpop.f32.mrf.mxu0
          %v3453 = vadd.f32 0.0, %v3452
          %v3454 = vpop.f32.mrf.mxu0
          %3455 = vmatprep.mubr.f32.mxu0 0.0
          %3456 = vmatmul.mubr.f32.gmra.mxu0 %v3281
          %v3457 = vpop.f32.mrf.mxu0
          %v3458 = vadd.f32 0.0, %v3457
          %v3459 = vpop.f32.mrf.mxu0
          %3460 = vmatprep.mubr.f32.mxu0 0.0
          %3461 = vmatmul.mubr.f32.gmra.mxu0 %v3286
          %v3462 = vpop.f32.mrf.mxu0
          %v3463 = vadd.f32 0.0, %v3462
          %v3464 = vpop.f32.mrf.mxu0
          %3465 = vmatprep.mubr.f32.mxu0 0.0
          %3466 = vmatmul.mubr.f32.gmra.mxu0 %v3291
          %v3467 = vpop.f32.mrf.mxu0
          %v3468 = vadd.f32 0.0, %v3467
          %v3469 = vpop.f32.mrf.mxu0
          %3470 = vmatprep.mubr.f32.mxu0 0.0
          %3471 = vmatmul.mubr.f32.gmra.mxu0 %v3296
          %v3472 = vpop.f32.mrf.mxu0
          %v3473 = vadd.f32 0.0, %v3472
          %v3474 = vpop.f32.mrf.mxu0
          %3475 = vmatprep.mubr.f32.mxu0 0.0
          %3476 = vmatmul.mubr.f32.gmra.mxu0 %v3301
          %v3477 = vpop.f32.mrf.mxu0
          %v3478 = vadd.f32 0.0, %v3477
          %v3479 = vpop.f32.mrf.mxu0
          %3480 = vmatprep.mubr.f32.mxu0 0.0
          %3481 = vmatmul.mubr.f32.gmra.mxu0 %v3306
          %v3482 = vpop.f32.mrf.mxu0
          %v3483 = vadd.f32 0.0, %v3482
          %v3484 = vpop.f32.mrf.mxu0
          %3485 = vmatprep.mubr.f32.mxu0 0.0
          %3486 = vmatmul.mubr.f32.gmra.mxu0 %v3311
          %v3487 = vpop.f32.mrf.mxu0
          %v3488 = vadd.f32 0.0, %v3487
          %v3489 = vpop.f32.mrf.mxu0
          %3490 = vmatprep.mubr.f32.mxu0 0.0
          %3491 = vmatmul.mubr.f32.gmra.mxu0 %v3316
          %v3492 = vpop.f32.mrf.mxu0
          %v3493 = vadd.f32 0.0, %v3492
          %v3494 = vpop.f32.mrf.mxu0
          %3495 = vmatprep.mubr.f32.mxu0 0.0
          %3496 = vmatmul.mubr.f32.gmra.mxu0 %v3321
          %v3497 = vpop.f32.mrf.mxu0
          %v3498 = vadd.f32 0.0, %v3497
          %v3499 = vpop.f32.mrf.mxu0
          %3500 = vmatprep.mubr.f32.mxu0 0.0
          %3501 = vmatmul.mubr.f32.gmra.mxu0 %v3326
          %v3502 = vpop.f32.mrf.mxu0
          %v3503 = vadd.f32 0.0, %v3502
          %v3504 = vpop.f32.mrf.mxu0
          %3505 = vdwg.mxu0
          %3506 = vmatprep.subr.mxu0 0.0
          %3507 = vmatpush1.msra.mxu0 %v3344
          %3508 = vmatprep.subr.mxu0 0.0
          %3509 = vmatpush1.msra.mxu0 %v3343
          %3510 = vmatprep.subr.mxu0 0.0
          %3511 = vmatpush1.msra.mxu0 %v3342
          %3512 = vmatprep.subr.mxu0 0.0
          %3513 = vmatpush1.msra.mxu0 %v3341
          %3514 = vmatprep.subr.mxu0 0.0
          %3515 = vmatpush1.msra.mxu0 %v3340
          %3516 = vmatprep.subr.mxu0 0.0
          %3517 = vmatpush1.msra.mxu0 %v3339
          %3518 = vmatprep.subr.mxu0 0.0
          %3519 = vmatpush1.msra.mxu0 %v3338
          %3520 = vmatprep.subr.mxu0 0.0
          %3521 = vmatpush1.msra.mxu0 %v3337
          %3522 = vmatprep.subr.mxu0 0.0
          %3523 = vmatpush1.msra.mxu0 %v3336
          %3524 = vmatprep.subr.mxu0 0.0
          %3525 = vmatpush1.msra.mxu0 %v3335
          %3526 = vmatprep.subr.mxu0 0.0
          %3527 = vmatpush1.msra.mxu0 %v3334
          %3528 = vmatprep.subr.mxu0 0.0
          %3529 = vmatpush1.msra.mxu0 %v3333
          %3530 = vmatprep.subr.mxu0 0.0
          %3531 = vmatpush1.msra.mxu0 %v3332
          %3532 = vmatprep.subr.mxu0 0.0
          %3533 = vmatpush1.msra.mxu0 %v3331
          %3534 = vmatprep.subr.mxu0 0.0
          %3535 = vmatpush1.msra.mxu0 %v3330
          %3536 = vmatprep.subr.mxu0 0.0
          %3537 = vmatpush1.msra.mxu0 %v3329
          %3538 = vmatprep.subr.mxu0 0.0
          %3539 = vmatpush2.msra.mxu0 0.0
          %3540 = vmatprep.subr.mxu0 0.0
          %3541 = vmatpush2.msra.mxu0 0.0
          %3542 = vmatprep.subr.mxu0 0.0
          %3543 = vmatpush2.msra.mxu0 0.0
          %3544 = vmatprep.subr.mxu0 0.0
          %3545 = vmatpush2.msra.mxu0 0.0
          %3546 = vmatprep.subr.mxu0 0.0
          %3547 = vmatpush2.msra.mxu0 0.0
          %3548 = vmatprep.subr.mxu0 0.0
          %3549 = vmatpush2.msra.mxu0 0.0
          %3550 = vmatprep.subr.mxu0 0.0
          %3551 = vmatpush2.msra.mxu0 0.0
          %3552 = vmatprep.subr.mxu0 0.0
          %3553 = vmatpush2.msra.mxu0 0.0
          %3554 = vmatprep.subr.mxu0 0.0
          %3555 = vmatpush2.msra.mxu0 0.0
          %3556 = vmatprep.subr.mxu0 0.0
          %3557 = vmatpush2.msra.mxu0 0.0
          %3558 = vmatprep.subr.mxu0 0.0
          %3559 = vmatpush2.msra.mxu0 0.0
          %3560 = vmatprep.subr.mxu0 0.0
          %3561 = vmatpush2.msra.mxu0 0.0
          %3562 = vmatprep.subr.mxu0 0.0
          %3563 = vmatpush2.msra.mxu0 0.0
          %3564 = vmatprep.subr.mxu0 0.0
          %3565 = vmatpush2.msra.mxu0 0.0
          %3566 = vmatprep.subr.mxu0 0.0
          %3567 = vmatpush2.msra.mxu0 0.0
          %3568 = vmatprep.subr.mxu0 0.0
          %3569 = vmatpush2.msra.mxu0 0.0
          %3570 = vmatprep.mubr.f32.mxu0 0.0
          %3571 = vmatmul.mubr.f32.gmra.mxu0 %v3106
          %v3572 = vpop.f32.mrf.mxu0
          %v3573 = vadd.f32 %v3428, %v3572
          %v3574 = vpop.f32.mrf.mxu0
          %3575 = vmatprep.mubr.f32.mxu0 0.0
          %3576 = vmatmul.mubr.f32.gmra.mxu0 %v3111
          %v3577 = vpop.f32.mrf.mxu0
          %v3578 = vadd.f32 %v3433, %v3577
          %v3579 = vpop.f32.mrf.mxu0
          %3580 = vmatprep.mubr.f32.mxu0 0.0
          %3581 = vmatmul.mubr.f32.gmra.mxu0 %v3116
          %v3582 = vpop.f32.mrf.mxu0
          %v3583 = vadd.f32 %v3438, %v3582
          %v3584 = vpop.f32.mrf.mxu0
          %3585 = vmatprep.mubr.f32.mxu0 0.0
          %3586 = vmatmul.mubr.f32.gmra.mxu0 %v3121
          %v3587 = vpop.f32.mrf.mxu0
          %v3588 = vadd.f32 %v3443, %v3587
          %v3589 = vpop.f32.mrf.mxu0
          %3590 = vmatprep.mubr.f32.mxu0 0.0
          %3591 = vmatmul.mubr.f32.gmra.mxu0 %v3126
          %v3592 = vpop.f32.mrf.mxu0
          %v3593 = vadd.f32 %v3448, %v3592
          %v3594 = vpop.f32.mrf.mxu0
          %3595 = vmatprep.mubr.f32.mxu0 0.0
          %3596 = vmatmul.mubr.f32.gmra.mxu0 %v3131
          %v3597 = vpop.f32.mrf.mxu0
          %v3598 = vadd.f32 %v3453, %v3597
          %v3599 = vpop.f32.mrf.mxu0
          %3600 = vmatprep.mubr.f32.mxu0 0.0
          %3601 = vmatmul.mubr.f32.gmra.mxu0 %v3136
          %v3602 = vpop.f32.mrf.mxu0
          %v3603 = vadd.f32 %v3458, %v3602
          %v3604 = vpop.f32.mrf.mxu0
          %3605 = vmatprep.mubr.f32.mxu0 0.0
          %3606 = vmatmul.mubr.f32.gmra.mxu0 %v3141
          %v3607 = vpop.f32.mrf.mxu0
          %v3608 = vadd.f32 %v3463, %v3607
          %v3609 = vpop.f32.mrf.mxu0
          %3610 = vmatprep.mubr.f32.mxu0 0.0
          %3611 = vmatmul.mubr.f32.gmra.mxu0 %v3146
          %v3612 = vpop.f32.mrf.mxu0
          %v3613 = vadd.f32 %v3468, %v3612
          %v3614 = vpop.f32.mrf.mxu0
          %3615 = vmatprep.mubr.f32.mxu0 0.0
          %3616 = vmatmul.mubr.f32.gmra.mxu0 %v3151
          %v3617 = vpop.f32.mrf.mxu0
          %v3618 = vadd.f32 %v3473, %v3617
          %v3619 = vpop.f32.mrf.mxu0
          %3620 = vmatprep.mubr.f32.mxu0 0.0
          %3621 = vmatmul.mubr.f32.gmra.mxu0 %v3156
          %v3622 = vpop.f32.mrf.mxu0
          %v3623 = vadd.f32 %v3478, %v3622
          %v3624 = vpop.f32.mrf.mxu0
          %3625 = vmatprep.mubr.f32.mxu0 0.0
          %3626 = vmatmul.mubr.f32.gmra.mxu0 %v3161
          %v3627 = vpop.f32.mrf.mxu0
          %v3628 = vadd.f32 %v3483, %v3627
          %v3629 = vpop.f32.mrf.mxu0
          %3630 = vmatprep.mubr.f32.mxu0 0.0
          %3631 = vmatmul.mubr.f32.gmra.mxu0 %v3166
          %v3632 = vpop.f32.mrf.mxu0
          %v3633 = vadd.f32 %v3488, %v3632
          %v3634 = vpop.f32.mrf.mxu0
          %3635 = vmatprep.mubr.f32.mxu0 0.0
          %3636 = vmatmul.mubr.f32.gmra.mxu0 %v3171
          %v3637 = vpop.f32.mrf.mxu0
          %v3638 = vadd.f32 %v3493, %v3637
          %v3639 = vpop.f32.mrf.mxu0
          %3640 = vmatprep.mubr.f32.mxu0 0.0
          %3641 = vmatmul.mubr.f32.gmra.mxu0 %v3176
          %v3642 = vpop.f32.mrf.mxu0
          %v3643 = vadd.f32 %v3498, %v3642
          %v3644 = vpop.f32.mrf.mxu0
          %3645 = vmatprep.mubr.f32.mxu0 0.0
          %3646 = vmatmul.mubr.f32.gmra.mxu0 %v3181
          %v3647 = vpop.f32.mrf.mxu0
          %v3648 = vadd.f32 %v3503, %v3647
          %v3649 = vpop.f32.mrf.mxu0
          %3650 = vdwg.mxu0
          %v3651 = vld [vmem:[%s19] sm:$0x1]
          %v3652 = vlaneseq
          %v3653 = vshrl.u32 %v3652, 7
          %v3654 = vsub.s32 0, %v3653
          %v3655 = vrot.slane %v3651, %v3654
          %v3656 = vmul.f32 %v1379, %v3655
          %v3657 = vmul.f32 %v1381, %v3655
          %v3658 = vmul.f32 %v1383, %v3655
          %v3659 = vmul.f32 %v1385, %v3655
          %v3660 = vmul.f32 %v1387, %v3655
          %v3661 = vmul.f32 %v1389, %v3655
          %v3662 = vmul.f32 %v1391, %v3655
          %v3663 = vmul.f32 %v1393, %v3655
          %v3664 = vmul.f32 %v1395, %v3655
          %v3665 = vmul.f32 %v1397, %v3655
          %v3666 = vmul.f32 %v1399, %v3655
          %v3667 = vmul.f32 %v1401, %v3655
          %v3668 = vmul.f32 %v1403, %v3655
          %v3669 = vmul.f32 %v1405, %v3655
          %v3670 = vmul.f32 %v1407, %v3655
          %v3671 = vmul.f32 %v1409, %v3655
          %v3672 = vadd.f32 %v3573, %v3656
          %v3673 = vadd.f32 %v3578, %v3657
          %v3674 = vadd.f32 %v3583, %v3658
          %v3675 = vadd.f32 %v3588, %v3659
          %v3676 = vadd.f32 %v3593, %v3660
          %v3677 = vadd.f32 %v3598, %v3661
          %v3678 = vadd.f32 %v3603, %v3662
          %v3679 = vadd.f32 %v3608, %v3663
          %v3680 = vadd.f32 %v3613, %v3664
          %v3681 = vadd.f32 %v3618, %v3665
          %v3682 = vadd.f32 %v3623, %v3666
          %v3683 = vadd.f32 %v3628, %v3667
          %v3684 = vadd.f32 %v3633, %v3668
          %v3685 = vadd.f32 %v3638, %v3669
          %v3686 = vadd.f32 %v3643, %v3670
          %v3687 = vadd.f32 %v3648, %v3671
          %v3688 = vld [vmem:[%s19 + $0x1] sm:$0x1]
          %3690 = vset.pattern.permute.xlu0 0
          %3691 = vperm.xlu0 %3690, %v941
          %v3692 = vpop.permute.xlu0 %3691
          %3695 = vset.pattern.permute.xlu0 0
          %3696 = vperm.xlu0 %3695, %v942
          %v3697 = vpop.permute.xlu0 %3696
          %3700 = vset.pattern.permute.xlu0 0
          %3701 = vperm.xlu0 %3700, %v943
          %v3702 = vpop.permute.xlu0 %3701
          %3705 = vset.pattern.permute.xlu0 0
          %3706 = vperm.xlu0 %3705, %v944
          %v3707 = vpop.permute.xlu0 %3706
          %3710 = vset.pattern.permute.xlu0 0
          %3711 = vperm.xlu0 %3710, %v945
          %v3712 = vpop.permute.xlu0 %3711
          %3715 = vset.pattern.permute.xlu0 0
          %3716 = vperm.xlu0 %3715, %v946
          %v3717 = vpop.permute.xlu0 %3716
          %3720 = vset.pattern.permute.xlu0 0
          %3721 = vperm.xlu0 %3720, %v947
          %v3722 = vpop.permute.xlu0 %3721
          %3725 = vset.pattern.permute.xlu0 0
          %3726 = vperm.xlu0 %3725, %v948
          %v3727 = vpop.permute.xlu0 %3726
          %3730 = vset.pattern.permute.xlu0 0
          %3731 = vperm.xlu0 %3730, %v949
          %v3732 = vpop.permute.xlu0 %3731
          %3735 = vset.pattern.permute.xlu0 0
          %3736 = vperm.xlu0 %3735, %v950
          %v3737 = vpop.permute.xlu0 %3736
          %3740 = vset.pattern.permute.xlu0 0
          %3741 = vperm.xlu0 %3740, %v951
          %v3742 = vpop.permute.xlu0 %3741
          %3745 = vset.pattern.permute.xlu0 0
          %3746 = vperm.xlu0 %3745, %v952
          %v3747 = vpop.permute.xlu0 %3746
          %3750 = vset.pattern.permute.xlu0 0
          %3751 = vperm.xlu0 %3750, %v953
          %v3752 = vpop.permute.xlu0 %3751
          %3755 = vset.pattern.permute.xlu0 0
          %3756 = vperm.xlu0 %3755, %v954
          %v3757 = vpop.permute.xlu0 %3756
          %3760 = vset.pattern.permute.xlu0 0
          %3761 = vperm.xlu0 %3760, %v955
          %v3762 = vpop.permute.xlu0 %3761
          %3765 = vset.pattern.permute.xlu0 0
          %3766 = vperm.xlu0 %3765, %v956
          %v3767 = vpop.permute.xlu0 %3766
          %v3769 = vlaneseq
          %v3770 = vshrl.u32 %v3769, 7
          %v3771 = vsub.s32 0, %v3770
          %v3772 = vrot.slane %v3688, %v3771
          %v3773 = vmul.f32 %v3692, %v3772
          %v3774 = vmul.f32 %v3697, %v3772
          %v3775 = vmul.f32 %v3702, %v3772
          %v3776 = vmul.f32 %v3707, %v3772
          %v3777 = vmul.f32 %v3712, %v3772
          %v3778 = vmul.f32 %v3717, %v3772
          %v3779 = vmul.f32 %v3722, %v3772
          %v3780 = vmul.f32 %v3727, %v3772
          %v3781 = vmul.f32 %v3732, %v3772
          %v3782 = vmul.f32 %v3737, %v3772
          %v3783 = vmul.f32 %v3742, %v3772
          %v3784 = vmul.f32 %v3747, %v3772
          %v3785 = vmul.f32 %v3752, %v3772
          %v3786 = vmul.f32 %v3757, %v3772
          %v3787 = vmul.f32 %v3762, %v3772
          %v3788 = vmul.f32 %v3767, %v3772
          %v3789 = vadd.f32 %v3672, %v3773
          %v3790 = vadd.f32 %v3673, %v3774
          %v3791 = vadd.f32 %v3674, %v3775
          %v3792 = vadd.f32 %v3675, %v3776
          %v3793 = vadd.f32 %v3676, %v3777
          %v3794 = vadd.f32 %v3677, %v3778
          %v3795 = vadd.f32 %v3678, %v3779
          %v3796 = vadd.f32 %v3679, %v3780
          %v3797 = vadd.f32 %v3680, %v3781
          %v3798 = vadd.f32 %v3681, %v3782
          %v3799 = vadd.f32 %v3682, %v3783
          %v3800 = vadd.f32 %v3683, %v3784
          %v3801 = vadd.f32 %v3684, %v3785
          %v3802 = vadd.f32 %v3685, %v3786
          %v3803 = vadd.f32 %v3686, %v3787
          %v3804 = vadd.f32 %v3687, %v3788
          %v3805 = vld [vmem:[%s20] sm:$0x1]
          %v3807 = vlaneseq
          %v3808 = vshrl.u32 %v3807, 7
          %v3809 = vsub.s32 0, %v3808
          %v3810 = vrot.slane %v3805, %v3809
          %v3812 = vadd.f32 %v3789, %v3810
          %v3813 = vadd.f32 %v3790, %v3810
          %v3814 = vadd.f32 %v3791, %v3810
          %v3815 = vadd.f32 %v3792, %v3810
          %v3816 = vadd.f32 %v3793, %v3810
          %v3817 = vadd.f32 %v3794, %v3810
          %v3818 = vadd.f32 %v3795, %v3810
          %v3819 = vadd.f32 %v3796, %v3810
          %v3820 = vadd.f32 %v3797, %v3810
          %v3821 = vadd.f32 %v3798, %v3810
          %v3822 = vadd.f32 %v3799, %v3810
          %v3823 = vadd.f32 %v3800, %v3810
          %v3824 = vadd.f32 %v3801, %v3810
          %v3825 = vadd.f32 %v3802, %v3810
          %v3826 = vadd.f32 %v3803, %v3810
          %v3827 = vadd.f32 %v3804, %v3810
          %v3828 = vxor.u32 %v3812, 2147483648
          %v3829 = vxor.u32 %v3813, 2147483648
          %v3830 = vxor.u32 %v3814, 2147483648
          %v3831 = vxor.u32 %v3815, 2147483648
          %v3832 = vxor.u32 %v3816, 2147483648
          %v3833 = vxor.u32 %v3817, 2147483648
          %v3834 = vxor.u32 %v3818, 2147483648
          %v3835 = vxor.u32 %v3819, 2147483648
          %v3836 = vxor.u32 %v3820, 2147483648
          %v3837 = vxor.u32 %v3821, 2147483648
          %v3838 = vxor.u32 %v3822, 2147483648
          %v3839 = vxor.u32 %v3823, 2147483648
          %v3840 = vxor.u32 %v3824, 2147483648
          %v3841 = vxor.u32 %v3825, 2147483648
          %v3842 = vxor.u32 %v3826, 2147483648
          %v3843 = vxor.u32 %v3827, 2147483648
          %v3844 = vmul.f32 %v3828, 1.442695
          %v3845 = vpow.pop %v3844
          %v3846 = vmul.f32 %v3829, 1.442695
          %v3847 = vpow.pop %v3846
          %v3848 = vmul.f32 %v3830, 1.442695
          %v3849 = vpow.pop %v3848
          %v3850 = vmul.f32 %v3831, 1.442695
          %v3851 = vpow.pop %v3850
          %v3852 = vmul.f32 %v3832, 1.442695
          %v3853 = vpow.pop %v3852
          %v3854 = vmul.f32 %v3833, 1.442695
          %v3855 = vpow.pop %v3854
          %v3856 = vmul.f32 %v3834, 1.442695
          %v3857 = vpow.pop %v3856
          %v3858 = vmul.f32 %v3835, 1.442695
          %v3859 = vpow.pop %v3858
          %v3860 = vmul.f32 %v3836, 1.442695
          %v3861 = vpow.pop %v3860
          %v3862 = vmul.f32 %v3837, 1.442695
          %v3863 = vpow.pop %v3862
          %v3864 = vmul.f32 %v3838, 1.442695
          %v3865 = vpow.pop %v3864
          %v3866 = vmul.f32 %v3839, 1.442695
          %v3867 = vpow.pop %v3866
          %v3868 = vmul.f32 %v3840, 1.442695
          %v3869 = vpow.pop %v3868
          %v3870 = vmul.f32 %v3841, 1.442695
          %v3871 = vpow.pop %v3870
          %v3872 = vmul.f32 %v3842, 1.442695
          %v3873 = vpow.pop %v3872
          %v3874 = vmul.f32 %v3843, 1.442695
          %v3875 = vpow.pop %v3874
          %v3876 = vadd.f32 %v3845, 1.0
          %v3877 = vadd.f32 %v3847, 1.0
          %v3878 = vadd.f32 %v3849, 1.0
          %v3879 = vadd.f32 %v3851, 1.0
          %v3880 = vadd.f32 %v3853, 1.0
          %v3881 = vadd.f32 %v3855, 1.0
          %v3882 = vadd.f32 %v3857, 1.0
          %v3883 = vadd.f32 %v3859, 1.0
          %v3884 = vadd.f32 %v3861, 1.0
          %v3885 = vadd.f32 %v3863, 1.0
          %v3886 = vadd.f32 %v3865, 1.0
          %v3887 = vadd.f32 %v3867, 1.0
          %v3888 = vadd.f32 %v3869, 1.0
          %v3889 = vadd.f32 %v3871, 1.0
          %v3890 = vadd.f32 %v3873, 1.0
          %v3891 = vadd.f32 %v3875, 1.0
          %v3892 = vrcp.pop %v3876
          %v3893 = vmul.f32 1.0, %v3892
          %v3894 = vrcp.pop %v3877
          %v3895 = vmul.f32 1.0, %v3894
          %v3896 = vrcp.pop %v3878
          %v3897 = vmul.f32 1.0, %v3896
          %v3898 = vrcp.pop %v3879
          %v3899 = vmul.f32 1.0, %v3898
          %v3900 = vrcp.pop %v3880
          %v3901 = vmul.f32 1.0, %v3900
          %v3902 = vrcp.pop %v3881
          %v3903 = vmul.f32 1.0, %v3902
          %v3904 = vrcp.pop %v3882
          %v3905 = vmul.f32 1.0, %v3904
          %v3906 = vrcp.pop %v3883
          %v3907 = vmul.f32 1.0, %v3906
          %v3908 = vrcp.pop %v3884
          %v3909 = vmul.f32 1.0, %v3908
          %v3910 = vrcp.pop %v3885
          %v3911 = vmul.f32 1.0, %v3910
          %v3912 = vrcp.pop %v3886
          %v3913 = vmul.f32 1.0, %v3912
          %v3914 = vrcp.pop %v3887
          %v3915 = vmul.f32 1.0, %v3914
          %v3916 = vrcp.pop %v3888
          %v3917 = vmul.f32 1.0, %v3916
          %v3918 = vrcp.pop %v3889
          %v3919 = vmul.f32 1.0, %v3918
          %v3920 = vrcp.pop %v3890
          %v3921 = vmul.f32 1.0, %v3920
          %v3922 = vrcp.pop %v3891
          %v3923 = vmul.f32 1.0, %v3922
          %v3924 = vmul.f32 %v3812, %v3893
          %v3925 = vmul.f32 %v3813, %v3895
          %v3926 = vmul.f32 %v3814, %v3897
          %v3927 = vmul.f32 %v3815, %v3899
          %v3928 = vmul.f32 %v3816, %v3901
          %v3929 = vmul.f32 %v3817, %v3903
          %v3930 = vmul.f32 %v3818, %v3905
          %v3931 = vmul.f32 %v3819, %v3907
          %v3932 = vmul.f32 %v3820, %v3909
          %v3933 = vmul.f32 %v3821, %v3911
          %v3934 = vmul.f32 %v3822, %v3913
          %v3935 = vmul.f32 %v3823, %v3915
          %v3936 = vmul.f32 %v3824, %v3917
          %v3937 = vmul.f32 %v3825, %v3919
          %v3938 = vmul.f32 %v3826, %v3921
          %v3939 = vmul.f32 %v3827, %v3923
          %v3940 = vld [vmem:[%s21] sm:$0xff]
          %v3941 = vld [vmem:[%s21 + $0x8] sm:$0xff]
          %v3942 = vld [vmem:[%s21 + $0x10] sm:$0xff]
          %v3943 = vld [vmem:[%s21 + $0x18] sm:$0xff]
          %v3944 = vld [vmem:[%s22] sm:$0x1]
          %v3946 = vlaneseq
          %v3947 = vshrl.u32 %v3946, 7
          %v3948 = vsub.s32 0, %v3947
          %v3949 = vrot.slane %v3944, %v3948
          %vm3951 = vcmask 261120
          %v3953 = vsel %vm3951, %v3924, 0
          %v3956 = vsel %vm3951, %v3925, 0
          %v3959 = vsel %vm3951, %v3926, 0
          %v3962 = vsel %vm3951, %v3927, 0
          %v3965 = vsel %vm3951, %v3928, 0
          %v3968 = vsel %vm3951, %v3929, 0
          %v3971 = vsel %vm3951, %v3930, 0
          %v3974 = vsel %vm3951, %v3931, 0
          %v3977 = vsel %vm3951, %v3932, 0
          %v3980 = vsel %vm3951, %v3933, 0
          %v3983 = vsel %vm3951, %v3934, 0
          %v3986 = vsel %vm3951, %v3935, 0
          %v3989 = vsel %vm3951, %v3936, 0
          %v3992 = vsel %vm3951, %v3937, 0
          %v3995 = vsel %vm3951, %v3938, 0
          %v3998 = vsel %vm3951, %v3939, 0
          %4000 = vmatprep.subr.mxu0 0.0
          %4001 = vmatpush1.msra.mxu0 0.0
          %4002 = vmatprep.subr.mxu0 0.0
          %4003 = vmatpush1.msra.mxu0 0.0
          %4004 = vmatprep.subr.mxu0 0.0
          %4005 = vmatpush1.msra.mxu0 0.0
          %4006 = vmatprep.subr.mxu0 0.0
          %4007 = vmatpush1.msra.mxu0 0.0
          %4008 = vmatprep.subr.mxu0 0.0
          %4009 = vmatpush1.msra.mxu0 0.0
          %4010 = vmatprep.subr.mxu0 0.0
          %4011 = vmatpush1.msra.mxu0 0.0
          %4012 = vmatprep.subr.mxu0 0.0
          %4013 = vmatpush1.msra.mxu0 0.0
          %4014 = vmatprep.subr.mxu0 0.0
          %4015 = vmatpush1.msra.mxu0 0.0
          %4016 = vmatprep.subr.mxu0 0.0
          %4017 = vmatpush1.msra.mxu0 0.0
          %4018 = vmatprep.subr.mxu0 0.0
          %4019 = vmatpush1.msra.mxu0 0.0
          %4020 = vmatprep.subr.mxu0 0.0
          %4021 = vmatpush1.msra.mxu0 0.0
          %4022 = vmatprep.subr.mxu0 0.0
          %4023 = vmatpush1.msra.mxu0 0.0
          %4024 = vmatprep.subr.mxu0 0.0
          %4025 = vmatpush1.msra.mxu0 %v3943
          %4026 = vmatprep.subr.mxu0 0.0
          %4027 = vmatpush1.msra.mxu0 %v3942
          %4028 = vmatprep.subr.mxu0 0.0
          %4029 = vmatpush1.msra.mxu0 %v3941
          %4030 = vmatprep.subr.mxu0 0.0
          %4031 = vmatpush1.msra.mxu0 %v3940
          %4032 = vmatprep.subr.mxu0 0.0
          %4033 = vmatpush2.msra.mxu0 0.0
          %4034 = vmatprep.subr.mxu0 0.0
          %4035 = vmatpush2.msra.mxu0 0.0
          %4036 = vmatprep.subr.mxu0 0.0
          %4037 = vmatpush2.msra.mxu0 0.0
          %4038 = vmatprep.subr.mxu0 0.0
          %4039 = vmatpush2.msra.mxu0 0.0
          %4040 = vmatprep.subr.mxu0 0.0
          %4041 = vmatpush2.msra.mxu0 0.0
          %4042 = vmatprep.subr.mxu0 0.0
          %4043 = vmatpush2.msra.mxu0 0.0
          %4044 = vmatprep.subr.mxu0 0.0
          %4045 = vmatpush2.msra.mxu0 0.0
          %4046 = vmatprep.subr.mxu0 0.0
          %4047 = vmatpush2.msra.mxu0 0.0
          %4048 = vmatprep.subr.mxu0 0.0
          %4049 = vmatpush2.msra.mxu0 0.0
          %4050 = vmatprep.subr.mxu0 0.0
          %4051 = vmatpush2.msra.mxu0 0.0
          %4052 = vmatprep.subr.mxu0 0.0
          %4053 = vmatpush2.msra.mxu0 0.0
          %4054 = vmatprep.subr.mxu0 0.0
          %4055 = vmatpush2.msra.mxu0 0.0
          %4056 = vmatprep.subr.mxu0 0.0
          %4057 = vmatpush2.msra.mxu0 0.0
          %4058 = vmatprep.subr.mxu0 0.0
          %4059 = vmatpush2.msra.mxu0 0.0
          %4060 = vmatprep.subr.mxu0 0.0
          %4061 = vmatpush2.msra.mxu0 0.0
          %4062 = vmatprep.subr.mxu0 0.0
          %4063 = vmatpush2.msra.mxu0 0.0
          %4064 = vmatprep.mubr.f32.mxu0 0.0
          %4065 = vmatmul.mubr.f32.gmra.mxu0 %v3953
          %v4066 = vpop.f32.mrf.mxu0
          %v4067 = vadd.f32 %v3949, %v4066
          %v4068 = vpop.f32.mrf.mxu0
          %4069 = vmatprep.mubr.f32.mxu0 0.0
          %4070 = vmatmul.mubr.f32.gmra.mxu0 %v3956
          %v4071 = vpop.f32.mrf.mxu0
          %v4072 = vadd.f32 %v3949, %v4071
          %v4073 = vpop.f32.mrf.mxu0
          %4074 = vmatprep.mubr.f32.mxu0 0.0
          %4075 = vmatmul.mubr.f32.gmra.mxu0 %v3959
          %v4076 = vpop.f32.mrf.mxu0
          %v4077 = vadd.f32 %v3949, %v4076
          %v4078 = vpop.f32.mrf.mxu0
          %4079 = vmatprep.mubr.f32.mxu0 0.0
          %4080 = vmatmul.mubr.f32.gmra.mxu0 %v3962
          %v4081 = vpop.f32.mrf.mxu0
          %v4082 = vadd.f32 %v3949, %v4081
          %v4083 = vpop.f32.mrf.mxu0
          %4084 = vmatprep.mubr.f32.mxu0 0.0
          %4085 = vmatmul.mubr.f32.gmra.mxu0 %v3965
          %v4086 = vpop.f32.mrf.mxu0
          %v4087 = vadd.f32 %v3949, %v4086
          %v4088 = vpop.f32.mrf.mxu0
          %4089 = vmatprep.mubr.f32.mxu0 0.0
          %4090 = vmatmul.mubr.f32.gmra.mxu0 %v3968
          %v4091 = vpop.f32.mrf.mxu0
          %v4092 = vadd.f32 %v3949, %v4091
          %v4093 = vpop.f32.mrf.mxu0
          %4094 = vmatprep.mubr.f32.mxu0 0.0
          %4095 = vmatmul.mubr.f32.gmra.mxu0 %v3971
          %v4096 = vpop.f32.mrf.mxu0
          %v4097 = vadd.f32 %v3949, %v4096
          %v4098 = vpop.f32.mrf.mxu0
          %4099 = vmatprep.mubr.f32.mxu0 0.0
          %4100 = vmatmul.mubr.f32.gmra.mxu0 %v3974
          %v4101 = vpop.f32.mrf.mxu0
          %v4102 = vadd.f32 %v3949, %v4101
          %v4103 = vpop.f32.mrf.mxu0
          %4104 = vmatprep.mubr.f32.mxu0 0.0
          %4105 = vmatmul.mubr.f32.gmra.mxu0 %v3977
          %v4106 = vpop.f32.mrf.mxu0
          %v4107 = vadd.f32 %v3949, %v4106
          %v4108 = vpop.f32.mrf.mxu0
          %4109 = vmatprep.mubr.f32.mxu0 0.0
          %4110 = vmatmul.mubr.f32.gmra.mxu0 %v3980
          %v4111 = vpop.f32.mrf.mxu0
          %v4112 = vadd.f32 %v3949, %v4111
          %v4113 = vpop.f32.mrf.mxu0
          %4114 = vmatprep.mubr.f32.mxu0 0.0
          %4115 = vmatmul.mubr.f32.gmra.mxu0 %v3983
          %v4116 = vpop.f32.mrf.mxu0
          %v4117 = vadd.f32 %v3949, %v4116
          %v4118 = vpop.f32.mrf.mxu0
          %4119 = vmatprep.mubr.f32.mxu0 0.0
          %4120 = vmatmul.mubr.f32.gmra.mxu0 %v3986
          %v4121 = vpop.f32.mrf.mxu0
          %v4122 = vadd.f32 %v3949, %v4121
          %v4123 = vpop.f32.mrf.mxu0
          %4124 = vmatprep.mubr.f32.mxu0 0.0
          %4125 = vmatmul.mubr.f32.gmra.mxu0 %v3989
          %v4126 = vpop.f32.mrf.mxu0
          %v4127 = vadd.f32 %v3949, %v4126
          %v4128 = vpop.f32.mrf.mxu0
          %4129 = vmatprep.mubr.f32.mxu0 0.0
          %4130 = vmatmul.mubr.f32.gmra.mxu0 %v3992
          %v4131 = vpop.f32.mrf.mxu0
          %v4132 = vadd.f32 %v3949, %v4131
          %v4133 = vpop.f32.mrf.mxu0
          %4134 = vmatprep.mubr.f32.mxu0 0.0
          %4135 = vmatmul.mubr.f32.gmra.mxu0 %v3995
          %v4136 = vpop.f32.mrf.mxu0
          %v4137 = vadd.f32 %v3949, %v4136
          %v4138 = vpop.f32.mrf.mxu0
          %4139 = vmatprep.mubr.f32.mxu0 0.0
          %4140 = vmatmul.mubr.f32.gmra.mxu0 %v3998
          %v4141 = vpop.f32.mrf.mxu0
          %v4142 = vadd.f32 %v3949, %v4141
          %v4143 = vpop.f32.mrf.mxu0
          %4144 = vdwg.mxu0
          %v4145 = vxor.u32 %v4067, 2147483648
          %v4146 = vxor.u32 %v4072, 2147483648
          %v4147 = vxor.u32 %v4077, 2147483648
          %v4148 = vxor.u32 %v4082, 2147483648
          %v4149 = vxor.u32 %v4087, 2147483648
          %v4150 = vxor.u32 %v4092, 2147483648
          %v4151 = vxor.u32 %v4097, 2147483648
          %v4152 = vxor.u32 %v4102, 2147483648
          %v4153 = vxor.u32 %v4107, 2147483648
          %v4154 = vxor.u32 %v4112, 2147483648
          %v4155 = vxor.u32 %v4117, 2147483648
          %v4156 = vxor.u32 %v4122, 2147483648
          %v4157 = vxor.u32 %v4127, 2147483648
          %v4158 = vxor.u32 %v4132, 2147483648
          %v4159 = vxor.u32 %v4137, 2147483648
          %v4160 = vxor.u32 %v4142, 2147483648
          %v4161 = vmul.f32 %v4145, 1.442695
          %v4162 = vpow.pop %v4161
          %v4163 = vmul.f32 %v4146, 1.442695
          %v4164 = vpow.pop %v4163
          %v4165 = vmul.f32 %v4147, 1.442695
          %v4166 = vpow.pop %v4165
          %v4167 = vmul.f32 %v4148, 1.442695
          %v4168 = vpow.pop %v4167
          %v4169 = vmul.f32 %v4149, 1.442695
          %v4170 = vpow.pop %v4169
          %v4171 = vmul.f32 %v4150, 1.442695
          %v4172 = vpow.pop %v4171
          %v4173 = vmul.f32 %v4151, 1.442695
          %v4174 = vpow.pop %v4173
          %v4175 = vmul.f32 %v4152, 1.442695
          %v4176 = vpow.pop %v4175
          %v4177 = vmul.f32 %v4153, 1.442695
          %v4178 = vpow.pop %v4177
          %v4179 = vmul.f32 %v4154, 1.442695
          %v4180 = vpow.pop %v4179
          %v4181 = vmul.f32 %v4155, 1.442695
          %v4182 = vpow.pop %v4181
          %v4183 = vmul.f32 %v4156, 1.442695
          %v4184 = vpow.pop %v4183
          %v4185 = vmul.f32 %v4157, 1.442695
          %v4186 = vpow.pop %v4185
          %v4187 = vmul.f32 %v4158, 1.442695
          %v4188 = vpow.pop %v4187
          %v4189 = vmul.f32 %v4159, 1.442695
          %v4190 = vpow.pop %v4189
          %v4191 = vmul.f32 %v4160, 1.442695
          %v4192 = vpow.pop %v4191
          %v4193 = vadd.f32 %v4162, 1.0
          %v4194 = vadd.f32 %v4164, 1.0
          %v4195 = vadd.f32 %v4166, 1.0
          %v4196 = vadd.f32 %v4168, 1.0
          %v4197 = vadd.f32 %v4170, 1.0
          %v4198 = vadd.f32 %v4172, 1.0
          %v4199 = vadd.f32 %v4174, 1.0
          %v4200 = vadd.f32 %v4176, 1.0
          %v4201 = vadd.f32 %v4178, 1.0
          %v4202 = vadd.f32 %v4180, 1.0
          %v4203 = vadd.f32 %v4182, 1.0
          %v4204 = vadd.f32 %v4184, 1.0
          %v4205 = vadd.f32 %v4186, 1.0
          %v4206 = vadd.f32 %v4188, 1.0
          %v4207 = vadd.f32 %v4190, 1.0
          %v4208 = vadd.f32 %v4192, 1.0
          %v4209 = vrcp.pop %v4193
          %v4210 = vmul.f32 1.0, %v4209
          %v4211 = vrcp.pop %v4194
          %v4212 = vmul.f32 1.0, %v4211
          %v4213 = vrcp.pop %v4195
          %v4214 = vmul.f32 1.0, %v4213
          %v4215 = vrcp.pop %v4196
          %v4216 = vmul.f32 1.0, %v4215
          %v4217 = vrcp.pop %v4197
          %v4218 = vmul.f32 1.0, %v4217
          %v4219 = vrcp.pop %v4198
          %v4220 = vmul.f32 1.0, %v4219
          %v4221 = vrcp.pop %v4199
          %v4222 = vmul.f32 1.0, %v4221
          %v4223 = vrcp.pop %v4200
          %v4224 = vmul.f32 1.0, %v4223
          %v4225 = vrcp.pop %v4201
          %v4226 = vmul.f32 1.0, %v4225
          %v4227 = vrcp.pop %v4202
          %v4228 = vmul.f32 1.0, %v4227
          %v4229 = vrcp.pop %v4203
          %v4230 = vmul.f32 1.0, %v4229
          %v4231 = vrcp.pop %v4204
          %v4232 = vmul.f32 1.0, %v4231
          %v4233 = vrcp.pop %v4205
          %v4234 = vmul.f32 1.0, %v4233
          %v4235 = vrcp.pop %v4206
          %v4236 = vmul.f32 1.0, %v4235
          %v4237 = vrcp.pop %v4207
          %v4238 = vmul.f32 1.0, %v4237
          %v4239 = vrcp.pop %v4208
          %v4240 = vmul.f32 1.0, %v4239
          %v4241 = vmul.f32 %v4067, %v4210
          %v4242 = vmul.f32 %v4072, %v4212
          %v4243 = vmul.f32 %v4077, %v4214
          %v4244 = vmul.f32 %v4082, %v4216
          %v4245 = vmul.f32 %v4087, %v4218
          %v4246 = vmul.f32 %v4092, %v4220
          %v4247 = vmul.f32 %v4097, %v4222
          %v4248 = vmul.f32 %v4102, %v4224
          %v4249 = vmul.f32 %v4107, %v4226
          %v4250 = vmul.f32 %v4112, %v4228
          %v4251 = vmul.f32 %v4117, %v4230
          %v4252 = vmul.f32 %v4122, %v4232
          %v4253 = vmul.f32 %v4127, %v4234
          %v4254 = vmul.f32 %v4132, %v4236
          %v4255 = vmul.f32 %v4137, %v4238
          %v4256 = vmul.f32 %v4142, %v4240
          %v4257 = vld [vmem:[%s23] sm:$0xff]
          %v4258 = vld [vmem:[%s23 + $0x8] sm:$0xff]
          %v4259 = vld [vmem:[%s23 + $0x10] sm:$0xff]
          %v4260 = vld [vmem:[%s23 + $0x18] sm:$0xff]
          %v4262 = vsel %vm3951, %v4241, 0
          %v4265 = vsel %vm3951, %v4242, 0
          %v4268 = vsel %vm3951, %v4243, 0
          %v4271 = vsel %vm3951, %v4244, 0
          %v4274 = vsel %vm3951, %v4245, 0
          %v4277 = vsel %vm3951, %v4246, 0
          %v4280 = vsel %vm3951, %v4247, 0
          %v4283 = vsel %vm3951, %v4248, 0
          %v4286 = vsel %vm3951, %v4249, 0
          %v4289 = vsel %vm3951, %v4250, 0
          %v4292 = vsel %vm3951, %v4251, 0
          %v4295 = vsel %vm3951, %v4252, 0
          %v4298 = vsel %vm3951, %v4253, 0
          %v4301 = vsel %vm3951, %v4254, 0
          %v4304 = vsel %vm3951, %v4255, 0
          %v4307 = vsel %vm3951, %v4256, 0
          %4309 = vmatprep.subr.mxu0 0.0
          %4310 = vmatpush1.msra.mxu0 0.0
          %4311 = vmatprep.subr.mxu0 0.0
          %4312 = vmatpush1.msra.mxu0 0.0
          %4313 = vmatprep.subr.mxu0 0.0
          %4314 = vmatpush1.msra.mxu0 0.0
          %4315 = vmatprep.subr.mxu0 0.0
          %4316 = vmatpush1.msra.mxu0 0.0
          %4317 = vmatprep.subr.mxu0 0.0
          %4318 = vmatpush1.msra.mxu0 0.0
          %4319 = vmatprep.subr.mxu0 0.0
          %4320 = vmatpush1.msra.mxu0 0.0
          %4321 = vmatprep.subr.mxu0 0.0
          %4322 = vmatpush1.msra.mxu0 0.0
          %4323 = vmatprep.subr.mxu0 0.0
          %4324 = vmatpush1.msra.mxu0 0.0
          %4325 = vmatprep.subr.mxu0 0.0
          %4326 = vmatpush1.msra.mxu0 0.0
          %4327 = vmatprep.subr.mxu0 0.0
          %4328 = vmatpush1.msra.mxu0 0.0
          %4329 = vmatprep.subr.mxu0 0.0
          %4330 = vmatpush1.msra.mxu0 0.0
          %4331 = vmatprep.subr.mxu0 0.0
          %4332 = vmatpush1.msra.mxu0 0.0
          %4333 = vmatprep.subr.mxu0 0.0
          %4334 = vmatpush1.msra.mxu0 %v4260
          %4335 = vmatprep.subr.mxu0 0.0
          %4336 = vmatpush1.msra.mxu0 %v4259
          %4337 = vmatprep.subr.mxu0 0.0
          %4338 = vmatpush1.msra.mxu0 %v4258
          %4339 = vmatprep.subr.mxu0 0.0
          %4340 = vmatpush1.msra.mxu0 %v4257
          %4341 = vmatprep.subr.mxu0 0.0
          %4342 = vmatpush2.msra.mxu0 0.0
          %4343 = vmatprep.subr.mxu0 0.0
          %4344 = vmatpush2.msra.mxu0 0.0
          %4345 = vmatprep.subr.mxu0 0.0
          %4346 = vmatpush2.msra.mxu0 0.0
          %4347 = vmatprep.subr.mxu0 0.0
          %4348 = vmatpush2.msra.mxu0 0.0
          %4349 = vmatprep.subr.mxu0 0.0
          %4350 = vmatpush2.msra.mxu0 0.0
          %4351 = vmatprep.subr.mxu0 0.0
          %4352 = vmatpush2.msra.mxu0 0.0
          %4353 = vmatprep.subr.mxu0 0.0
          %4354 = vmatpush2.msra.mxu0 0.0
          %4355 = vmatprep.subr.mxu0 0.0
          %4356 = vmatpush2.msra.mxu0 0.0
          %4357 = vmatprep.subr.mxu0 0.0
          %4358 = vmatpush2.msra.mxu0 0.0
          %4359 = vmatprep.subr.mxu0 0.0
          %4360 = vmatpush2.msra.mxu0 0.0
          %4361 = vmatprep.subr.mxu0 0.0
          %4362 = vmatpush2.msra.mxu0 0.0
          %4363 = vmatprep.subr.mxu0 0.0
          %4364 = vmatpush2.msra.mxu0 0.0
          %4365 = vmatprep.subr.mxu0 0.0
          %4366 = vmatpush2.msra.mxu0 0.0
          %4367 = vmatprep.subr.mxu0 0.0
          %4368 = vmatpush2.msra.mxu0 0.0
          %4369 = vmatprep.subr.mxu0 0.0
          %4370 = vmatpush2.msra.mxu0 0.0
          %4371 = vmatprep.subr.mxu0 0.0
          %4372 = vmatpush2.msra.mxu0 0.0
          %4373 = vmatprep.mubr.f32.mxu0 0.0
          %4374 = vmatmul.mubr.f32.gmra.mxu0 %v4262
          %v4375 = vpop.f32.mrf.mxu0
          %v4376 = vadd.f32 0.0, %v4375
          %v4377 = vpop.f32.mrf.mxu0
          %4378 = vmatprep.mubr.f32.mxu0 0.0
          %4379 = vmatmul.mubr.f32.gmra.mxu0 %v4265
          %v4380 = vpop.f32.mrf.mxu0
          %v4381 = vadd.f32 0.0, %v4380
          %v4382 = vpop.f32.mrf.mxu0
          %4383 = vmatprep.mubr.f32.mxu0 0.0
          %4384 = vmatmul.mubr.f32.gmra.mxu0 %v4268
          %v4385 = vpop.f32.mrf.mxu0
          %v4386 = vadd.f32 0.0, %v4385
          %v4387 = vpop.f32.mrf.mxu0
          %4388 = vmatprep.mubr.f32.mxu0 0.0
          %4389 = vmatmul.mubr.f32.gmra.mxu0 %v4271
          %v4390 = vpop.f32.mrf.mxu0
          %v4391 = vadd.f32 0.0, %v4390
          %v4392 = vpop.f32.mrf.mxu0
          %4393 = vmatprep.mubr.f32.mxu0 0.0
          %4394 = vmatmul.mubr.f32.gmra.mxu0 %v4274
          %v4395 = vpop.f32.mrf.mxu0
          %v4396 = vadd.f32 0.0, %v4395
          %v4397 = vpop.f32.mrf.mxu0
          %4398 = vmatprep.mubr.f32.mxu0 0.0
          %4399 = vmatmul.mubr.f32.gmra.mxu0 %v4277
          %v4400 = vpop.f32.mrf.mxu0
          %v4401 = vadd.f32 0.0, %v4400
          %v4402 = vpop.f32.mrf.mxu0
          %4403 = vmatprep.mubr.f32.mxu0 0.0
          %4404 = vmatmul.mubr.f32.gmra.mxu0 %v4280
          %v4405 = vpop.f32.mrf.mxu0
          %v4406 = vadd.f32 0.0, %v4405
          %v4407 = vpop.f32.mrf.mxu0
          %4408 = vmatprep.mubr.f32.mxu0 0.0
          %4409 = vmatmul.mubr.f32.gmra.mxu0 %v4283
          %v4410 = vpop.f32.mrf.mxu0
          %v4411 = vadd.f32 0.0, %v4410
          %v4412 = vpop.f32.mrf.mxu0
          %4413 = vmatprep.mubr.f32.mxu0 0.0
          %4414 = vmatmul.mubr.f32.gmra.mxu0 %v4286
          %v4415 = vpop.f32.mrf.mxu0
          %v4416 = vadd.f32 0.0, %v4415
          %v4417 = vpop.f32.mrf.mxu0
          %4418 = vmatprep.mubr.f32.mxu0 0.0
          %4419 = vmatmul.mubr.f32.gmra.mxu0 %v4289
          %v4420 = vpop.f32.mrf.mxu0
          %v4421 = vadd.f32 0.0, %v4420
          %v4422 = vpop.f32.mrf.mxu0
          %4423 = vmatprep.mubr.f32.mxu0 0.0
          %4424 = vmatmul.mubr.f32.gmra.mxu0 %v4292
          %v4425 = vpop.f32.mrf.mxu0
          %v4426 = vadd.f32 0.0, %v4425
          %v4427 = vpop.f32.mrf.mxu0
          %4428 = vmatprep.mubr.f32.mxu0 0.0
          %4429 = vmatmul.mubr.f32.gmra.mxu0 %v4295
          %v4430 = vpop.f32.mrf.mxu0
          %v4431 = vadd.f32 0.0, %v4430
          %v4432 = vpop.f32.mrf.mxu0
          %4433 = vmatprep.mubr.f32.mxu0 0.0
          %4434 = vmatmul.mubr.f32.gmra.mxu0 %v4298
          %v4435 = vpop.f32.mrf.mxu0
          %v4436 = vadd.f32 0.0, %v4435
          %v4437 = vpop.f32.mrf.mxu0
          %4438 = vmatprep.mubr.f32.mxu0 0.0
          %4439 = vmatmul.mubr.f32.gmra.mxu0 %v4301
          %v4440 = vpop.f32.mrf.mxu0
          %v4441 = vadd.f32 0.0, %v4440
          %v4442 = vpop.f32.mrf.mxu0
          %4443 = vmatprep.mubr.f32.mxu0 0.0
          %4444 = vmatmul.mubr.f32.gmra.mxu0 %v4304
          %v4445 = vpop.f32.mrf.mxu0
          %v4446 = vadd.f32 0.0, %v4445
          %v4447 = vpop.f32.mrf.mxu0
          %4448 = vmatprep.mubr.f32.mxu0 0.0
          %4449 = vmatmul.mubr.f32.gmra.mxu0 %v4307
          %v4450 = vpop.f32.mrf.mxu0
          %v4451 = vadd.f32 0.0, %v4450
          %v4452 = vpop.f32.mrf.mxu0
          %4453 = vdwg.mxu0
          %v4454 = vtanh.pop %v4376
          %v4455 = vtanh.pop %v4381
          %v4456 = vtanh.pop %v4386
          %v4457 = vtanh.pop %v4391
          %v4458 = vtanh.pop %v4396
          %v4459 = vtanh.pop %v4401
          %v4460 = vtanh.pop %v4406
          %v4461 = vtanh.pop %v4411
          %v4462 = vtanh.pop %v4416
          %v4463 = vtanh.pop %v4421
          %v4464 = vtanh.pop %v4426
          %v4465 = vtanh.pop %v4431
          %v4466 = vtanh.pop %v4436
          %v4467 = vtanh.pop %v4441
          %v4468 = vtanh.pop %v4446
          %v4469 = vtanh.pop %v4451
          %v4470 = vmul.f32 %v4454, 15.0
          %v4471 = vmul.f32 %v4455, 15.0
          %v4472 = vmul.f32 %v4456, 15.0
          %v4473 = vmul.f32 %v4457, 15.0
          %v4474 = vmul.f32 %v4458, 15.0
          %v4475 = vmul.f32 %v4459, 15.0
          %v4476 = vmul.f32 %v4460, 15.0
          %v4477 = vmul.f32 %v4461, 15.0
          %v4478 = vmul.f32 %v4462, 15.0
          %v4479 = vmul.f32 %v4463, 15.0
          %v4480 = vmul.f32 %v4464, 15.0
          %v4481 = vmul.f32 %v4465, 15.0
          %v4482 = vmul.f32 %v4466, 15.0
          %v4483 = vmul.f32 %v4467, 15.0
          %v4484 = vmul.f32 %v4468, 15.0
          %v4485 = vmul.f32 %v4469, 15.0
          %v4486 = vadd.f32 %v1379, 1e-08
          %v4487 = vadd.f32 %v1381, 1e-08
          %v4488 = vadd.f32 %v1383, 1e-08
          %v4489 = vadd.f32 %v1385, 1e-08
          %v4490 = vadd.f32 %v1387, 1e-08
          %v4491 = vadd.f32 %v1389, 1e-08
          %v4492 = vadd.f32 %v1391, 1e-08
          %v4493 = vadd.f32 %v1393, 1e-08
          %v4494 = vadd.f32 %v1395, 1e-08
          %v4495 = vadd.f32 %v1397, 1e-08
          %v4496 = vadd.f32 %v1399, 1e-08
          %v4497 = vadd.f32 %v1401, 1e-08
          %v4498 = vadd.f32 %v1403, 1e-08
          %v4499 = vadd.f32 %v1405, 1e-08
          %v4500 = vadd.f32 %v1407, 1e-08
          %v4501 = vadd.f32 %v1409, 1e-08
          %v4502 = vrsqrt.pop %v4486
          %v4503 = vmul.f32 %v4486, %v4502
          %vm4504 = vcmp.eq.f32.partialorder %v4486, inf
          %v4505 = vsel %vm4504, %v4486, %v4503
          %vm4506 = vcmp.eq.f32.partialorder %v4486, 0.0
          %v4507 = vand.u32 %v4486, 2147483648
          %v4508 = vsel %vm4506, %v4507, %v4505
          %v4509 = vrsqrt.pop %v4487
          %v4510 = vmul.f32 %v4487, %v4509
          %vm4511 = vcmp.eq.f32.partialorder %v4487, inf
          %v4512 = vsel %vm4511, %v4487, %v4510
          %vm4513 = vcmp.eq.f32.partialorder %v4487, 0.0
          %v4514 = vand.u32 %v4487, 2147483648
          %v4515 = vsel %vm4513, %v4514, %v4512
          %v4516 = vrsqrt.pop %v4488
          %v4517 = vmul.f32 %v4488, %v4516
          %vm4518 = vcmp.eq.f32.partialorder %v4488, inf
          %v4519 = vsel %vm4518, %v4488, %v4517
          %vm4520 = vcmp.eq.f32.partialorder %v4488, 0.0
          %v4521 = vand.u32 %v4488, 2147483648
          %v4522 = vsel %vm4520, %v4521, %v4519
          %v4523 = vrsqrt.pop %v4489
          %v4524 = vmul.f32 %v4489, %v4523
          %vm4525 = vcmp.eq.f32.partialorder %v4489, inf
          %v4526 = vsel %vm4525, %v4489, %v4524
          %vm4527 = vcmp.eq.f32.partialorder %v4489, 0.0
          %v4528 = vand.u32 %v4489, 2147483648
          %v4529 = vsel %vm4527, %v4528, %v4526
          %v4530 = vrsqrt.pop %v4490
          %v4531 = vmul.f32 %v4490, %v4530
          %vm4532 = vcmp.eq.f32.partialorder %v4490, inf
          %v4533 = vsel %vm4532, %v4490, %v4531
          %vm4534 = vcmp.eq.f32.partialorder %v4490, 0.0
          %v4535 = vand.u32 %v4490, 2147483648
          %v4536 = vsel %vm4534, %v4535, %v4533
          %v4537 = vrsqrt.pop %v4491
          %v4538 = vmul.f32 %v4491, %v4537
          %vm4539 = vcmp.eq.f32.partialorder %v4491, inf
          %v4540 = vsel %vm4539, %v4491, %v4538
          %vm4541 = vcmp.eq.f32.partialorder %v4491, 0.0
          %v4542 = vand.u32 %v4491, 2147483648
          %v4543 = vsel %vm4541, %v4542, %v4540
          %v4544 = vrsqrt.pop %v4492
          %v4545 = vmul.f32 %v4492, %v4544
          %vm4546 = vcmp.eq.f32.partialorder %v4492, inf
          %v4547 = vsel %vm4546, %v4492, %v4545
          %vm4548 = vcmp.eq.f32.partialorder %v4492, 0.0
          %v4549 = vand.u32 %v4492, 2147483648
          %v4550 = vsel %vm4548, %v4549, %v4547
          %v4551 = vrsqrt.pop %v4493
          %v4552 = vmul.f32 %v4493, %v4551
          %vm4553 = vcmp.eq.f32.partialorder %v4493, inf
          %v4554 = vsel %vm4553, %v4493, %v4552
          %vm4555 = vcmp.eq.f32.partialorder %v4493, 0.0
          %v4556 = vand.u32 %v4493, 2147483648
          %v4557 = vsel %vm4555, %v4556, %v4554
          %v4558 = vrsqrt.pop %v4494
          %v4559 = vmul.f32 %v4494, %v4558
          %vm4560 = vcmp.eq.f32.partialorder %v4494, inf
          %v4561 = vsel %vm4560, %v4494, %v4559
          %vm4562 = vcmp.eq.f32.partialorder %v4494, 0.0
          %v4563 = vand.u32 %v4494, 2147483648
          %v4564 = vsel %vm4562, %v4563, %v4561
          %v4565 = vrsqrt.pop %v4495
          %v4566 = vmul.f32 %v4495, %v4565
          %vm4567 = vcmp.eq.f32.partialorder %v4495, inf
          %v4568 = vsel %vm4567, %v4495, %v4566
          %vm4569 = vcmp.eq.f32.partialorder %v4495, 0.0
          %v4570 = vand.u32 %v4495, 2147483648
          %v4571 = vsel %vm4569, %v4570, %v4568
          %v4572 = vrsqrt.pop %v4496
          %v4573 = vmul.f32 %v4496, %v4572
          %vm4574 = vcmp.eq.f32.partialorder %v4496, inf
          %v4575 = vsel %vm4574, %v4496, %v4573
          %vm4576 = vcmp.eq.f32.partialorder %v4496, 0.0
          %v4577 = vand.u32 %v4496, 2147483648
          %v4578 = vsel %vm4576, %v4577, %v4575
          %v4579 = vrsqrt.pop %v4497
          %v4580 = vmul.f32 %v4497, %v4579
          %vm4581 = vcmp.eq.f32.partialorder %v4497, inf
          %v4582 = vsel %vm4581, %v4497, %v4580
          %vm4583 = vcmp.eq.f32.partialorder %v4497, 0.0
          %v4584 = vand.u32 %v4497, 2147483648
          %v4585 = vsel %vm4583, %v4584, %v4582
          %v4586 = vrsqrt.pop %v4498
          %v4587 = vmul.f32 %v4498, %v4586
          %vm4588 = vcmp.eq.f32.partialorder %v4498, inf
          %v4589 = vsel %vm4588, %v4498, %v4587
          %vm4590 = vcmp.eq.f32.partialorder %v4498, 0.0
          %v4591 = vand.u32 %v4498, 2147483648
          %v4592 = vsel %vm4590, %v4591, %v4589
          %v4593 = vrsqrt.pop %v4499
          %v4594 = vmul.f32 %v4499, %v4593
          %vm4595 = vcmp.eq.f32.partialorder %v4499, inf
          %v4596 = vsel %vm4595, %v4499, %v4594
          %vm4597 = vcmp.eq.f32.partialorder %v4499, 0.0
          %v4598 = vand.u32 %v4499, 2147483648
          %v4599 = vsel %vm4597, %v4598, %v4596
          %v4600 = vrsqrt.pop %v4500
          %v4601 = vmul.f32 %v4500, %v4600
          %vm4602 = vcmp.eq.f32.partialorder %v4500, inf
          %v4603 = vsel %vm4602, %v4500, %v4601
          %vm4604 = vcmp.eq.f32.partialorder %v4500, 0.0
          %v4605 = vand.u32 %v4500, 2147483648
          %v4606 = vsel %vm4604, %v4605, %v4603
          %v4607 = vrsqrt.pop %v4501
          %v4608 = vmul.f32 %v4501, %v4607
          %vm4609 = vcmp.eq.f32.partialorder %v4501, inf
          %v4610 = vsel %vm4609, %v4501, %v4608
          %vm4611 = vcmp.eq.f32.partialorder %v4501, 0.0
          %v4612 = vand.u32 %v4501, 2147483648
          %v4613 = vsel %vm4611, %v4612, %v4610
          %v4614 = vadd.f32 %v4508, 1.0
          %v4615 = vadd.f32 %v4515, 1.0
          %v4616 = vadd.f32 %v4522, 1.0
          %v4617 = vadd.f32 %v4529, 1.0
          %v4618 = vadd.f32 %v4536, 1.0
          %v4619 = vadd.f32 %v4543, 1.0
          %v4620 = vadd.f32 %v4550, 1.0
          %v4621 = vadd.f32 %v4557, 1.0
          %v4622 = vadd.f32 %v4564, 1.0
          %v4623 = vadd.f32 %v4571, 1.0
          %v4624 = vadd.f32 %v4578, 1.0
          %v4625 = vadd.f32 %v4585, 1.0
          %v4626 = vadd.f32 %v4592, 1.0
          %v4627 = vadd.f32 %v4599, 1.0
          %v4628 = vadd.f32 %v4606, 1.0
          %v4629 = vadd.f32 %v4613, 1.0
          %v4630 = vrcp.pop %v4614
          %v4631 = vmul.f32 %v1346, %v4630
          %v4632 = vrcp.pop %v4615
          %v4633 = vmul.f32 %v1347, %v4632
          %v4634 = vrcp.pop %v4616
          %v4635 = vmul.f32 %v1348, %v4634
          %v4636 = vrcp.pop %v4617
          %v4637 = vmul.f32 %v1349, %v4636
          %v4638 = vrcp.pop %v4618
          %v4639 = vmul.f32 %v1350, %v4638
          %v4640 = vrcp.pop %v4619
          %v4641 = vmul.f32 %v1351, %v4640
          %v4642 = vrcp.pop %v4620
          %v4643 = vmul.f32 %v1352, %v4642
          %v4644 = vrcp.pop %v4621
          %v4645 = vmul.f32 %v1353, %v4644
          %v4646 = vrcp.pop %v4622
          %v4647 = vmul.f32 %v1354, %v4646
          %v4648 = vrcp.pop %v4623
          %v4649 = vmul.f32 %v1355, %v4648
          %v4650 = vrcp.pop %v4624
          %v4651 = vmul.f32 %v1356, %v4650
          %v4652 = vrcp.pop %v4625
          %v4653 = vmul.f32 %v1357, %v4652
          %v4654 = vrcp.pop %v4626
          %v4655 = vmul.f32 %v1358, %v4654
          %v4656 = vrcp.pop %v4627
          %v4657 = vmul.f32 %v1359, %v4656
          %v4658 = vrcp.pop %v4628
          %v4659 = vmul.f32 %v1360, %v4658
          %v4660 = vrcp.pop %v4629
          %v4661 = vmul.f32 %v1361, %v4660
          %4663 = vset.pattern.permute.xlu0 0
          %4664 = vperm.xlu0 %4663, %v4470
          %v4665 = vpop.permute.xlu0 %4664
          %4668 = vset.pattern.permute.xlu0 0
          %4669 = vperm.xlu0 %4668, %v4471
          %v4670 = vpop.permute.xlu0 %4669
          %4673 = vset.pattern.permute.xlu0 0
          %4674 = vperm.xlu0 %4673, %v4472
          %v4675 = vpop.permute.xlu0 %4674
          %4678 = vset.pattern.permute.xlu0 0
          %4679 = vperm.xlu0 %4678, %v4473
          %v4680 = vpop.permute.xlu0 %4679
          %4683 = vset.pattern.permute.xlu0 0
          %4684 = vperm.xlu0 %4683, %v4474
          %v4685 = vpop.permute.xlu0 %4684
          %4688 = vset.pattern.permute.xlu0 0
          %4689 = vperm.xlu0 %4688, %v4475
          %v4690 = vpop.permute.xlu0 %4689
          %4693 = vset.pattern.permute.xlu0 0
          %4694 = vperm.xlu0 %4693, %v4476
          %v4695 = vpop.permute.xlu0 %4694
          %4698 = vset.pattern.permute.xlu0 0
          %4699 = vperm.xlu0 %4698, %v4477
          %v4700 = vpop.permute.xlu0 %4699
          %4703 = vset.pattern.permute.xlu0 0
          %4704 = vperm.xlu0 %4703, %v4478
          %v4705 = vpop.permute.xlu0 %4704
          %4708 = vset.pattern.permute.xlu0 0
          %4709 = vperm.xlu0 %4708, %v4479
          %v4710 = vpop.permute.xlu0 %4709
          %4713 = vset.pattern.permute.xlu0 0
          %4714 = vperm.xlu0 %4713, %v4480
          %v4715 = vpop.permute.xlu0 %4714
          %4718 = vset.pattern.permute.xlu0 0
          %4719 = vperm.xlu0 %4718, %v4481
          %v4720 = vpop.permute.xlu0 %4719
          %4723 = vset.pattern.permute.xlu0 0
          %4724 = vperm.xlu0 %4723, %v4482
          %v4725 = vpop.permute.xlu0 %4724
          %4728 = vset.pattern.permute.xlu0 0
          %4729 = vperm.xlu0 %4728, %v4483
          %v4730 = vpop.permute.xlu0 %4729
          %4733 = vset.pattern.permute.xlu0 0
          %4734 = vperm.xlu0 %4733, %v4484
          %v4735 = vpop.permute.xlu0 %4734
          %4738 = vset.pattern.permute.xlu0 0
          %4739 = vperm.xlu0 %4738, %v4485
          %v4740 = vpop.permute.xlu0 %4739
          %v4742 = vmul.f32 %v4631, %v4665
          %v4743 = vmul.f32 %v4633, %v4670
          %v4744 = vmul.f32 %v4635, %v4675
          %v4745 = vmul.f32 %v4637, %v4680
          %v4746 = vmul.f32 %v4639, %v4685
          %v4747 = vmul.f32 %v4641, %v4690
          %v4748 = vmul.f32 %v4643, %v4695
          %v4749 = vmul.f32 %v4645, %v4700
          %v4750 = vmul.f32 %v4647, %v4705
          %v4751 = vmul.f32 %v4649, %v4710
          %v4752 = vmul.f32 %v4651, %v4715
          %v4753 = vmul.f32 %v4653, %v4720
          %v4754 = vmul.f32 %v4655, %v4725
          %v4755 = vmul.f32 %v4657, %v4730
          %v4756 = vmul.f32 %v4659, %v4735
          %v4757 = vmul.f32 %v4661, %v4740
          %4758 = vmatprep.subr.mxu0 0.0
          %4759 = vmatpush1.msra.mxu0 %v4757
          %4760 = vmatprep.subr.mxu0 0.0
          %4761 = vmatpush1.msra.mxu0 %v4756
          %4762 = vmatprep.subr.mxu0 0.0
          %4763 = vmatpush1.msra.mxu0 %v4755
          %4764 = vmatprep.subr.mxu0 0.0
          %4765 = vmatpush1.msra.mxu0 %v4754
          %4766 = vmatprep.subr.mxu0 0.0
          %4767 = vmatpush1.msra.mxu0 %v4753
          %4768 = vmatprep.subr.mxu0 0.0
          %4769 = vmatpush1.msra.mxu0 %v4752
          %4770 = vmatprep.subr.mxu0 0.0
          %4771 = vmatpush1.msra.mxu0 %v4751
          %4772 = vmatprep.subr.mxu0 0.0
          %4773 = vmatpush1.msra.mxu0 %v4750
          %4774 = vmatprep.subr.mxu0 0.0
          %4775 = vmatpush1.msra.mxu0 %v4749
          %4776 = vmatprep.subr.mxu0 0.0
          %4777 = vmatpush1.msra.mxu0 %v4748
          %4778 = vmatprep.subr.mxu0 0.0
          %4779 = vmatpush1.msra.mxu0 %v4747
          %4780 = vmatprep.subr.mxu0 0.0
          %4781 = vmatpush1.msra.mxu0 %v4746
          %4782 = vmatprep.subr.mxu0 0.0
          %4783 = vmatpush1.msra.mxu0 %v4745
          %4784 = vmatprep.subr.mxu0 0.0
          %4785 = vmatpush1.msra.mxu0 %v4744
          %4786 = vmatprep.subr.mxu0 0.0
          %4787 = vmatpush1.msra.mxu0 %v4743
          %4788 = vmatprep.subr.mxu0 0.0
          %4789 = vmatpush1.msra.mxu0 %v4742
          %4790 = vmatprep.subr.mxu0 0.0
          %4791 = vmatpush2.msra.mxu0 0.0
          %4792 = vmatprep.subr.mxu0 0.0
          %4793 = vmatpush2.msra.mxu0 0.0
          %4794 = vmatprep.subr.mxu0 0.0
          %4795 = vmatpush2.msra.mxu0 0.0
          %4796 = vmatprep.subr.mxu0 0.0
          %4797 = vmatpush2.msra.mxu0 0.0
          %4798 = vmatprep.subr.mxu0 0.0
          %4799 = vmatpush2.msra.mxu0 0.0
          %4800 = vmatprep.subr.mxu0 0.0
          %4801 = vmatpush2.msra.mxu0 0.0
          %4802 = vmatprep.subr.mxu0 0.0
          %4803 = vmatpush2.msra.mxu0 0.0
          %4804 = vmatprep.subr.mxu0 0.0
          %4805 = vmatpush2.msra.mxu0 0.0
          %4806 = vmatprep.subr.mxu0 0.0
          %4807 = vmatpush2.msra.mxu0 0.0
          %4808 = vmatprep.subr.mxu0 0.0
          %4809 = vmatpush2.msra.mxu0 0.0
          %4810 = vmatprep.subr.mxu0 0.0
          %4811 = vmatpush2.msra.mxu0 0.0
          %4812 = vmatprep.subr.mxu0 0.0
          %4813 = vmatpush2.msra.mxu0 0.0
          %4814 = vmatprep.subr.mxu0 0.0
          %4815 = vmatpush2.msra.mxu0 0.0
          %4816 = vmatprep.subr.mxu0 0.0
          %4817 = vmatpush2.msra.mxu0 0.0
          %4818 = vmatprep.subr.mxu0 0.0
          %4819 = vmatpush2.msra.mxu0 0.0
          %4820 = vmatprep.subr.mxu0 0.0
          %4821 = vmatpush2.msra.mxu0 0.0
          %4822 = vmatprep.mubr.f32.mxu0 0.0
          %4823 = vmatmul.mubr.f32.gmra.mxu0 %v939
          %v4824 = vpop.f32.mrf.mxu0
          %v4825 = vadd.f32 0.0, %v4824
          %v4826 = vpop.f32.mrf.mxu0
          %4827 = vmatprep.mubr.f32.mxu0 0.0
          %4828 = vmatmul.mubr.f32.gmra.mxu0 %v940
          %v4829 = vpop.f32.mrf.mxu0
          %v4830 = vadd.f32 0.0, %v4829
          %v4831 = vpop.f32.mrf.mxu0
          %4832 = vdwg.mxu0
          %v4833 = vld [vmem:[#allocation3] sm:$0xff]
          %v4834 = vld [vmem:[#allocation3 + $0x8] sm:$0xff]
          %v4835 = vadd.f32 %v4833, %v4825
          %v4836 = vadd.f32 %v4834, %v4830
          %4837 = vst [vmem:[#allocation3] sm:$0xff] %v4835
          %4838 = vst [vmem:[#allocation3 + $0x8] sm:$0xff] %v4836
          %p4839 = scmp.eq.s32.totalorder %s42, 1
          // Predicated region
          $region178: #{egnn_forward.3} parent=172 // pred_check
            %p4840 = pneg %p4839
          $region179: #{egnn_forward.3} parent=172 // pred_check_branch
            %4842 = sbr.rel (%p4840) target = $region181
          $region180: #{egnn_forward.3} parent=172 // pred_region
            %v4843 = vld [vmem:[%s1] sm:$0xff]
            %v4844 = vld [vmem:[%s1 + $0x8] sm:$0xff]
            %v4845 = vld [vmem:[#allocation3] sm:$0xff]
            %v4846 = vld [vmem:[#allocation3 + $0x8] sm:$0xff]
            %v4847 = vadd.f32 %v4843, %v4845
            %v4848 = vadd.f32 %v4844, %v4846
            %4849 = vst [vmem:[%s25] sm:$0xff] %v4847
            %4850 = vst [vmem:[%s25 + $0x8] sm:$0xff] %v4848
          $region181: #{egnn_forward.3} parent=172 // pred_fallthru
            _
        $region173: #{egnn_forward.3} parent=152 // pred_fallthru
          _
        // Predicated region
        $region182: #{egnn_forward.3} parent=152 // pred_check
          %p4851 = pneg %p586
        $region183: #{egnn_forward.3} parent=152 // pred_check_branch
          %4853 = sbr.rel (%p4851) target = $region185
        $region184: #{egnn_forward.3} parent=152 // pred_region
          _
        $region185: #{egnn_forward.3} parent=152 // pred_fallthru
          _
        // Predicated region
        $region186: #{egnn_forward.3} parent=152 // pred_check
          %p4854 = pneg %p607
        $region187: #{egnn_forward.3} parent=152 // pred_check_branch
          %4856 = sbr.rel (%p4854) target = $region189
        $region188: #{egnn_forward.3} parent=152 // pred_region
          _
        $region189: #{egnn_forward.3} parent=152 // pred_fallthru
          _
        // Predicated region
        $region190: #{egnn_forward.3} parent=152 // pred_check
          %p4857 = pneg %p586
        $region191: #{egnn_forward.3} parent=152 // pred_check_branch
          %4859 = sbr.rel (%p4857) target = $region193
        $region192: #{egnn_forward.3} parent=152 // pred_region
          _
        $region193: #{egnn_forward.3} parent=152 // pred_fallthru
          _
        // Predicated region
        $region194: #{egnn_forward.3} parent=152 // pred_check
          %p4860 = pneg %p607
        $region195: #{egnn_forward.3} parent=152 // pred_check_branch
          %4862 = sbr.rel (%p4860) target = $region197
        $region196: #{egnn_forward.3} parent=152 // pred_region
          _
        $region197: #{egnn_forward.3} parent=152 // pred_fallthru
          _
      $region153: #{egnn_forward.3} parent=5 // pred_fallthru
        _
      %p4863 = scmp.le.s32.totalorder 2, %s32
      // Predicated region
      $region198: #{egnn_forward.3} parent=5 // pred_check
        %p4864 = pneg %p4863
      $region199: #{egnn_forward.3} parent=5 // pred_check_branch
        %4866 = sbr.rel (%p4864) target = $region201
      $region200: #{egnn_forward.3} parent=5 // pred_region
        %s4867 = ssub.s32 %s32, 2
      $region201: #{egnn_forward.3} parent=5 // pred_fallthru
        _
    $region6: #{egnn_forward.3} parent=1 // loop_footer
      %s36 = sadd.s32 1, %s32
    $region7: #{egnn_forward.3} parent=1 // loop_footer_branch
      %31 = sbr.rel target = $region3
    $region8: #{egnn_forward.3} parent=1 // loop_exit
      _

</llo_original>
